<compile_context>
chip_gen: v7x
topology: tpu7x:2x2x1
jax: 0.10.0
libtpu: 0.0.40
codegen_flags: <defaults>
</compile_context>

<pallas_src>
import functools

import jax
import jax.numpy as jnp
import numpy as np
from jax.experimental import pallas as pl
from jax.experimental.pallas import tpu as pltpu

HIDDEN_SIZE = 128
INPUT_SIZE = 28
NUM_CLASSES = 10
NUM_LAYERS = 2

SUBLANE = 8    # f32 sublane tile
LANE = 128     # lane tile


def _round_up(x, m):
    return ((x + m - 1) // m) * m


# ----------------------------------------------------------------------------
# Fused Pallas kernel: 2 LSTM layers (wavefront) + FC head
# ----------------------------------------------------------------------------
def _fused_lstm_kernel(x_ref, wih0_ref, whh0_ref, b0_ref,
                       w1cat_ref, b1_ref,
                       wfc_ref, bfc_ref, out_ref,
                       xp_scr, *, T, Bp, H):
    """x_ref: (T*Bp, Dp). Weights pre-transposed/padded in the wrapper:
         wih0_ref: (Dp, 4H)   whh0_ref: (H, 4H)   b0_ref: (1, 4H)
         w1cat_ref: (2H, 4H) = [w_ih1^T ; w_hh1^T]   b1_ref: (1, 4H)
         wfc_ref: (H, Cp)     bfc_ref: (1, Cp)
       xp_scr: (T*Bp, 4H) hoisted layer-0 input projection (VMEM scratch).
       Gate order is PyTorch's [i, f, g, o]; h/c live in the loop carry."""

    # ---- hoisted layer-0 input projection: one well-filled MXU matmul ----
    xp_scr[...] = (
        jnp.dot(x_ref[...], wih0_ref[...], preferred_element_type=jnp.float32)
        + b0_ref[...]
    )

    def lstm_gates(gates, c):
        i_g = jax.nn.sigmoid(gates[:, 0 * H:1 * H])
        f_g = jax.nn.sigmoid(gates[:, 1 * H:2 * H])
        g_g = jnp.tanh(gates[:, 2 * H:3 * H])
        o_g = jax.nn.sigmoid(gates[:, 3 * H:4 * H])
        c_new = f_g * c + i_g * g_g
        h_new = o_g * jnp.tanh(c_new)
        return h_new, c_new

    def layer0_step(t, h0, c0):
        off = pl.multiple_of(t * Bp, Bp)
        # Only the small (Bp,H)x(H,4H) recurrent matmul is on the serial path.
        gates = xp_scr[pl.ds(off, Bp), :] + jnp.dot(
            h0, whh0_ref[...], preferred_element_type=jnp.float32)
        return lstm_gates(gates, c0)

    def layer1_step(h0_t, h1, c1):
        # Fused input+recurrent projection: (Bp, 2H) x (2H, 4H), K = 256.
        gates = jnp.dot(
            jnp.concatenate([h0_t, h1], axis=1), w1cat_ref[...],
            preferred_element_type=jnp.float32) + b1_ref[...]
        return lstm_gates(gates, c1)

    zeros = jnp.zeros((Bp, H), jnp.float32)

    # Prologue: layer-0 step 0.
    h0, c0 = layer0_step(0, zeros, zeros)
    h1, c1 = zeros, zeros

    # Wavefront: iteration t runs layer-1 step t (consumes h0_t from the carry)
    # and layer-0 step t+1. The two sub-steps have no intra-body data
    # dependence, so the scheduler overlaps MXU / VPU / EUP work across layers.
    def body(t, carry):
        h0, c0, h1, c1 = carry
        h1n, c1n = layer1_step(h0, h1, c1)
        h0n, c0n = layer0_step(t + 1, h0, c0)
        return (h0n, c0n, h1n, c1n)

    unroll = True if T <= 16 else 4
    h0, c0, h1, c1 = jax.lax.fori_loop(0, T - 1, body, (h0, c0, h1, c1),
                                       unroll=unroll)

    # Epilogue: layer-1 step T-1 on the last layer-0 hidden state.
    h1, c1 = layer1_step(h0, h1, c1)

    # ---- FC head on the final hidden state (lane-padded, dense store) ----
    out_ref[...] = (
        jnp.dot(h1, wfc_ref[...], preferred_element_type=jnp.float32)
        + bfc_ref[...]
    )


# ----------------------------------------------------------------------------
# Wrapper (matches LSTM.forward: x (B, T, D) batch_first -> logits (B, C))
# ----------------------------------------------------------------------------
def lstm_model_forward(x_btd, params):
    B, T, D = x_btd.shape
    H = HIDDEN_SIZE
    C = NUM_CLASSES
    Bp = _round_up(B, SUBLANE)   # pad batch to sublane tile
    Dp = _round_up(D, LANE)      # pad input features to lane tile (dense vregs)
    Cp = _round_up(C, LANE)      # pad classes to lane tile (dense store)

    # Time-major, zero-pad batch rows and feature lanes (row-independent and
    # contracted-over-zero -> harmless), flatten so the hoisted projection is
    # one dense matmul.
    x_tbd = jnp.transpose(x_btd.astype(jnp.float32), (1, 0, 2))      # (T, B, D)
    x_pad = jnp.zeros((T, Bp, Dp), jnp.float32).at[:, :B, :D].set(x_tbd)
    x_flat = x_pad.reshape(T * Bp, Dp)

    w_ih0, w_hh0, b_ih0, b_hh0 = params["layer0"]
    w_ih1, w_hh1, b_ih1, b_hh1 = params["layer1"]
    w_fc, b_fc = params["fc"]

    wih0T = jnp.zeros((Dp, 4 * H), jnp.float32).at[:D, :].set(
        jnp.asarray(w_ih0.T, jnp.float32))                           # (Dp, 4H)
    whh0T = jnp.asarray(w_hh0.T, jnp.float32)                        # (H, 4H)
    b0 = (b_ih0 + b_hh0).reshape(1, 4 * H).astype(jnp.float32)

    # Layer-1 fused projection weight: [w_ih1^T ; w_hh1^T]  -> (2H, 4H)
    w1cat = jnp.concatenate(
        [jnp.asarray(w_ih1.T, jnp.float32), jnp.asarray(w_hh1.T, jnp.float32)],
        axis=0)
    b1 = (b_ih1 + b_hh1).reshape(1, 4 * H).astype(jnp.float32)

    wfcT = jnp.zeros((H, Cp), jnp.float32).at[:, :C].set(
        jnp.asarray(w_fc.T, jnp.float32))                            # (H, Cp)
    bfcp = jnp.zeros((1, Cp), jnp.float32).at[:, :C].set(
        jnp.asarray(b_fc, jnp.float32))                              # (1, Cp)

    def full(shape):
        return pl.BlockSpec(shape, lambda: tuple(0 for _ in shape))

    # Explicit scoped-VMEM budget (v5e default is only 16 MiB); cap at 64 MiB
    # so the same setting is legal on v7x.
    scratch_bytes = 4 * (T * Bp * 4 * H)
    io_bytes = 4 * (T * Bp * Dp + Dp * 4 * H + H * 4 * H + 2 * H * 4 * H
                    + H * Cp + Bp * Cp + 2 * 4 * H + Cp)
    vmem_limit = int(min(max(2 * (scratch_bytes + io_bytes) + (8 << 20),
                             32 << 20), 64 << 20))

    out_pad = pl.pallas_call(
        functools.partial(_fused_lstm_kernel, T=T, Bp=Bp, H=H),
        out_shape=jax.ShapeDtypeStruct((Bp, Cp), jnp.float32),
        in_specs=[
            full((T * Bp, Dp)),
            full((Dp, 4 * H)),
            full((H, 4 * H)),
            full((1, 4 * H)),
            full((2 * H, 4 * H)),
            full((1, 4 * H)),
            full((H, Cp)),
            full((1, Cp)),
        ],
        out_specs=full((Bp, Cp)),
        scratch_shapes=[
            pltpu.VMEM((T * Bp, 4 * H), jnp.float32),   # hoisted layer-0 gates
        ],
        compiler_params=pltpu.CompilerParams(vmem_limit_bytes=vmem_limit),
    )(x_flat, wih0T, whh0T, b0, w1cat, b1, wfcT, bfcp)

    return out_pad[:B, :C]


# ----------------------------------------------------------------------------
# Pure-JAX reference (for correctness check)
# ----------------------------------------------------------------------------
def lstm_model_ref(x_btd, params):
    B = x_btd.shape[0]
    H = HIDDEN_SIZE
    seq = x_btd.astype(jnp.float32)
    for l in range(NUM_LAYERS):
        w_ih, w_hh, b_ih, b_hh = params[f"layer{l}"]

        def step(carry, x_t):
            h, c = carry
            gates = x_t @ w_ih.T + b_ih + h @ w_hh.T + b_hh
            i = jax.nn.sigmoid(gates[:, 0 * H:1 * H])
            f = jax.nn.sigmoid(gates[:, 1 * H:2 * H])
            g = jnp.tanh(gates[:, 2 * H:3 * H])
            o = jax.nn.sigmoid(gates[:, 3 * H:4 * H])
            c = f * c + i * g
            h = o * jnp.tanh(c)
            return (h, c), h

        init = (jnp.zeros((B, H), jnp.float32), jnp.zeros((B, H), jnp.float32))
        _, h_seq = jax.lax.scan(step, init, jnp.transpose(seq, (1, 0, 2)))
        seq = jnp.transpose(h_seq, (1, 0, 2))
    w_fc, b_fc = params["fc"]
    return seq[:, -1, :] @ w_fc.T + b_fc


# ----------------------------------------------------------------------------
# Parameter init (deterministic, PyTorch-style uniform(-1/sqrt(H), 1/sqrt(H)))
# ----------------------------------------------------------------------------
def init_params(key):
    params = {}
    bound = 1.0 / np.sqrt(HIDDEN_SIZE)
    for l in range(NUM_LAYERS):
        in_dim = INPUT_SIZE if l == 0 else HIDDEN_SIZE
        key, k1, k2, k3, k4 = jax.random.split(key, 5)
        w_ih = jax.random.uniform(k1, (4 * HIDDEN_SIZE, in_dim), jnp.float32, -bound, bound)
        w_hh = jax.random.uniform(k2, (4 * HIDDEN_SIZE, HIDDEN_SIZE), jnp.float32, -bound, bound)
        b_ih = jax.random.uniform(k3, (4 * HIDDEN_SIZE,), jnp.float32, -bound, bound)
        b_hh = jax.random.uniform(k4, (4 * HIDDEN_SIZE,), jnp.float32, -bound, bound)
        params[f"layer{l}"] = (w_ih, w_hh, b_ih, b_hh)
    key, k1, k2 = jax.random.split(key, 3)
    w_fc = jax.random.uniform(k1, (NUM_CLASSES, HIDDEN_SIZE), jnp.float32, -bound, bound)
    b_fc = jax.random.uniform(k2, (NUM_CLASSES,), jnp.float32, -bound, bound)
    params["fc"] = (w_fc, b_fc)
    return params


if __name__ == "__main__":
    key = jax.random.PRNGKey(0)
    key, xkey = jax.random.split(key)

    B, T = 2, 8
    x = jax.random.normal(xkey, (B, T, INPUT_SIZE), jnp.float32)  # batch_first, like PyTorch
    params = init_params(key)

    out = jax.block_until_ready(lstm_model_forward(x, params))
    ref = jax.block_until_ready(lstm_model_ref(x, params))

    np.testing.assert_allclose(np.asarray(out), np.asarray(ref), rtol=1e-4, atol=1e-4)
    assert out.shape == (B, NUM_CLASSES)
    print("KERNEL_OK")
</pallas_src>

<mosaic_0001>
module attributes {stable_mosaic.version = 11 : i64} {
  func.func @_fused_lstm_kernel(%arg0: memref<64x128xf32, #tpu.memory_space<vmem>>, %arg1: memref<128x512xf32, #tpu.memory_space<vmem>>, %arg2: memref<128x512xf32, #tpu.memory_space<vmem>>, %arg3: memref<1x512xf32, #tpu.memory_space<vmem>>, %arg4: memref<256x512xf32, #tpu.memory_space<vmem>>, %arg5: memref<1x512xf32, #tpu.memory_space<vmem>>, %arg6: memref<128x128xf32, #tpu.memory_space<vmem>>, %arg7: memref<1x128xf32, #tpu.memory_space<vmem>>, %arg8: memref<8x128xf32, #tpu.memory_space<vmem>>, %arg9: memref<64x512xf32, #tpu.memory_space<vmem>>) attributes {dimension_semantics = [], scalar_prefetch = 0 : i64, scratch_operands = 1 : i64, tpu.core_type = #tpu.core_type<tc>} {
    %c0 = arith.constant 0 : index
    %c0_0 = arith.constant 0 : index
    %0 = vector.load %arg0[%c0, %c0_0] : memref<64x128xf32, #tpu.memory_space<vmem>>, vector<64x128xf32>
    %c0_1 = arith.constant 0 : index
    %c0_2 = arith.constant 0 : index
    %1 = vector.load %arg1[%c0_1, %c0_2] : memref<128x512xf32, #tpu.memory_space<vmem>>, vector<128x512xf32>
    %cst = arith.constant dense<0.000000e+00> : vector<64x512xf32>
    %2 = tpu.matmul %0, %1, %cst {dimension_numbers = #tpu.dot_dimension_numbers<[1], [0], [0], [1], [0, 0, 1, 1], [], []>} : vector<64x128xf32>, vector<128x512xf32>, vector<64x512xf32> -> vector<64x512xf32>
    %c0_3 = arith.constant 0 : index
    %c0_4 = arith.constant 0 : index
    %3 = vector.load %arg3[%c0_3, %c0_4] : memref<1x512xf32, #tpu.memory_space<vmem>>, vector<1x512xf32>
    %4 = vector.broadcast %3 : vector<1x512xf32> to vector<64x512xf32>
    %5 = arith.addf %2, %4 : vector<64x512xf32>
    %c0_5 = arith.constant 0 : index
    %c0_6 = arith.constant 0 : index
    %6 = vector.load %arg9[%c0_5, %c0_6] : memref<64x512xf32, #tpu.memory_space<vmem>>, vector<64x512xf32>
    tpu.vector_store %arg9[%c0_5, %c0_6], %5 {strides = array<i32>} : memref<64x512xf32, #tpu.memory_space<vmem>>, vector<64x512xf32>,
    %cst_7 = arith.constant 0.000000e+00 : f32
    %7 = vector.broadcast %cst_7 : f32 to vector<8x128xf32>
    %c0_i32 = arith.constant 0 : i32
    %8 = tpu.assume_multiple %c0_i32, 8 : i32
    %9 = arith.index_cast %8 : i32 to index
    %c0_8 = arith.constant 0 : index
    %10 = vector.load %arg9[%9, %c0_8] : memref<64x512xf32, #tpu.memory_space<vmem>>, vector<8x512xf32>
    %c0_9 = arith.constant 0 : index
    %c0_10 = arith.constant 0 : index
    %11 = vector.load %arg2[%c0_9, %c0_10] : memref<128x512xf32, #tpu.memory_space<vmem>>, vector<128x512xf32>
    %cst_11 = arith.constant dense<0.000000e+00> : vector<8x512xf32>
    %12 = tpu.matmul %7, %11, %cst_11 {dimension_numbers = #tpu.dot_dimension_numbers<[1], [0], [0], [1], [0, 0, 1, 1], [], []>} : vector<8x128xf32>, vector<128x512xf32>, vector<8x512xf32> -> vector<8x512xf32>
    %13 = arith.addf %10, %12 : vector<8x512xf32>
    %14 = vector.extract_strided_slice %13 {offsets = [0, 0], sizes = [8, 128], strides = [1, 1]} : vector<8x512xf32> to vector<8x128xf32>
    %15 = arith.negf %14 : vector<8x128xf32>
    %16 = math.exp %15 : vector<8x128xf32>
    %cst_12 = arith.constant 1.000000e+00 : f32
    %17 = vector.broadcast %cst_12 : f32 to vector<8x128xf32>
    %18 = arith.addf %17, %16 : vector<8x128xf32>
    %19 = arith.divf %17, %18 : vector<8x128xf32>
    %20 = vector.extract_strided_slice %13 {offsets = [0, 128], sizes = [8, 128], strides = [1, 1]} : vector<8x512xf32> to vector<8x128xf32>
    %21 = arith.negf %20 : vector<8x128xf32>
    %22 = math.exp %21 : vector<8x128xf32>
    %cst_13 = arith.constant 1.000000e+00 : f32
    %23 = vector.broadcast %cst_13 : f32 to vector<8x128xf32>
    %24 = arith.addf %23, %22 : vector<8x128xf32>
    %25 = arith.divf %23, %24 : vector<8x128xf32>
    %26 = vector.extract_strided_slice %13 {offsets = [0, 256], sizes = [8, 128], strides = [1, 1]} : vector<8x512xf32> to vector<8x128xf32>
    %27 = math.tanh %26 : vector<8x128xf32>
    %28 = vector.extract_strided_slice %13 {offsets = [0, 384], sizes = [8, 128], strides = [1, 1]} : vector<8x512xf32> to vector<8x128xf32>
    %29 = arith.negf %28 : vector<8x128xf32>
    %30 = math.exp %29 : vector<8x128xf32>
    %cst_14 = arith.constant 1.000000e+00 : f32
    %31 = vector.broadcast %cst_14 : f32 to vector<8x128xf32>
    %32 = arith.addf %31, %30 : vector<8x128xf32>
    %33 = arith.divf %31, %32 : vector<8x128xf32>
    %34 = arith.mulf %25, %7 : vector<8x128xf32>
    %35 = arith.mulf %19, %27 : vector<8x128xf32>
    %36 = arith.addf %34, %35 : vector<8x128xf32>
    %37 = math.tanh %36 : vector<8x128xf32>
    %38 = arith.mulf %33, %37 : vector<8x128xf32>
    %c0_i32_15 = arith.constant 0 : i32
    %39 = tpu.concatenate %38, %7 in 1 : vector<8x128xf32>, vector<8x128xf32> -> vector<8x256xf32>
    %c0_16 = arith.constant 0 : index
    %c0_17 = arith.constant 0 : index
    %40 = vector.load %arg4[%c0_16, %c0_17] : memref<256x512xf32, #tpu.memory_space<vmem>>, vector<256x512xf32>
    %cst_18 = arith.constant dense<0.000000e+00> : vector<8x512xf32>
    %41 = tpu.matmul %39, %40, %cst_18 {dimension_numbers = #tpu.dot_dimension_numbers<[1], [0], [0], [1], [0, 0, 1, 1], [], []>} : vector<8x256xf32>, vector<256x512xf32>, vector<8x512xf32> -> vector<8x512xf32>
    %c0_19 = arith.constant 0 : index
    %c0_20 = arith.constant 0 : index
    %42 = vector.load %arg5[%c0_19, %c0_20] : memref<1x512xf32, #tpu.memory_space<vmem>>, vector<1x512xf32>
    %43 = vector.broadcast %42 : vector<1x512xf32> to vector<8x512xf32>
    %44 = arith.addf %41, %43 : vector<8x512xf32>
    %45 = vector.extract_strided_slice %44 {offsets = [0, 0], sizes = [8, 128], strides = [1, 1]} : vector<8x512xf32> to vector<8x128xf32>
    %46 = arith.negf %45 : vector<8x128xf32>
    %47 = math.exp %46 : vector<8x128xf32>
    %cst_21 = arith.constant 1.000000e+00 : f32
    %48 = vector.broadcast %cst_21 : f32 to vector<8x128xf32>
    %49 = arith.addf %48, %47 : vector<8x128xf32>
    %50 = arith.divf %48, %49 : vector<8x128xf32>
    %51 = vector.extract_strided_slice %44 {offsets = [0, 128], sizes = [8, 128], strides = [1, 1]} : vector<8x512xf32> to vector<8x128xf32>
    %52 = arith.negf %51 : vector<8x128xf32>
    %53 = math.exp %52 : vector<8x128xf32>
    %cst_22 = arith.constant 1.000000e+00 : f32
    %54 = vector.broadcast %cst_22 : f32 to vector<8x128xf32>
    %55 = arith.addf %54, %53 : vector<8x128xf32>
    %56 = arith.divf %54, %55 : vector<8x128xf32>
    %57 = vector.extract_strided_slice %44 {offsets = [0, 256], sizes = [8, 128], strides = [1, 1]} : vector<8x512xf32> to vector<8x128xf32>
    %58 = math.tanh %57 : vector<8x128xf32>
    %59 = vector.extract_strided_slice %44 {offsets = [0, 384], sizes = [8, 128], strides = [1, 1]} : vector<8x512xf32> to vector<8x128xf32>
    %60 = arith.negf %59 : vector<8x128xf32>
    %61 = math.exp %60 : vector<8x128xf32>
    %cst_23 = arith.constant 1.000000e+00 : f32
    %62 = vector.broadcast %cst_23 : f32 to vector<8x128xf32>
    %63 = arith.addf %62, %61 : vector<8x128xf32>
    %64 = arith.divf %62, %63 : vector<8x128xf32>
    %65 = arith.mulf %56, %7 : vector<8x128xf32>
    %66 = arith.mulf %50, %58 : vector<8x128xf32>
    %67 = arith.addf %65, %66 : vector<8x128xf32>
    %68 = math.tanh %67 : vector<8x128xf32>
    %69 = arith.mulf %64, %68 : vector<8x128xf32>
    %c1_i32 = arith.constant 1 : i32
    %70 = arith.addi %c0_i32_15, %c1_i32 : i32
    %c8_i32 = arith.constant 8 : i32
    %71 = arith.muli %70, %c8_i32 : i32
    %72 = tpu.assume_multiple %71, 8 : i32
    %73 = arith.index_cast %72 : i32 to index
    %c0_24 = arith.constant 0 : index
    %74 = vector.load %arg9[%73, %c0_24] : memref<64x512xf32, #tpu.memory_space<vmem>>, vector<8x512xf32>
    %c0_25 = arith.constant 0 : index
    %c0_26 = arith.constant 0 : index
    %75 = vector.load %arg2[%c0_25, %c0_26] : memref<128x512xf32, #tpu.memory_space<vmem>>, vector<128x512xf32>
    %cst_27 = arith.constant dense<0.000000e+00> : vector<8x512xf32>
    %76 = tpu.matmul %38, %75, %cst_27 {dimension_numbers = #tpu.dot_dimension_numbers<[1], [0], [0], [1], [0, 0, 1, 1], [], []>} : vector<8x128xf32>, vector<128x512xf32>, vector<8x512xf32> -> vector<8x512xf32>
    %77 = arith.addf %74, %76 : vector<8x512xf32>
    %78 = vector.extract_strided_slice %77 {offsets = [0, 0], sizes = [8, 128], strides = [1, 1]} : vector<8x512xf32> to vector<8x128xf32>
    %79 = arith.negf %78 : vector<8x128xf32>
    %80 = math.exp %79 : vector<8x128xf32>
    %cst_28 = arith.constant 1.000000e+00 : f32
    %81 = vector.broadcast %cst_28 : f32 to vector<8x128xf32>
    %82 = arith.addf %81, %80 : vector<8x128xf32>
    %83 = arith.divf %81, %82 : vector<8x128xf32>
    %84 = vector.extract_strided_slice %77 {offsets = [0, 128], sizes = [8, 128], strides = [1, 1]} : vector<8x512xf32> to vector<8x128xf32>
    %85 = arith.negf %84 : vector<8x128xf32>
    %86 = math.exp %85 : vector<8x128xf32>
    %cst_29 = arith.constant 1.000000e+00 : f32
    %87 = vector.broadcast %cst_29 : f32 to vector<8x128xf32>
    %88 = arith.addf %87, %86 : vector<8x128xf32>
    %89 = arith.divf %87, %88 : vector<8x128xf32>
    %90 = vector.extract_strided_slice %77 {offsets = [0, 256], sizes = [8, 128], strides = [1, 1]} : vector<8x512xf32> to vector<8x128xf32>
    %91 = math.tanh %90 : vector<8x128xf32>
    %92 = vector.extract_strided_slice %77 {offsets = [0, 384], sizes = [8, 128], strides = [1, 1]} : vector<8x512xf32> to vector<8x128xf32>
    %93 = arith.negf %92 : vector<8x128xf32>
    %94 = math.exp %93 : vector<8x128xf32>
    %cst_30 = arith.constant 1.000000e+00 : f32
    %95 = vector.broadcast %cst_30 : f32 to vector<8x128xf32>
    %96 = arith.addf %95, %94 : vector<8x128xf32>
    %97 = arith.divf %95, %96 : vector<8x128xf32>
    %98 = arith.mulf %89, %36 : vector<8x128xf32>
    %99 = arith.mulf %83, %91 : vector<8x128xf32>
    %100 = arith.addf %98, %99 : vector<8x128xf32>
    %101 = math.tanh %100 : vector<8x128xf32>
    %102 = arith.mulf %97, %101 : vector<8x128xf32>
    %c1_i32_31 = arith.constant 1 : i32
    %103 = tpu.concatenate %102, %69 in 1 : vector<8x128xf32>, vector<8x128xf32> -> vector<8x256xf32>
    %c0_32 = arith.constant 0 : index
    %c0_33 = arith.constant 0 : index
    %104 = vector.load %arg4[%c0_32, %c0_33] : memref<256x512xf32, #tpu.memory_space<vmem>>, vector<256x512xf32>
    %cst_34 = arith.constant dense<0.000000e+00> : vector<8x512xf32>
    %105 = tpu.matmul %103, %104, %cst_34 {dimension_numbers = #tpu.dot_dimension_numbers<[1], [0], [0], [1], [0, 0, 1, 1], [], []>} : vector<8x256xf32>, vector<256x512xf32>, vector<8x512xf32> -> vector<8x512xf32>
    %c0_35 = arith.constant 0 : index
    %c0_36 = arith.constant 0 : index
    %106 = vector.load %arg5[%c0_35, %c0_36] : memref<1x512xf32, #tpu.memory_space<vmem>>, vector<1x512xf32>
    %107 = vector.broadcast %106 : vector<1x512xf32> to vector<8x512xf32>
    %108 = arith.addf %105, %107 : vector<8x512xf32>
    %109 = vector.extract_strided_slice %108 {offsets = [0, 0], sizes = [8, 128], strides = [1, 1]} : vector<8x512xf32> to vector<8x128xf32>
    %110 = arith.negf %109 : vector<8x128xf32>
    %111 = math.exp %110 : vector<8x128xf32>
    %cst_37 = arith.constant 1.000000e+00 : f32
    %112 = vector.broadcast %cst_37 : f32 to vector<8x128xf32>
    %113 = arith.addf %112, %111 : vector<8x128xf32>
    %114 = arith.divf %112, %113 : vector<8x128xf32>
    %115 = vector.extract_strided_slice %108 {offsets = [0, 128], sizes = [8, 128], strides = [1, 1]} : vector<8x512xf32> to vector<8x128xf32>
    %116 = arith.negf %115 : vector<8x128xf32>
    %117 = math.exp %116 : vector<8x128xf32>
    %cst_38 = arith.constant 1.000000e+00 : f32
    %118 = vector.broadcast %cst_38 : f32 to vector<8x128xf32>
    %119 = arith.addf %118, %117 : vector<8x128xf32>
    %120 = arith.divf %118, %119 : vector<8x128xf32>
    %121 = vector.extract_strided_slice %108 {offsets = [0, 256], sizes = [8, 128], strides = [1, 1]} : vector<8x512xf32> to vector<8x128xf32>
    %122 = math.tanh %121 : vector<8x128xf32>
    %123 = vector.extract_strided_slice %108 {offsets = [0, 384], sizes = [8, 128], strides = [1, 1]} : vector<8x512xf32> to vector<8x128xf32>
    %124 = arith.negf %123 : vector<8x128xf32>
    %125 = math.exp %124 : vector<8x128xf32>
    %cst_39 = arith.constant 1.000000e+00 : f32
    %126 = vector.broadcast %cst_39 : f32 to vector<8x128xf32>
    %127 = arith.addf %126, %125 : vector<8x128xf32>
    %128 = arith.divf %126, %127 : vector<8x128xf32>
    %129 = arith.mulf %120, %67 : vector<8x128xf32>
    %130 = arith.mulf %114, %122 : vector<8x128xf32>
    %131 = arith.addf %129, %130 : vector<8x128xf32>
    %132 = math.tanh %131 : vector<8x128xf32>
    %133 = arith.mulf %128, %132 : vector<8x128xf32>
    %c1_i32_40 = arith.constant 1 : i32
    %134 = arith.addi %c1_i32_31, %c1_i32_40 : i32
    %c8_i32_41 = arith.constant 8 : i32
    %135 = arith.muli %134, %c8_i32_41 : i32
    %136 = tpu.assume_multiple %135, 8 : i32
    %137 = arith.index_cast %136 : i32 to index
    %c0_42 = arith.constant 0 : index
    %138 = vector.load %arg9[%137, %c0_42] : memref<64x512xf32, #tpu.memory_space<vmem>>, vector<8x512xf32>
    %c0_43 = arith.constant 0 : index
    %c0_44 = arith.constant 0 : index
    %139 = vector.load %arg2[%c0_43, %c0_44] : memref<128x512xf32, #tpu.memory_space<vmem>>, vector<128x512xf32>
    %cst_45 = arith.constant dense<0.000000e+00> : vector<8x512xf32>
    %140 = tpu.matmul %102, %139, %cst_45 {dimension_numbers = #tpu.dot_dimension_numbers<[1], [0], [0], [1], [0, 0, 1, 1], [], []>} : vector<8x128xf32>, vector<128x512xf32>, vector<8x512xf32> -> vector<8x512xf32>
    %141 = arith.addf %138, %140 : vector<8x512xf32>
    %142 = vector.extract_strided_slice %141 {offsets = [0, 0], sizes = [8, 128], strides = [1, 1]} : vector<8x512xf32> to vector<8x128xf32>
    %143 = arith.negf %142 : vector<8x128xf32>
    %144 = math.exp %143 : vector<8x128xf32>
    %cst_46 = arith.constant 1.000000e+00 : f32
    %145 = vector.broadcast %cst_46 : f32 to vector<8x128xf32>
    %146 = arith.addf %145, %144 : vector<8x128xf32>
    %147 = arith.divf %145, %146 : vector<8x128xf32>
    %148 = vector.extract_strided_slice %141 {offsets = [0, 128], sizes = [8, 128], strides = [1, 1]} : vector<8x512xf32> to vector<8x128xf32>
    %149 = arith.negf %148 : vector<8x128xf32>
    %150 = math.exp %149 : vector<8x128xf32>
    %cst_47 = arith.constant 1.000000e+00 : f32
    %151 = vector.broadcast %cst_47 : f32 to vector<8x128xf32>
    %152 = arith.addf %151, %150 : vector<8x128xf32>
    %153 = arith.divf %151, %152 : vector<8x128xf32>
    %154 = vector.extract_strided_slice %141 {offsets = [0, 256], sizes = [8, 128], strides = [1, 1]} : vector<8x512xf32> to vector<8x128xf32>
    %155 = math.tanh %154 : vector<8x128xf32>
    %156 = vector.extract_strided_slice %141 {offsets = [0, 384], sizes = [8, 128], strides = [1, 1]} : vector<8x512xf32> to vector<8x128xf32>
    %157 = arith.negf %156 : vector<8x128xf32>
    %158 = math.exp %157 : vector<8x128xf32>
    %cst_48 = arith.constant 1.000000e+00 : f32
    %159 = vector.broadcast %cst_48 : f32 to vector<8x128xf32>
    %160 = arith.addf %159, %158 : vector<8x128xf32>
    %161 = arith.divf %159, %160 : vector<8x128xf32>
    %162 = arith.mulf %153, %100 : vector<8x128xf32>
    %163 = arith.mulf %147, %155 : vector<8x128xf32>
    %164 = arith.addf %162, %163 : vector<8x128xf32>
    %165 = math.tanh %164 : vector<8x128xf32>
    %166 = arith.mulf %161, %165 : vector<8x128xf32>
    %c2_i32 = arith.constant 2 : i32
    %167 = tpu.concatenate %166, %133 in 1 : vector<8x128xf32>, vector<8x128xf32> -> vector<8x256xf32>
    %c0_49 = arith.constant 0 : index
    %c0_50 = arith.constant 0 : index
    %168 = vector.load %arg4[%c0_49, %c0_50] : memref<256x512xf32, #tpu.memory_space<vmem>>, vector<256x512xf32>
    %cst_51 = arith.constant dense<0.000000e+00> : vector<8x512xf32>
    %169 = tpu.matmul %167, %168, %cst_51 {dimension_numbers = #tpu.dot_dimension_numbers<[1], [0], [0], [1], [0, 0, 1, 1], [], []>} : vector<8x256xf32>, vector<256x512xf32>, vector<8x512xf32> -> vector<8x512xf32>
    %c0_52 = arith.constant 0 : index
    %c0_53 = arith.constant 0 : index
    %170 = vector.load %arg5[%c0_52, %c0_53] : memref<1x512xf32, #tpu.memory_space<vmem>>, vector<1x512xf32>
    %171 = vector.broadcast %170 : vector<1x512xf32> to vector<8x512xf32>
    %172 = arith.addf %169, %171 : vector<8x512xf32>
    %173 = vector.extract_strided_slice %172 {offsets = [0, 0], sizes = [8, 128], strides = [1, 1]} : vector<8x512xf32> to vector<8x128xf32>
    %174 = arith.negf %173 : vector<8x128xf32>
    %175 = math.exp %174 : vector<8x128xf32>
    %cst_54 = arith.constant 1.000000e+00 : f32
    %176 = vector.broadcast %cst_54 : f32 to vector<8x128xf32>
    %177 = arith.addf %176, %175 : vector<8x128xf32>
    %178 = arith.divf %176, %177 : vector<8x128xf32>
    %179 = vector.extract_strided_slice %172 {offsets = [0, 128], sizes = [8, 128], strides = [1, 1]} : vector<8x512xf32> to vector<8x128xf32>
    %180 = arith.negf %179 : vector<8x128xf32>
    %181 = math.exp %180 : vector<8x128xf32>
    %cst_55 = arith.constant 1.000000e+00 : f32
    %182 = vector.broadcast %cst_55 : f32 to vector<8x128xf32>
    %183 = arith.addf %182, %181 : vector<8x128xf32>
    %184 = arith.divf %182, %183 : vector<8x128xf32>
    %185 = vector.extract_strided_slice %172 {offsets = [0, 256], sizes = [8, 128], strides = [1, 1]} : vector<8x512xf32> to vector<8x128xf32>
    %186 = math.tanh %185 : vector<8x128xf32>
    %187 = vector.extract_strided_slice %172 {offsets = [0, 384], sizes = [8, 128], strides = [1, 1]} : vector<8x512xf32> to vector<8x128xf32>
    %188 = arith.negf %187 : vector<8x128xf32>
    %189 = math.exp %188 : vector<8x128xf32>
    %cst_56 = arith.constant 1.000000e+00 : f32
    %190 = vector.broadcast %cst_56 : f32 to vector<8x128xf32>
    %191 = arith.addf %190, %189 : vector<8x128xf32>
    %192 = arith.divf %190, %191 : vector<8x128xf32>
    %193 = arith.mulf %184, %131 : vector<8x128xf32>
    %194 = arith.mulf %178, %186 : vector<8x128xf32>
    %195 = arith.addf %193, %194 : vector<8x128xf32>
    %196 = math.tanh %195 : vector<8x128xf32>
    %197 = arith.mulf %192, %196 : vector<8x128xf32>
    %c1_i32_57 = arith.constant 1 : i32
    %198 = arith.addi %c2_i32, %c1_i32_57 : i32
    %c8_i32_58 = arith.constant 8 : i32
    %199 = arith.muli %198, %c8_i32_58 : i32
    %200 = tpu.assume_multiple %199, 8 : i32
    %201 = arith.index_cast %200 : i32 to index
    %c0_59 = arith.constant 0 : index
    %202 = vector.load %arg9[%201, %c0_59] : memref<64x512xf32, #tpu.memory_space<vmem>>, vector<8x512xf32>
    %c0_60 = arith.constant 0 : index
    %c0_61 = arith.constant 0 : index
    %203 = vector.load %arg2[%c0_60, %c0_61] : memref<128x512xf32, #tpu.memory_space<vmem>>, vector<128x512xf32>
    %cst_62 = arith.constant dense<0.000000e+00> : vector<8x512xf32>
    %204 = tpu.matmul %166, %203, %cst_62 {dimension_numbers = #tpu.dot_dimension_numbers<[1], [0], [0], [1], [0, 0, 1, 1], [], []>} : vector<8x128xf32>, vector<128x512xf32>, vector<8x512xf32> -> vector<8x512xf32>
    %205 = arith.addf %202, %204 : vector<8x512xf32>
    %206 = vector.extract_strided_slice %205 {offsets = [0, 0], sizes = [8, 128], strides = [1, 1]} : vector<8x512xf32> to vector<8x128xf32>
    %207 = arith.negf %206 : vector<8x128xf32>
    %208 = math.exp %207 : vector<8x128xf32>
    %cst_63 = arith.constant 1.000000e+00 : f32
    %209 = vector.broadcast %cst_63 : f32 to vector<8x128xf32>
    %210 = arith.addf %209, %208 : vector<8x128xf32>
    %211 = arith.divf %209, %210 : vector<8x128xf32>
    %212 = vector.extract_strided_slice %205 {offsets = [0, 128], sizes = [8, 128], strides = [1, 1]} : vector<8x512xf32> to vector<8x128xf32>
    %213 = arith.negf %212 : vector<8x128xf32>
    %214 = math.exp %213 : vector<8x128xf32>
    %cst_64 = arith.constant 1.000000e+00 : f32
    %215 = vector.broadcast %cst_64 : f32 to vector<8x128xf32>
    %216 = arith.addf %215, %214 : vector<8x128xf32>
    %217 = arith.divf %215, %216 : vector<8x128xf32>
    %218 = vector.extract_strided_slice %205 {offsets = [0, 256], sizes = [8, 128], strides = [1, 1]} : vector<8x512xf32> to vector<8x128xf32>
    %219 = math.tanh %218 : vector<8x128xf32>
    %220 = vector.extract_strided_slice %205 {offsets = [0, 384], sizes = [8, 128], strides = [1, 1]} : vector<8x512xf32> to vector<8x128xf32>
    %221 = arith.negf %220 : vector<8x128xf32>
    %222 = math.exp %221 : vector<8x128xf32>
    %cst_65 = arith.constant 1.000000e+00 : f32
    %223 = vector.broadcast %cst_65 : f32 to vector<8x128xf32>
    %224 = arith.addf %223, %222 : vector<8x128xf32>
    %225 = arith.divf %223, %224 : vector<8x128xf32>
    %226 = arith.mulf %217, %164 : vector<8x128xf32>
    %227 = arith.mulf %211, %219 : vector<8x128xf32>
    %228 = arith.addf %226, %227 : vector<8x128xf32>
    %229 = math.tanh %228 : vector<8x128xf32>
    %230 = arith.mulf %225, %229 : vector<8x128xf32>
    %c3_i32 = arith.constant 3 : i32
    %231 = tpu.concatenate %230, %197 in 1 : vector<8x128xf32>, vector<8x128xf32> -> vector<8x256xf32>
    %c0_66 = arith.constant 0 : index
    %c0_67 = arith.constant 0 : index
    %232 = vector.load %arg4[%c0_66, %c0_67] : memref<256x512xf32, #tpu.memory_space<vmem>>, vector<256x512xf32>
    %cst_68 = arith.constant dense<0.000000e+00> : vector<8x512xf32>
    %233 = tpu.matmul %231, %232, %cst_68 {dimension_numbers = #tpu.dot_dimension_numbers<[1], [0], [0], [1], [0, 0, 1, 1], [], []>} : vector<8x256xf32>, vector<256x512xf32>, vector<8x512xf32> -> vector<8x512xf32>
    %c0_69 = arith.constant 0 : index
    %c0_70 = arith.constant 0 : index
    %234 = vector.load %arg5[%c0_69, %c0_70] : memref<1x512xf32, #tpu.memory_space<vmem>>, vector<1x512xf32>
    %235 = vector.broadcast %234 : vector<1x512xf32> to vector<8x512xf32>
    %236 = arith.addf %233, %235 : vector<8x512xf32>
    %237 = vector.extract_strided_slice %236 {offsets = [0, 0], sizes = [8, 128], strides = [1, 1]} : vector<8x512xf32> to vector<8x128xf32>
    %238 = arith.negf %237 : vector<8x128xf32>
    %239 = math.exp %238 : vector<8x128xf32>
    %cst_71 = arith.constant 1.000000e+00 : f32
    %240 = vector.broadcast %cst_71 : f32 to vector<8x128xf32>
    %241 = arith.addf %240, %239 : vector<8x128xf32>
    %242 = arith.divf %240, %241 : vector<8x128xf32>
    %243 = vector.extract_strided_slice %236 {offsets = [0, 128], sizes = [8, 128], strides = [1, 1]} : vector<8x512xf32> to vector<8x128xf32>
    %244 = arith.negf %243 : vector<8x128xf32>
    %245 = math.exp %244 : vector<8x128xf32>
    %cst_72 = arith.constant 1.000000e+00 : f32
    %246 = vector.broadcast %cst_72 : f32 to vector<8x128xf32>
    %247 = arith.addf %246, %245 : vector<8x128xf32>
    %248 = arith.divf %246, %247 : vector<8x128xf32>
    %249 = vector.extract_strided_slice %236 {offsets = [0, 256], sizes = [8, 128], strides = [1, 1]} : vector<8x512xf32> to vector<8x128xf32>
    %250 = math.tanh %249 : vector<8x128xf32>
    %251 = vector.extract_strided_slice %236 {offsets = [0, 384], sizes = [8, 128], strides = [1, 1]} : vector<8x512xf32> to vector<8x128xf32>
    %252 = arith.negf %251 : vector<8x128xf32>
    %253 = math.exp %252 : vector<8x128xf32>
    %cst_73 = arith.constant 1.000000e+00 : f32
    %254 = vector.broadcast %cst_73 : f32 to vector<8x128xf32>
    %255 = arith.addf %254, %253 : vector<8x128xf32>
    %256 = arith.divf %254, %255 : vector<8x128xf32>
    %257 = arith.mulf %248, %195 : vector<8x128xf32>
    %258 = arith.mulf %242, %250 : vector<8x128xf32>
    %259 = arith.addf %257, %258 : vector<8x128xf32>
    %260 = math.tanh %259 : vector<8x128xf32>
    %261 = arith.mulf %256, %260 : vector<8x128xf32>
    %c1_i32_74 = arith.constant 1 : i32
    %262 = arith.addi %c3_i32, %c1_i32_74 : i32
    %c8_i32_75 = arith.constant 8 : i32
    %263 = arith.muli %262, %c8_i32_75 : i32
    %264 = tpu.assume_multiple %263, 8 : i32
    %265 = arith.index_cast %264 : i32 to index
    %c0_76 = arith.constant 0 : index
    %266 = vector.load %arg9[%265, %c0_76] : memref<64x512xf32, #tpu.memory_space<vmem>>, vector<8x512xf32>
    %c0_77 = arith.constant 0 : index
    %c0_78 = arith.constant 0 : index
    %267 = vector.load %arg2[%c0_77, %c0_78] : memref<128x512xf32, #tpu.memory_space<vmem>>, vector<128x512xf32>
    %cst_79 = arith.constant dense<0.000000e+00> : vector<8x512xf32>
    %268 = tpu.matmul %230, %267, %cst_79 {dimension_numbers = #tpu.dot_dimension_numbers<[1], [0], [0], [1], [0, 0, 1, 1], [], []>} : vector<8x128xf32>, vector<128x512xf32>, vector<8x512xf32> -> vector<8x512xf32>
    %269 = arith.addf %266, %268 : vector<8x512xf32>
    %270 = vector.extract_strided_slice %269 {offsets = [0, 0], sizes = [8, 128], strides = [1, 1]} : vector<8x512xf32> to vector<8x128xf32>
    %271 = arith.negf %270 : vector<8x128xf32>
    %272 = math.exp %271 : vector<8x128xf32>
    %cst_80 = arith.constant 1.000000e+00 : f32
    %273 = vector.broadcast %cst_80 : f32 to vector<8x128xf32>
    %274 = arith.addf %273, %272 : vector<8x128xf32>
    %275 = arith.divf %273, %274 : vector<8x128xf32>
    %276 = vector.extract_strided_slice %269 {offsets = [0, 128], sizes = [8, 128], strides = [1, 1]} : vector<8x512xf32> to vector<8x128xf32>
    %277 = arith.negf %276 : vector<8x128xf32>
    %278 = math.exp %277 : vector<8x128xf32>
    %cst_81 = arith.constant 1.000000e+00 : f32
    %279 = vector.broadcast %cst_81 : f32 to vector<8x128xf32>
    %280 = arith.addf %279, %278 : vector<8x128xf32>
    %281 = arith.divf %279, %280 : vector<8x128xf32>
    %282 = vector.extract_strided_slice %269 {offsets = [0, 256], sizes = [8, 128], strides = [1, 1]} : vector<8x512xf32> to vector<8x128xf32>
    %283 = math.tanh %282 : vector<8x128xf32>
    %284 = vector.extract_strided_slice %269 {offsets = [0, 384], sizes = [8, 128], strides = [1, 1]} : vector<8x512xf32> to vector<8x128xf32>
    %285 = arith.negf %284 : vector<8x128xf32>
    %286 = math.exp %285 : vector<8x128xf32>
    %cst_82 = arith.constant 1.000000e+00 : f32
    %287 = vector.broadcast %cst_82 : f32 to vector<8x128xf32>
    %288 = arith.addf %287, %286 : vector<8x128xf32>
    %289 = arith.divf %287, %288 : vector<8x128xf32>
    %290 = arith.mulf %281, %228 : vector<8x128xf32>
    %291 = arith.mulf %275, %283 : vector<8x128xf32>
    %292 = arith.addf %290, %291 : vector<8x128xf32>
    %293 = math.tanh %292 : vector<8x128xf32>
    %294 = arith.mulf %289, %293 : vector<8x128xf32>
    %c4_i32 = arith.constant 4 : i32
    %295 = tpu.concatenate %294, %261 in 1 : vector<8x128xf32>, vector<8x128xf32> -> vector<8x256xf32>
    %c0_83 = arith.constant 0 : index
    %c0_84 = arith.constant 0 : index
    %296 = vector.load %arg4[%c0_83, %c0_84] : memref<256x512xf32, #tpu.memory_space<vmem>>, vector<256x512xf32>
    %cst_85 = arith.constant dense<0.000000e+00> : vector<8x512xf32>
    %297 = tpu.matmul %295, %296, %cst_85 {dimension_numbers = #tpu.dot_dimension_numbers<[1], [0], [0], [1], [0, 0, 1, 1], [], []>} : vector<8x256xf32>, vector<256x512xf32>, vector<8x512xf32> -> vector<8x512xf32>
    %c0_86 = arith.constant 0 : index
    %c0_87 = arith.constant 0 : index
    %298 = vector.load %arg5[%c0_86, %c0_87] : memref<1x512xf32, #tpu.memory_space<vmem>>, vector<1x512xf32>
    %299 = vector.broadcast %298 : vector<1x512xf32> to vector<8x512xf32>
    %300 = arith.addf %297, %299 : vector<8x512xf32>
    %301 = vector.extract_strided_slice %300 {offsets = [0, 0], sizes = [8, 128], strides = [1, 1]} : vector<8x512xf32> to vector<8x128xf32>
    %302 = arith.negf %301 : vector<8x128xf32>
    %303 = math.exp %302 : vector<8x128xf32>
    %cst_88 = arith.constant 1.000000e+00 : f32
    %304 = vector.broadcast %cst_88 : f32 to vector<8x128xf32>
    %305 = arith.addf %304, %303 : vector<8x128xf32>
    %306 = arith.divf %304, %305 : vector<8x128xf32>
    %307 = vector.extract_strided_slice %300 {offsets = [0, 128], sizes = [8, 128], strides = [1, 1]} : vector<8x512xf32> to vector<8x128xf32>
    %308 = arith.negf %307 : vector<8x128xf32>
    %309 = math.exp %308 : vector<8x128xf32>
    %cst_89 = arith.constant 1.000000e+00 : f32
    %310 = vector.broadcast %cst_89 : f32 to vector<8x128xf32>
    %311 = arith.addf %310, %309 : vector<8x128xf32>
    %312 = arith.divf %310, %311 : vector<8x128xf32>
    %313 = vector.extract_strided_slice %300 {offsets = [0, 256], sizes = [8, 128], strides = [1, 1]} : vector<8x512xf32> to vector<8x128xf32>
    %314 = math.tanh %313 : vector<8x128xf32>
    %315 = vector.extract_strided_slice %300 {offsets = [0, 384], sizes = [8, 128], strides = [1, 1]} : vector<8x512xf32> to vector<8x128xf32>
    %316 = arith.negf %315 : vector<8x128xf32>
    %317 = math.exp %316 : vector<8x128xf32>
    %cst_90 = arith.constant 1.000000e+00 : f32
    %318 = vector.broadcast %cst_90 : f32 to vector<8x128xf32>
    %319 = arith.addf %318, %317 : vector<8x128xf32>
    %320 = arith.divf %318, %319 : vector<8x128xf32>
    %321 = arith.mulf %312, %259 : vector<8x128xf32>
    %322 = arith.mulf %306, %314 : vector<8x128xf32>
    %323 = arith.addf %321, %322 : vector<8x128xf32>
    %324 = math.tanh %323 : vector<8x128xf32>
    %325 = arith.mulf %320, %324 : vector<8x128xf32>
    %c1_i32_91 = arith.constant 1 : i32
    %326 = arith.addi %c4_i32, %c1_i32_91 : i32
    %c8_i32_92 = arith.constant 8 : i32
    %327 = arith.muli %326, %c8_i32_92 : i32
    %328 = tpu.assume_multiple %327, 8 : i32
    %329 = arith.index_cast %328 : i32 to index
    %c0_93 = arith.constant 0 : index
    %330 = vector.load %arg9[%329, %c0_93] : memref<64x512xf32, #tpu.memory_space<vmem>>, vector<8x512xf32>
    %c0_94 = arith.constant 0 : index
    %c0_95 = arith.constant 0 : index
    %331 = vector.load %arg2[%c0_94, %c0_95] : memref<128x512xf32, #tpu.memory_space<vmem>>, vector<128x512xf32>
    %cst_96 = arith.constant dense<0.000000e+00> : vector<8x512xf32>
    %332 = tpu.matmul %294, %331, %cst_96 {dimension_numbers = #tpu.dot_dimension_numbers<[1], [0], [0], [1], [0, 0, 1, 1], [], []>} : vector<8x128xf32>, vector<128x512xf32>, vector<8x512xf32> -> vector<8x512xf32>
    %333 = arith.addf %330, %332 : vector<8x512xf32>
    %334 = vector.extract_strided_slice %333 {offsets = [0, 0], sizes = [8, 128], strides = [1, 1]} : vector<8x512xf32> to vector<8x128xf32>
    %335 = arith.negf %334 : vector<8x128xf32>
    %336 = math.exp %335 : vector<8x128xf32>
    %cst_97 = arith.constant 1.000000e+00 : f32
    %337 = vector.broadcast %cst_97 : f32 to vector<8x128xf32>
    %338 = arith.addf %337, %336 : vector<8x128xf32>
    %339 = arith.divf %337, %338 : vector<8x128xf32>
    %340 = vector.extract_strided_slice %333 {offsets = [0, 128], sizes = [8, 128], strides = [1, 1]} : vector<8x512xf32> to vector<8x128xf32>
    %341 = arith.negf %340 : vector<8x128xf32>
    %342 = math.exp %341 : vector<8x128xf32>
    %cst_98 = arith.constant 1.000000e+00 : f32
    %343 = vector.broadcast %cst_98 : f32 to vector<8x128xf32>
    %344 = arith.addf %343, %342 : vector<8x128xf32>
    %345 = arith.divf %343, %344 : vector<8x128xf32>
    %346 = vector.extract_strided_slice %333 {offsets = [0, 256], sizes = [8, 128], strides = [1, 1]} : vector<8x512xf32> to vector<8x128xf32>
    %347 = math.tanh %346 : vector<8x128xf32>
    %348 = vector.extract_strided_slice %333 {offsets = [0, 384], sizes = [8, 128], strides = [1, 1]} : vector<8x512xf32> to vector<8x128xf32>
    %349 = arith.negf %348 : vector<8x128xf32>
    %350 = math.exp %349 : vector<8x128xf32>
    %cst_99 = arith.constant 1.000000e+00 : f32
    %351 = vector.broadcast %cst_99 : f32 to vector<8x128xf32>
    %352 = arith.addf %351, %350 : vector<8x128xf32>
    %353 = arith.divf %351, %352 : vector<8x128xf32>
    %354 = arith.mulf %345, %292 : vector<8x128xf32>
    %355 = arith.mulf %339, %347 : vector<8x128xf32>
    %356 = arith.addf %354, %355 : vector<8x128xf32>
    %357 = math.tanh %356 : vector<8x128xf32>
    %358 = arith.mulf %353, %357 : vector<8x128xf32>
    %c5_i32 = arith.constant 5 : i32
    %359 = tpu.concatenate %358, %325 in 1 : vector<8x128xf32>, vector<8x128xf32> -> vector<8x256xf32>
    %c0_100 = arith.constant 0 : index
    %c0_101 = arith.constant 0 : index
    %360 = vector.load %arg4[%c0_100, %c0_101] : memref<256x512xf32, #tpu.memory_space<vmem>>, vector<256x512xf32>
    %cst_102 = arith.constant dense<0.000000e+00> : vector<8x512xf32>
    %361 = tpu.matmul %359, %360, %cst_102 {dimension_numbers = #tpu.dot_dimension_numbers<[1], [0], [0], [1], [0, 0, 1, 1], [], []>} : vector<8x256xf32>, vector<256x512xf32>, vector<8x512xf32> -> vector<8x512xf32>
    %c0_103 = arith.constant 0 : index
    %c0_104 = arith.constant 0 : index
    %362 = vector.load %arg5[%c0_103, %c0_104] : memref<1x512xf32, #tpu.memory_space<vmem>>, vector<1x512xf32>
    %363 = vector.broadcast %362 : vector<1x512xf32> to vector<8x512xf32>
    %364 = arith.addf %361, %363 : vector<8x512xf32>
    %365 = vector.extract_strided_slice %364 {offsets = [0, 0], sizes = [8, 128], strides = [1, 1]} : vector<8x512xf32> to vector<8x128xf32>
    %366 = arith.negf %365 : vector<8x128xf32>
    %367 = math.exp %366 : vector<8x128xf32>
    %cst_105 = arith.constant 1.000000e+00 : f32
    %368 = vector.broadcast %cst_105 : f32 to vector<8x128xf32>
    %369 = arith.addf %368, %367 : vector<8x128xf32>
    %370 = arith.divf %368, %369 : vector<8x128xf32>
    %371 = vector.extract_strided_slice %364 {offsets = [0, 128], sizes = [8, 128], strides = [1, 1]} : vector<8x512xf32> to vector<8x128xf32>
    %372 = arith.negf %371 : vector<8x128xf32>
    %373 = math.exp %372 : vector<8x128xf32>
    %cst_106 = arith.constant 1.000000e+00 : f32
    %374 = vector.broadcast %cst_106 : f32 to vector<8x128xf32>
    %375 = arith.addf %374, %373 : vector<8x128xf32>
    %376 = arith.divf %374, %375 : vector<8x128xf32>
    %377 = vector.extract_strided_slice %364 {offsets = [0, 256], sizes = [8, 128], strides = [1, 1]} : vector<8x512xf32> to vector<8x128xf32>
    %378 = math.tanh %377 : vector<8x128xf32>
    %379 = vector.extract_strided_slice %364 {offsets = [0, 384], sizes = [8, 128], strides = [1, 1]} : vector<8x512xf32> to vector<8x128xf32>
    %380 = arith.negf %379 : vector<8x128xf32>
    %381 = math.exp %380 : vector<8x128xf32>
    %cst_107 = arith.constant 1.000000e+00 : f32
    %382 = vector.broadcast %cst_107 : f32 to vector<8x128xf32>
    %383 = arith.addf %382, %381 : vector<8x128xf32>
    %384 = arith.divf %382, %383 : vector<8x128xf32>
    %385 = arith.mulf %376, %323 : vector<8x128xf32>
    %386 = arith.mulf %370, %378 : vector<8x128xf32>
    %387 = arith.addf %385, %386 : vector<8x128xf32>
    %388 = math.tanh %387 : vector<8x128xf32>
    %389 = arith.mulf %384, %388 : vector<8x128xf32>
    %c1_i32_108 = arith.constant 1 : i32
    %390 = arith.addi %c5_i32, %c1_i32_108 : i32
    %c8_i32_109 = arith.constant 8 : i32
    %391 = arith.muli %390, %c8_i32_109 : i32
    %392 = tpu.assume_multiple %391, 8 : i32
    %393 = arith.index_cast %392 : i32 to index
    %c0_110 = arith.constant 0 : index
    %394 = vector.load %arg9[%393, %c0_110] : memref<64x512xf32, #tpu.memory_space<vmem>>, vector<8x512xf32>
    %c0_111 = arith.constant 0 : index
    %c0_112 = arith.constant 0 : index
    %395 = vector.load %arg2[%c0_111, %c0_112] : memref<128x512xf32, #tpu.memory_space<vmem>>, vector<128x512xf32>
    %cst_113 = arith.constant dense<0.000000e+00> : vector<8x512xf32>
    %396 = tpu.matmul %358, %395, %cst_113 {dimension_numbers = #tpu.dot_dimension_numbers<[1], [0], [0], [1], [0, 0, 1, 1], [], []>} : vector<8x128xf32>, vector<128x512xf32>, vector<8x512xf32> -> vector<8x512xf32>
    %397 = arith.addf %394, %396 : vector<8x512xf32>
    %398 = vector.extract_strided_slice %397 {offsets = [0, 0], sizes = [8, 128], strides = [1, 1]} : vector<8x512xf32> to vector<8x128xf32>
    %399 = arith.negf %398 : vector<8x128xf32>
    %400 = math.exp %399 : vector<8x128xf32>
    %cst_114 = arith.constant 1.000000e+00 : f32
    %401 = vector.broadcast %cst_114 : f32 to vector<8x128xf32>
    %402 = arith.addf %401, %400 : vector<8x128xf32>
    %403 = arith.divf %401, %402 : vector<8x128xf32>
    %404 = vector.extract_strided_slice %397 {offsets = [0, 128], sizes = [8, 128], strides = [1, 1]} : vector<8x512xf32> to vector<8x128xf32>
    %405 = arith.negf %404 : vector<8x128xf32>
    %406 = math.exp %405 : vector<8x128xf32>
    %cst_115 = arith.constant 1.000000e+00 : f32
    %407 = vector.broadcast %cst_115 : f32 to vector<8x128xf32>
    %408 = arith.addf %407, %406 : vector<8x128xf32>
    %409 = arith.divf %407, %408 : vector<8x128xf32>
    %410 = vector.extract_strided_slice %397 {offsets = [0, 256], sizes = [8, 128], strides = [1, 1]} : vector<8x512xf32> to vector<8x128xf32>
    %411 = math.tanh %410 : vector<8x128xf32>
    %412 = vector.extract_strided_slice %397 {offsets = [0, 384], sizes = [8, 128], strides = [1, 1]} : vector<8x512xf32> to vector<8x128xf32>
    %413 = arith.negf %412 : vector<8x128xf32>
    %414 = math.exp %413 : vector<8x128xf32>
    %cst_116 = arith.constant 1.000000e+00 : f32
    %415 = vector.broadcast %cst_116 : f32 to vector<8x128xf32>
    %416 = arith.addf %415, %414 : vector<8x128xf32>
    %417 = arith.divf %415, %416 : vector<8x128xf32>
    %418 = arith.mulf %409, %356 : vector<8x128xf32>
    %419 = arith.mulf %403, %411 : vector<8x128xf32>
    %420 = arith.addf %418, %419 : vector<8x128xf32>
    %421 = math.tanh %420 : vector<8x128xf32>
    %422 = arith.mulf %417, %421 : vector<8x128xf32>
    %c6_i32 = arith.constant 6 : i32
    %423 = tpu.concatenate %422, %389 in 1 : vector<8x128xf32>, vector<8x128xf32> -> vector<8x256xf32>
    %c0_117 = arith.constant 0 : index
    %c0_118 = arith.constant 0 : index
    %424 = vector.load %arg4[%c0_117, %c0_118] : memref<256x512xf32, #tpu.memory_space<vmem>>, vector<256x512xf32>
    %cst_119 = arith.constant dense<0.000000e+00> : vector<8x512xf32>
    %425 = tpu.matmul %423, %424, %cst_119 {dimension_numbers = #tpu.dot_dimension_numbers<[1], [0], [0], [1], [0, 0, 1, 1], [], []>} : vector<8x256xf32>, vector<256x512xf32>, vector<8x512xf32> -> vector<8x512xf32>
    %c0_120 = arith.constant 0 : index
    %c0_121 = arith.constant 0 : index
    %426 = vector.load %arg5[%c0_120, %c0_121] : memref<1x512xf32, #tpu.memory_space<vmem>>, vector<1x512xf32>
    %427 = vector.broadcast %426 : vector<1x512xf32> to vector<8x512xf32>
    %428 = arith.addf %425, %427 : vector<8x512xf32>
    %429 = vector.extract_strided_slice %428 {offsets = [0, 0], sizes = [8, 128], strides = [1, 1]} : vector<8x512xf32> to vector<8x128xf32>
    %430 = arith.negf %429 : vector<8x128xf32>
    %431 = math.exp %430 : vector<8x128xf32>
    %cst_122 = arith.constant 1.000000e+00 : f32
    %432 = vector.broadcast %cst_122 : f32 to vector<8x128xf32>
    %433 = arith.addf %432, %431 : vector<8x128xf32>
    %434 = arith.divf %432, %433 : vector<8x128xf32>
    %435 = vector.extract_strided_slice %428 {offsets = [0, 128], sizes = [8, 128], strides = [1, 1]} : vector<8x512xf32> to vector<8x128xf32>
    %436 = arith.negf %435 : vector<8x128xf32>
    %437 = math.exp %436 : vector<8x128xf32>
    %cst_123 = arith.constant 1.000000e+00 : f32
    %438 = vector.broadcast %cst_123 : f32 to vector<8x128xf32>
    %439 = arith.addf %438, %437 : vector<8x128xf32>
    %440 = arith.divf %438, %439 : vector<8x128xf32>
    %441 = vector.extract_strided_slice %428 {offsets = [0, 256], sizes = [8, 128], strides = [1, 1]} : vector<8x512xf32> to vector<8x128xf32>
    %442 = math.tanh %441 : vector<8x128xf32>
    %443 = vector.extract_strided_slice %428 {offsets = [0, 384], sizes = [8, 128], strides = [1, 1]} : vector<8x512xf32> to vector<8x128xf32>
    %444 = arith.negf %443 : vector<8x128xf32>
    %445 = math.exp %444 : vector<8x128xf32>
    %cst_124 = arith.constant 1.000000e+00 : f32
    %446 = vector.broadcast %cst_124 : f32 to vector<8x128xf32>
    %447 = arith.addf %446, %445 : vector<8x128xf32>
    %448 = arith.divf %446, %447 : vector<8x128xf32>
    %449 = arith.mulf %440, %387 : vector<8x128xf32>
    %450 = arith.mulf %434, %442 : vector<8x128xf32>
    %451 = arith.addf %449, %450 : vector<8x128xf32>
    %452 = math.tanh %451 : vector<8x128xf32>
    %453 = arith.mulf %448, %452 : vector<8x128xf32>
    %c1_i32_125 = arith.constant 1 : i32
    %454 = arith.addi %c6_i32, %c1_i32_125 : i32
    %c8_i32_126 = arith.constant 8 : i32
    %455 = arith.muli %454, %c8_i32_126 : i32
    %456 = tpu.assume_multiple %455, 8 : i32
    %457 = arith.index_cast %456 : i32 to index
    %c0_127 = arith.constant 0 : index
    %458 = vector.load %arg9[%457, %c0_127] : memref<64x512xf32, #tpu.memory_space<vmem>>, vector<8x512xf32>
    %c0_128 = arith.constant 0 : index
    %c0_129 = arith.constant 0 : index
    %459 = vector.load %arg2[%c0_128, %c0_129] : memref<128x512xf32, #tpu.memory_space<vmem>>, vector<128x512xf32>
    %cst_130 = arith.constant dense<0.000000e+00> : vector<8x512xf32>
    %460 = tpu.matmul %422, %459, %cst_130 {dimension_numbers = #tpu.dot_dimension_numbers<[1], [0], [0], [1], [0, 0, 1, 1], [], []>} : vector<8x128xf32>, vector<128x512xf32>, vector<8x512xf32> -> vector<8x512xf32>
    %461 = arith.addf %458, %460 : vector<8x512xf32>
    %462 = vector.extract_strided_slice %461 {offsets = [0, 0], sizes = [8, 128], strides = [1, 1]} : vector<8x512xf32> to vector<8x128xf32>
    %463 = arith.negf %462 : vector<8x128xf32>
    %464 = math.exp %463 : vector<8x128xf32>
    %cst_131 = arith.constant 1.000000e+00 : f32
    %465 = vector.broadcast %cst_131 : f32 to vector<8x128xf32>
    %466 = arith.addf %465, %464 : vector<8x128xf32>
    %467 = arith.divf %465, %466 : vector<8x128xf32>
    %468 = vector.extract_strided_slice %461 {offsets = [0, 128], sizes = [8, 128], strides = [1, 1]} : vector<8x512xf32> to vector<8x128xf32>
    %469 = arith.negf %468 : vector<8x128xf32>
    %470 = math.exp %469 : vector<8x128xf32>
    %cst_132 = arith.constant 1.000000e+00 : f32
    %471 = vector.broadcast %cst_132 : f32 to vector<8x128xf32>
    %472 = arith.addf %471, %470 : vector<8x128xf32>
    %473 = arith.divf %471, %472 : vector<8x128xf32>
    %474 = vector.extract_strided_slice %461 {offsets = [0, 256], sizes = [8, 128], strides = [1, 1]} : vector<8x512xf32> to vector<8x128xf32>
    %475 = math.tanh %474 : vector<8x128xf32>
    %476 = vector.extract_strided_slice %461 {offsets = [0, 384], sizes = [8, 128], strides = [1, 1]} : vector<8x512xf32> to vector<8x128xf32>
    %477 = arith.negf %476 : vector<8x128xf32>
    %478 = math.exp %477 : vector<8x128xf32>
    %cst_133 = arith.constant 1.000000e+00 : f32
    %479 = vector.broadcast %cst_133 : f32 to vector<8x128xf32>
    %480 = arith.addf %479, %478 : vector<8x128xf32>
    %481 = arith.divf %479, %480 : vector<8x128xf32>
    %482 = arith.mulf %473, %420 : vector<8x128xf32>
    %483 = arith.mulf %467, %475 : vector<8x128xf32>
    %484 = arith.addf %482, %483 : vector<8x128xf32>
    %485 = math.tanh %484 : vector<8x128xf32>
    %486 = arith.mulf %481, %485 : vector<8x128xf32>
    %c7_i32 = arith.constant 7 : i32
    %487 = tpu.concatenate %486, %453 in 1 : vector<8x128xf32>, vector<8x128xf32> -> vector<8x256xf32>
    %c0_134 = arith.constant 0 : index
    %c0_135 = arith.constant 0 : index
    %488 = vector.load %arg4[%c0_134, %c0_135] : memref<256x512xf32, #tpu.memory_space<vmem>>, vector<256x512xf32>
    %cst_136 = arith.constant dense<0.000000e+00> : vector<8x512xf32>
    %489 = tpu.matmul %487, %488, %cst_136 {dimension_numbers = #tpu.dot_dimension_numbers<[1], [0], [0], [1], [0, 0, 1, 1], [], []>} : vector<8x256xf32>, vector<256x512xf32>, vector<8x512xf32> -> vector<8x512xf32>
    %c0_137 = arith.constant 0 : index
    %c0_138 = arith.constant 0 : index
    %490 = vector.load %arg5[%c0_137, %c0_138] : memref<1x512xf32, #tpu.memory_space<vmem>>, vector<1x512xf32>
    %491 = vector.broadcast %490 : vector<1x512xf32> to vector<8x512xf32>
    %492 = arith.addf %489, %491 : vector<8x512xf32>
    %493 = vector.extract_strided_slice %492 {offsets = [0, 0], sizes = [8, 128], strides = [1, 1]} : vector<8x512xf32> to vector<8x128xf32>
    %494 = arith.negf %493 : vector<8x128xf32>
    %495 = math.exp %494 : vector<8x128xf32>
    %cst_139 = arith.constant 1.000000e+00 : f32
    %496 = vector.broadcast %cst_139 : f32 to vector<8x128xf32>
    %497 = arith.addf %496, %495 : vector<8x128xf32>
    %498 = arith.divf %496, %497 : vector<8x128xf32>
    %499 = vector.extract_strided_slice %492 {offsets = [0, 128], sizes = [8, 128], strides = [1, 1]} : vector<8x512xf32> to vector<8x128xf32>
    %500 = arith.negf %499 : vector<8x128xf32>
    %501 = math.exp %500 : vector<8x128xf32>
    %cst_140 = arith.constant 1.000000e+00 : f32
    %502 = vector.broadcast %cst_140 : f32 to vector<8x128xf32>
    %503 = arith.addf %502, %501 : vector<8x128xf32>
    %504 = arith.divf %502, %503 : vector<8x128xf32>
    %505 = vector.extract_strided_slice %492 {offsets = [0, 256], sizes = [8, 128], strides = [1, 1]} : vector<8x512xf32> to vector<8x128xf32>
    %506 = math.tanh %505 : vector<8x128xf32>
    %507 = vector.extract_strided_slice %492 {offsets = [0, 384], sizes = [8, 128], strides = [1, 1]} : vector<8x512xf32> to vector<8x128xf32>
    %508 = arith.negf %507 : vector<8x128xf32>
    %509 = math.exp %508 : vector<8x128xf32>
    %cst_141 = arith.constant 1.000000e+00 : f32
    %510 = vector.broadcast %cst_141 : f32 to vector<8x128xf32>
    %511 = arith.addf %510, %509 : vector<8x128xf32>
    %512 = arith.divf %510, %511 : vector<8x128xf32>
    %513 = arith.mulf %504, %451 : vector<8x128xf32>
    %514 = arith.mulf %498, %506 : vector<8x128xf32>
    %515 = arith.addf %513, %514 : vector<8x128xf32>
    %516 = math.tanh %515 : vector<8x128xf32>
    %517 = arith.mulf %512, %516 : vector<8x128xf32>
    %c0_142 = arith.constant 0 : index
    %c0_143 = arith.constant 0 : index
    %518 = vector.load %arg6[%c0_142, %c0_143] : memref<128x128xf32, #tpu.memory_space<vmem>>, vector<128x128xf32>
    %cst_144 = arith.constant dense<0.000000e+00> : vector<8x128xf32>
    %519 = tpu.matmul %517, %518, %cst_144 {dimension_numbers = #tpu.dot_dimension_numbers<[1], [0], [0], [1], [0, 0, 1, 1], [], []>} : vector<8x128xf32>, vector<128x128xf32>, vector<8x128xf32> -> vector<8x128xf32>
    %c0_145 = arith.constant 0 : index
    %c0_146 = arith.constant 0 : index
    %520 = vector.load %arg7[%c0_145, %c0_146] : memref<1x128xf32, #tpu.memory_space<vmem>>, vector<1x128xf32>
    %521 = vector.broadcast %520 : vector<1x128xf32> to vector<8x128xf32>
    %522 = arith.addf %519, %521 : vector<8x128xf32>
    %c0_147 = arith.constant 0 : index
    %c0_148 = arith.constant 0 : index
    %523 = vector.load %arg8[%c0_147, %c0_148] : memref<8x128xf32, #tpu.memory_space<vmem>>, vector<8x128xf32>
    tpu.vector_store %arg8[%c0_147, %c0_148], %522 {strides = array<i32>} : memref<8x128xf32, #tpu.memory_space<vmem>>, vector<8x128xf32>,
    return
  }
}

</mosaic_0001>

<llo_original>
// kernel: tpu_custom_call.1
$region0: #{tpu_custom_call.1}
  #allocation0 [shape = 'u32[]', space=smem, size = 0x4, offset = 0x4, fixed_abs, tag = 'smem constant byte address 0x4 - core index']
  #allocation1 [shape = 'u32[144,128]{1,0:T(1,128)}', space=vmem, size = 0x12000, scoped, tag = 'internal scratch']
  #allocation2 [shape = 'f32[64,512]{1,0:T(8,128)}', space=vmem, size = 0x20000, scoped, tag = 'scratch operand']
  %s0 = inlined_call_operand.hbm [shape: f32[64,128], index: 0, kind: input, shape index: {}]
  %s1 = inlined_call_operand.hbm [shape: f32[128,512], index: 1, kind: input, shape index: {}]
  %s2 = inlined_call_operand.hbm [shape: f32[128,512], index: 2, kind: input, shape index: {}]
  %s3 = inlined_call_operand.vmem [shape: f32[1,512], index: 3, kind: input, shape index: {}]
  %s4 = inlined_call_operand.hbm [shape: f32[256,512], index: 4, kind: input, shape index: {}]
  %s5 = inlined_call_operand.vmem [shape: f32[1,512], index: 5, kind: input, shape index: {}]
  %s6 = inlined_call_operand.hbm [shape: f32[128,128], index: 6, kind: input, shape index: {}]
  %s7 = inlined_call_operand.vmem [shape: f32[1,128], index: 7, kind: input, shape index: {}]
  %s8 = inlined_call_operand.hbm [shape: f32[8,128], index: 8, kind: output, shape index: {}]
  %s9 = sld [smem:[#allocation0]]
  $region62: #{tpu_custom_call.1} parent=0
    _
  %s11 = ssub.s32 1, %s9
  %s12 = scalar_select 0, %s11, %s9
  $region1: #{tpu_custom_call.1} parent=0
    #allocation3 [shape = 'u8[32768]{0}', space=vmem, size = 0x8000, scoped, tag = 'input window, operand 0, single buffered']
    #allocation4 [shape = 's32[1]{0}', space=sflag, size = 0x4, scoped, tag = 'scoped memory for tpu_custom_call.1']
    #allocation5 [shape = 's32[1]{0}', space=sflag, size = 0x4, scoped, tag = 'scoped memory for tpu_custom_call.1']
    #allocation6 [shape = 'u8[262144]{0}', space=vmem, size = 0x40000, scoped, tag = 'input window, operand 1, single buffered']
    #allocation7 [shape = 's32[1]{0}', space=sflag, size = 0x4, scoped, tag = 'scoped memory for tpu_custom_call.1']
    #allocation8 [shape = 'u8[262144]{0}', space=vmem, size = 0x40000, scoped, tag = 'input window, operand 2, single buffered']
    #allocation9 [shape = 'u8[524288]{0}', space=vmem, size = 0x80000, scoped, tag = 'input window, operand 4, single buffered']
    #allocation10 [shape = 's32[1]{0}', space=sflag, size = 0x4, scoped, tag = 'scoped memory for tpu_custom_call.1']
    #allocation11 [shape = 'u8[65536]{0}', space=vmem, size = 0x10000, scoped, tag = 'input window, operand 6, single buffered']
    #allocation12 [shape = 'u8[4096]{0}', space=vmem, size = 0x1000, scoped, tag = 'output window, operand 0, single buffered']
    %13 = vsyncpa [#allocation4], 0
    %14 = vsyncpa [#allocation7], 0
    %15 = vsyncpa [#allocation10], 0
    %16 = vsyncpa [#allocation5], 0
    // Predicated region
    $region2: #{tpu_custom_call.1} parent=1 // pred_check
      _
    $region3: #{tpu_custom_call.1} parent=1 // pred_check_branch
      %18 = sbr.rel (0) target = $region5
    $region4: #{tpu_custom_call.1} parent=1 // pred_region
      %s20 = ssub.s32 1024, 1024
      %21 = vsyncadd [#allocation4], %s20
      %s22 = sshll.u32 [#allocation3], 4
      %s23 = int_to_ptr.vmem [resolvable:$true] %s22
      %28 = dma.hbm_to_vmem [thread:$0]  %s0, 1024, %s23, [#allocation4], 128, 128, 8
    $region5: #{tpu_custom_call.1} parent=1 // pred_fallthru
      _
    // Predicated region
    $region6: #{tpu_custom_call.1} parent=1 // pred_check
      _
    $region7: #{tpu_custom_call.1} parent=1 // pred_check_branch
      %30 = sbr.rel (0) target = $region9
    $region8: #{tpu_custom_call.1} parent=1 // pred_region
      %s32 = ssub.s32 8192, 8192
      %33 = vsyncadd [#allocation7], %s32
      %s34 = sshll.u32 [#allocation6], 4
      %s35 = int_to_ptr.vmem [resolvable:$true] %s34
      %40 = dma.hbm_to_vmem [thread:$0]  %s1, 8192, %s35, [#allocation7], 512, 512, 32
    $region9: #{tpu_custom_call.1} parent=1 // pred_fallthru
      _
    // Predicated region
    $region10: #{tpu_custom_call.1} parent=1 // pred_check
      _
    $region11: #{tpu_custom_call.1} parent=1 // pred_check_branch
      %42 = sbr.rel (0) target = $region13
    $region12: #{tpu_custom_call.1} parent=1 // pred_region
      %s44 = ssub.s32 8192, 8192
      %45 = vsyncadd [#allocation7], %s44
      %s46 = sshll.u32 [#allocation8], 4
      %s47 = int_to_ptr.vmem [resolvable:$true] %s46
      %52 = dma.hbm_to_vmem [thread:$0]  %s2, 8192, %s47, [#allocation7], 512, 512, 32
    $region13: #{tpu_custom_call.1} parent=1 // pred_fallthru
      _
    // Predicated region
    $region14: #{tpu_custom_call.1} parent=1 // pred_check
      _
    $region15: #{tpu_custom_call.1} parent=1 // pred_check_branch
      %54 = sbr.rel (0) target = $region17
    $region16: #{tpu_custom_call.1} parent=1 // pred_region
      _
    $region17: #{tpu_custom_call.1} parent=1 // pred_fallthru
      _
    // Predicated region
    $region18: #{tpu_custom_call.1} parent=1 // pred_check
      _
    $region19: #{tpu_custom_call.1} parent=1 // pred_check_branch
      %56 = sbr.rel (0) target = $region21
    $region20: #{tpu_custom_call.1} parent=1 // pred_region
      %s58 = ssub.s32 16384, 16384
      %59 = vsyncadd [#allocation10], %s58
      %s60 = sshll.u32 [#allocation9], 4
      %s61 = int_to_ptr.vmem [resolvable:$true] %s60
      %66 = dma.hbm_to_vmem [thread:$0]  %s4, 16384, %s61, [#allocation10], 512, 512, 32
    $region21: #{tpu_custom_call.1} parent=1 // pred_fallthru
      _
    // Predicated region
    $region22: #{tpu_custom_call.1} parent=1 // pred_check
      _
    $region23: #{tpu_custom_call.1} parent=1 // pred_check_branch
      %68 = sbr.rel (0) target = $region25
    $region24: #{tpu_custom_call.1} parent=1 // pred_region
      _
    $region25: #{tpu_custom_call.1} parent=1 // pred_fallthru
      _
    // Predicated region
    $region26: #{tpu_custom_call.1} parent=1 // pred_check
      _
    $region27: #{tpu_custom_call.1} parent=1 // pred_check_branch
      %70 = sbr.rel (0) target = $region29
    $region28: #{tpu_custom_call.1} parent=1 // pred_region
      %s72 = ssub.s32 2048, 2048
      %73 = vsyncadd [#allocation10], %s72
      %s74 = sshll.u32 [#allocation11], 4
      %s75 = int_to_ptr.vmem [resolvable:$true] %s74
      %80 = dma.hbm_to_vmem [thread:$0]  %s6, 2048, %s75, [#allocation10], 128, 128, 8
    $region29: #{tpu_custom_call.1} parent=1 // pred_fallthru
      _
    // Predicated region
    $region30: #{tpu_custom_call.1} parent=1 // pred_check
      _
    $region31: #{tpu_custom_call.1} parent=1 // pred_check_branch
      %82 = sbr.rel (0) target = $region33
    $region32: #{tpu_custom_call.1} parent=1 // pred_region
      _
    $region33: #{tpu_custom_call.1} parent=1 // pred_fallthru
      _
    // Predicated region
    $region34: #{tpu_custom_call.1} parent=1 // pred_check
      _
    $region35: #{tpu_custom_call.1} parent=1 // pred_check_branch
      %84 = sbr.rel (0) target = $region37
    $region36: #{tpu_custom_call.1} parent=1 // pred_region
      %85 = dma.done [#allocation4], 1024
    $region37: #{tpu_custom_call.1} parent=1 // pred_fallthru
      _
    // Predicated region
    $region38: #{tpu_custom_call.1} parent=1 // pred_check
      _
    $region39: #{tpu_custom_call.1} parent=1 // pred_check_branch
      %87 = sbr.rel (0) target = $region41
    $region40: #{tpu_custom_call.1} parent=1 // pred_region
      %88 = dma.done [#allocation7], 8192
    $region41: #{tpu_custom_call.1} parent=1 // pred_fallthru
      _
    // Predicated region
    $region42: #{tpu_custom_call.1} parent=1 // pred_check
      _
    $region43: #{tpu_custom_call.1} parent=1 // pred_check_branch
      %90 = sbr.rel (0) target = $region45
    $region44: #{tpu_custom_call.1} parent=1 // pred_region
      %91 = dma.done [#allocation7], 8192
    $region45: #{tpu_custom_call.1} parent=1 // pred_fallthru
      _
    // Predicated region
    $region46: #{tpu_custom_call.1} parent=1 // pred_check
      _
    $region47: #{tpu_custom_call.1} parent=1 // pred_check_branch
      %93 = sbr.rel (0) target = $region49
    $region48: #{tpu_custom_call.1} parent=1 // pred_region
      %94 = dma.done [#allocation10], 16384
    $region49: #{tpu_custom_call.1} parent=1 // pred_fallthru
      _
    // Predicated region
    $region50: #{tpu_custom_call.1} parent=1 // pred_check
      _
    $region51: #{tpu_custom_call.1} parent=1 // pred_check_branch
      %96 = sbr.rel (0) target = $region53
    $region52: #{tpu_custom_call.1} parent=1 // pred_region
      %97 = dma.done [#allocation10], 2048
    $region53: #{tpu_custom_call.1} parent=1 // pred_fallthru
      _
    %v98 = vld [vmem:[#allocation3] sm:$0xff]
    %v99 = vld [vmem:[#allocation3 + $0x8] sm:$0xff]
    %v100 = vld [vmem:[#allocation3 + $0x10] sm:$0xff]
    %v101 = vld [vmem:[#allocation3 + $0x18] sm:$0xff]
    %v102 = vld [vmem:[#allocation3 + $0x20] sm:$0xff]
    %v103 = vld [vmem:[#allocation3 + $0x28] sm:$0xff]
    %v104 = vld [vmem:[#allocation3 + $0x30] sm:$0xff]
    %v105 = vld [vmem:[#allocation3 + $0x38] sm:$0xff]
    %v106 = vld [vmem:[#allocation6] sm:$0xff]
    %v107 = vld [vmem:[#allocation6 + $0x8] sm:$0xff]
    %v108 = vld [vmem:[#allocation6 + $0x10] sm:$0xff]
    %v109 = vld [vmem:[#allocation6 + $0x18] sm:$0xff]
    %v110 = vld [vmem:[#allocation6 + $0x20] sm:$0xff]
    %v111 = vld [vmem:[#allocation6 + $0x28] sm:$0xff]
    %v112 = vld [vmem:[#allocation6 + $0x30] sm:$0xff]
    %v113 = vld [vmem:[#allocation6 + $0x38] sm:$0xff]
    %v114 = vld [vmem:[#allocation6 + $0x40] sm:$0xff]
    %v115 = vld [vmem:[#allocation6 + $0x48] sm:$0xff]
    %v116 = vld [vmem:[#allocation6 + $0x50] sm:$0xff]
    %v117 = vld [vmem:[#allocation6 + $0x58] sm:$0xff]
    %v118 = vld [vmem:[#allocation6 + $0x60] sm:$0xff]
    %v119 = vld [vmem:[#allocation6 + $0x68] sm:$0xff]
    %v120 = vld [vmem:[#allocation6 + $0x70] sm:$0xff]
    %v121 = vld [vmem:[#allocation6 + $0x78] sm:$0xff]
    %v122 = vld [vmem:[#allocation6 + $0x80] sm:$0xff]
    %v123 = vld [vmem:[#allocation6 + $0x88] sm:$0xff]
    %v124 = vld [vmem:[#allocation6 + $0x90] sm:$0xff]
    %v125 = vld [vmem:[#allocation6 + $0x98] sm:$0xff]
    %v126 = vld [vmem:[#allocation6 + $0xa0] sm:$0xff]
    %v127 = vld [vmem:[#allocation6 + $0xa8] sm:$0xff]
    %v128 = vld [vmem:[#allocation6 + $0xb0] sm:$0xff]
    %v129 = vld [vmem:[#allocation6 + $0xb8] sm:$0xff]
    %v130 = vld [vmem:[#allocation6 + $0xc0] sm:$0xff]
    %v131 = vld [vmem:[#allocation6 + $0xc8] sm:$0xff]
    %v132 = vld [vmem:[#allocation6 + $0xd0] sm:$0xff]
    %v133 = vld [vmem:[#allocation6 + $0xd8] sm:$0xff]
    %v134 = vld [vmem:[#allocation6 + $0xe0] sm:$0xff]
    %v135 = vld [vmem:[#allocation6 + $0xe8] sm:$0xff]
    %v136 = vld [vmem:[#allocation6 + $0xf0] sm:$0xff]
    %v137 = vld [vmem:[#allocation6 + $0xf8] sm:$0xff]
    %v138 = vld [vmem:[#allocation6 + $0x100] sm:$0xff]
    %v139 = vld [vmem:[#allocation6 + $0x108] sm:$0xff]
    %v140 = vld [vmem:[#allocation6 + $0x110] sm:$0xff]
    %v141 = vld [vmem:[#allocation6 + $0x118] sm:$0xff]
    %v142 = vld [vmem:[#allocation6 + $0x120] sm:$0xff]
    %v143 = vld [vmem:[#allocation6 + $0x128] sm:$0xff]
    %v144 = vld [vmem:[#allocation6 + $0x130] sm:$0xff]
    %v145 = vld [vmem:[#allocation6 + $0x138] sm:$0xff]
    %v146 = vld [vmem:[#allocation6 + $0x140] sm:$0xff]
    %v147 = vld [vmem:[#allocation6 + $0x148] sm:$0xff]
    %v148 = vld [vmem:[#allocation6 + $0x150] sm:$0xff]
    %v149 = vld [vmem:[#allocation6 + $0x158] sm:$0xff]
    %v150 = vld [vmem:[#allocation6 + $0x160] sm:$0xff]
    %v151 = vld [vmem:[#allocation6 + $0x168] sm:$0xff]
    %v152 = vld [vmem:[#allocation6 + $0x170] sm:$0xff]
    %v153 = vld [vmem:[#allocation6 + $0x178] sm:$0xff]
    %v154 = vld [vmem:[#allocation6 + $0x180] sm:$0xff]
    %v155 = vld [vmem:[#allocation6 + $0x188] sm:$0xff]
    %v156 = vld [vmem:[#allocation6 + $0x190] sm:$0xff]
    %v157 = vld [vmem:[#allocation6 + $0x198] sm:$0xff]
    %v158 = vld [vmem:[#allocation6 + $0x1a0] sm:$0xff]
    %v159 = vld [vmem:[#allocation6 + $0x1a8] sm:$0xff]
    %v160 = vld [vmem:[#allocation6 + $0x1b0] sm:$0xff]
    %v161 = vld [vmem:[#allocation6 + $0x1b8] sm:$0xff]
    %v162 = vld [vmem:[#allocation6 + $0x1c0] sm:$0xff]
    %v163 = vld [vmem:[#allocation6 + $0x1c8] sm:$0xff]
    %v164 = vld [vmem:[#allocation6 + $0x1d0] sm:$0xff]
    %v165 = vld [vmem:[#allocation6 + $0x1d8] sm:$0xff]
    %v166 = vld [vmem:[#allocation6 + $0x1e0] sm:$0xff]
    %v167 = vld [vmem:[#allocation6 + $0x1e8] sm:$0xff]
    %v168 = vld [vmem:[#allocation6 + $0x1f0] sm:$0xff]
    %v169 = vld [vmem:[#allocation6 + $0x1f8] sm:$0xff]
    %v170 = vld [vmem:[%s3] sm:$0xf]
    %v172 = vlaneseq
    %v173 = vshrl.u32 %v172, 7
    %v174 = vsub.s32 0, %v173
    %v175 = vrot.slane %v170, %v174
    %v176 = vlaneseq
    %v177 = vshrl.u32 %v176, 7
    %v178 = vsub.s32 1, %v177
    %v179 = vrot.slane %v170, %v178
    %v180 = vlaneseq
    %v181 = vshrl.u32 %v180, 7
    %v182 = vsub.s32 2, %v181
    %v183 = vrot.slane %v170, %v182
    %v184 = vlaneseq
    %v185 = vshrl.u32 %v184, 7
    %v186 = vsub.s32 3, %v185
    %v187 = vrot.slane %v170, %v186
    %192 = vmatprep.subr.mxu0 %v107
    %193 = vmatpush1.msra.mxu0 %v106
    %194 = vmatprep.subr.mxu0 %v111
    %195 = vmatpush1.msra.mxu0 %v110
    %196 = vmatprep.subr.mxu0 %v115
    %197 = vmatpush1.msra.mxu0 %v114
    %198 = vmatprep.subr.mxu0 %v119
    %199 = vmatpush1.msra.mxu0 %v118
    %200 = vmatprep.subr.mxu0 %v123
    %201 = vmatpush1.msra.mxu0 %v122
    %202 = vmatprep.subr.mxu0 %v127
    %203 = vmatpush1.msra.mxu0 %v126
    %204 = vmatprep.subr.mxu0 %v131
    %205 = vmatpush1.msra.mxu0 %v130
    %206 = vmatprep.subr.mxu0 %v135
    %207 = vmatpush1.msra.mxu0 %v134
    %208 = vmatprep.subr.mxu0 %v139
    %209 = vmatpush1.msra.mxu0 %v138
    %210 = vmatprep.subr.mxu0 %v143
    %211 = vmatpush1.msra.mxu0 %v142
    %212 = vmatprep.subr.mxu0 %v147
    %213 = vmatpush1.msra.mxu0 %v146
    %214 = vmatprep.subr.mxu0 %v151
    %215 = vmatpush1.msra.mxu0 %v150
    %216 = vmatprep.subr.mxu0 %v155
    %217 = vmatpush1.msra.mxu0 %v154
    %218 = vmatprep.subr.mxu0 %v159
    %219 = vmatpush1.msra.mxu0 %v158
    %220 = vmatprep.subr.mxu0 %v163
    %221 = vmatpush1.msra.mxu0 %v162
    %222 = vmatprep.subr.mxu0 %v167
    %223 = vmatpush1.msra.mxu0 %v166
    %224 = vmatprep.subr.mxu0 0.0
    %225 = vmatpush1.msra.mxu0 0.0
    %226 = vmatprep.subr.mxu0 0.0
    %227 = vmatpush1.msra.mxu0 0.0
    %228 = vmatprep.subr.mxu0 0.0
    %229 = vmatpush1.msra.mxu0 0.0
    %230 = vmatprep.subr.mxu0 0.0
    %231 = vmatpush1.msra.mxu0 0.0
    %232 = vmatprep.subr.mxu0 0.0
    %233 = vmatpush1.msra.mxu0 0.0
    %234 = vmatprep.subr.mxu0 0.0
    %235 = vmatpush1.msra.mxu0 0.0
    %236 = vmatprep.subr.mxu0 0.0
    %237 = vmatpush1.msra.mxu0 0.0
    %238 = vmatprep.subr.mxu0 0.0
    %239 = vmatpush1.msra.mxu0 0.0
    %240 = vmatprep.subr.mxu0 0.0
    %241 = vmatpush1.msra.mxu0 0.0
    %242 = vmatprep.subr.mxu0 0.0
    %243 = vmatpush1.msra.mxu0 0.0
    %244 = vmatprep.subr.mxu0 0.0
    %245 = vmatpush1.msra.mxu0 0.0
    %246 = vmatprep.subr.mxu0 0.0
    %247 = vmatpush1.msra.mxu0 0.0
    %248 = vmatprep.subr.mxu0 0.0
    %249 = vmatpush1.msra.mxu0 0.0
    %250 = vmatprep.subr.mxu0 0.0
    %251 = vmatpush1.msra.mxu0 0.0
    %252 = vmatprep.subr.mxu0 0.0
    %253 = vmatpush1.msra.mxu0 0.0
    %254 = vmatprep.subr.mxu0 0.0
    %255 = vmatpush1.msra.mxu0 0.0
    %256 = vmatprep.mubr.f32.mxu0 0.0
    %257 = vmatmul.mubr.f32.gmra.mrb[0].mxu0 %v98
    %v258 = vpop.f32.mrb[0].mxu0
    %v259 = vadd.f32 %v175, %v258
    %v260 = vpop.f32.mrb[0].mxu0
    %v261 = vadd.f32 %v179, %v260
    %262 = vmatprep.mubr.f32.mxu0 0.0
    %263 = vmatmul.mubr.f32.gmra.mrb[0].mxu0 %v99
    %v264 = vpop.f32.mrb[0].mxu0
    %v265 = vadd.f32 %v175, %v264
    %v266 = vpop.f32.mrb[0].mxu0
    %v267 = vadd.f32 %v179, %v266
    %268 = vmatprep.mubr.f32.mxu0 0.0
    %269 = vmatmul.mubr.f32.gmra.mrb[0].mxu0 %v100
    %v270 = vpop.f32.mrb[0].mxu0
    %v271 = vadd.f32 %v175, %v270
    %v272 = vpop.f32.mrb[0].mxu0
    %v273 = vadd.f32 %v179, %v272
    %274 = vmatprep.mubr.f32.mxu0 0.0
    %275 = vmatmul.mubr.f32.gmra.mrb[0].mxu0 %v101
    %v276 = vpop.f32.mrb[0].mxu0
    %v277 = vadd.f32 %v175, %v276
    %v278 = vpop.f32.mrb[0].mxu0
    %v279 = vadd.f32 %v179, %v278
    %280 = vmatprep.mubr.f32.mxu0 0.0
    %281 = vmatmul.mubr.f32.gmra.mrb[0].mxu0 %v102
    %v282 = vpop.f32.mrb[0].mxu0
    %v283 = vadd.f32 %v175, %v282
    %v284 = vpop.f32.mrb[0].mxu0
    %v285 = vadd.f32 %v179, %v284
    %286 = vmatprep.mubr.f32.mxu0 0.0
    %287 = vmatmul.mubr.f32.gmra.mrb[0].mxu0 %v103
    %v288 = vpop.f32.mrb[0].mxu0
    %v289 = vadd.f32 %v175, %v288
    %v290 = vpop.f32.mrb[0].mxu0
    %v291 = vadd.f32 %v179, %v290
    %292 = vmatprep.mubr.f32.mxu0 0.0
    %293 = vmatmul.mubr.f32.gmra.mrb[0].mxu0 %v104
    %v294 = vpop.f32.mrb[0].mxu0
    %v295 = vadd.f32 %v175, %v294
    %v296 = vpop.f32.mrb[0].mxu0
    %v297 = vadd.f32 %v179, %v296
    %298 = vmatprep.mubr.f32.mxu0 0.0
    %299 = vmatmul.mubr.f32.gmra.mrb[0].mxu0 %v105
    %v300 = vpop.f32.mrb[0].mxu0
    %v301 = vadd.f32 %v175, %v300
    %v302 = vpop.f32.mrb[0].mxu0
    %v303 = vadd.f32 %v179, %v302
    %304 = vdwg.mxu0
    %305 = vmatprep.subr.mxu0 %v109
    %306 = vmatpush1.msra.mxu0 %v108
    %307 = vmatprep.subr.mxu0 %v113
    %308 = vmatpush1.msra.mxu0 %v112
    %309 = vmatprep.subr.mxu0 %v117
    %310 = vmatpush1.msra.mxu0 %v116
    %311 = vmatprep.subr.mxu0 %v121
    %312 = vmatpush1.msra.mxu0 %v120
    %313 = vmatprep.subr.mxu0 %v125
    %314 = vmatpush1.msra.mxu0 %v124
    %315 = vmatprep.subr.mxu0 %v129
    %316 = vmatpush1.msra.mxu0 %v128
    %317 = vmatprep.subr.mxu0 %v133
    %318 = vmatpush1.msra.mxu0 %v132
    %319 = vmatprep.subr.mxu0 %v137
    %320 = vmatpush1.msra.mxu0 %v136
    %321 = vmatprep.subr.mxu0 %v141
    %322 = vmatpush1.msra.mxu0 %v140
    %323 = vmatprep.subr.mxu0 %v145
    %324 = vmatpush1.msra.mxu0 %v144
    %325 = vmatprep.subr.mxu0 %v149
    %326 = vmatpush1.msra.mxu0 %v148
    %327 = vmatprep.subr.mxu0 %v153
    %328 = vmatpush1.msra.mxu0 %v152
    %329 = vmatprep.subr.mxu0 %v157
    %330 = vmatpush1.msra.mxu0 %v156
    %331 = vmatprep.subr.mxu0 %v161
    %332 = vmatpush1.msra.mxu0 %v160
    %333 = vmatprep.subr.mxu0 %v165
    %334 = vmatpush1.msra.mxu0 %v164
    %335 = vmatprep.subr.mxu0 %v169
    %336 = vmatpush1.msra.mxu0 %v168
    %337 = vmatprep.subr.mxu0 0.0
    %338 = vmatpush1.msra.mxu0 0.0
    %339 = vmatprep.subr.mxu0 0.0
    %340 = vmatpush1.msra.mxu0 0.0
    %341 = vmatprep.subr.mxu0 0.0
    %342 = vmatpush1.msra.mxu0 0.0
    %343 = vmatprep.subr.mxu0 0.0
    %344 = vmatpush1.msra.mxu0 0.0
    %345 = vmatprep.subr.mxu0 0.0
    %346 = vmatpush1.msra.mxu0 0.0
    %347 = vmatprep.subr.mxu0 0.0
    %348 = vmatpush1.msra.mxu0 0.0
    %349 = vmatprep.subr.mxu0 0.0
    %350 = vmatpush1.msra.mxu0 0.0
    %351 = vmatprep.subr.mxu0 0.0
    %352 = vmatpush1.msra.mxu0 0.0
    %353 = vmatprep.subr.mxu0 0.0
    %354 = vmatpush1.msra.mxu0 0.0
    %355 = vmatprep.subr.mxu0 0.0
    %356 = vmatpush1.msra.mxu0 0.0
    %357 = vmatprep.subr.mxu0 0.0
    %358 = vmatpush1.msra.mxu0 0.0
    %359 = vmatprep.subr.mxu0 0.0
    %360 = vmatpush1.msra.mxu0 0.0
    %361 = vmatprep.subr.mxu0 0.0
    %362 = vmatpush1.msra.mxu0 0.0
    %363 = vmatprep.subr.mxu0 0.0
    %364 = vmatpush1.msra.mxu0 0.0
    %365 = vmatprep.subr.mxu0 0.0
    %366 = vmatpush1.msra.mxu0 0.0
    %367 = vmatprep.subr.mxu0 0.0
    %368 = vmatpush1.msra.mxu0 0.0
    %369 = vmatprep.mubr.f32.mxu0 0.0
    %370 = vmatmul.mubr.f32.gmra.mrb[0].mxu0 %v98
    %v371 = vpop.f32.mrb[0].mxu0
    %v372 = vadd.f32 %v183, %v371
    %v373 = vpop.f32.mrb[0].mxu0
    %v374 = vadd.f32 %v187, %v373
    %375 = vmatprep.mubr.f32.mxu0 0.0
    %376 = vmatmul.mubr.f32.gmra.mrb[0].mxu0 %v99
    %v377 = vpop.f32.mrb[0].mxu0
    %v378 = vadd.f32 %v183, %v377
    %v379 = vpop.f32.mrb[0].mxu0
    %v380 = vadd.f32 %v187, %v379
    %381 = vmatprep.mubr.f32.mxu0 0.0
    %382 = vmatmul.mubr.f32.gmra.mrb[0].mxu0 %v100
    %v383 = vpop.f32.mrb[0].mxu0
    %v384 = vadd.f32 %v183, %v383
    %v385 = vpop.f32.mrb[0].mxu0
    %v386 = vadd.f32 %v187, %v385
    %387 = vmatprep.mubr.f32.mxu0 0.0
    %388 = vmatmul.mubr.f32.gmra.mrb[0].mxu0 %v101
    %v389 = vpop.f32.mrb[0].mxu0
    %v390 = vadd.f32 %v183, %v389
    %v391 = vpop.f32.mrb[0].mxu0
    %v392 = vadd.f32 %v187, %v391
    %393 = vmatprep.mubr.f32.mxu0 0.0
    %394 = vmatmul.mubr.f32.gmra.mrb[0].mxu0 %v102
    %v395 = vpop.f32.mrb[0].mxu0
    %v396 = vadd.f32 %v183, %v395
    %v397 = vpop.f32.mrb[0].mxu0
    %v398 = vadd.f32 %v187, %v397
    %399 = vmatprep.mubr.f32.mxu0 0.0
    %400 = vmatmul.mubr.f32.gmra.mrb[0].mxu0 %v103
    %v401 = vpop.f32.mrb[0].mxu0
    %v402 = vadd.f32 %v183, %v401
    %v403 = vpop.f32.mrb[0].mxu0
    %v404 = vadd.f32 %v187, %v403
    %405 = vmatprep.mubr.f32.mxu0 0.0
    %406 = vmatmul.mubr.f32.gmra.mrb[0].mxu0 %v104
    %v407 = vpop.f32.mrb[0].mxu0
    %v408 = vadd.f32 %v183, %v407
    %v409 = vpop.f32.mrb[0].mxu0
    %v410 = vadd.f32 %v187, %v409
    %411 = vmatprep.mubr.f32.mxu0 0.0
    %412 = vmatmul.mubr.f32.gmra.mrb[0].mxu0 %v105
    %v413 = vpop.f32.mrb[0].mxu0
    %v414 = vadd.f32 %v183, %v413
    %v415 = vpop.f32.mrb[0].mxu0
    %v416 = vadd.f32 %v187, %v415
    %417 = vdwg.mxu0
    %418 = vst [vmem:[#allocation2] sm:$0xff] %v259
    %419 = vst [vmem:[#allocation2 + $0x8] sm:$0xff] %v261
    %420 = vst [vmem:[#allocation2 + $0x10] sm:$0xff] %v372
    %421 = vst [vmem:[#allocation2 + $0x18] sm:$0xff] %v374
    %422 = vst [vmem:[#allocation2 + $0x20] sm:$0xff] %v265
    %423 = vst [vmem:[#allocation2 + $0x28] sm:$0xff] %v267
    %424 = vst [vmem:[#allocation2 + $0x30] sm:$0xff] %v378
    %425 = vst [vmem:[#allocation2 + $0x38] sm:$0xff] %v380
    %426 = vst [vmem:[#allocation2 + $0x40] sm:$0xff] %v271
    %427 = vst [vmem:[#allocation2 + $0x48] sm:$0xff] %v273
    %428 = vst [vmem:[#allocation2 + $0x50] sm:$0xff] %v384
    %429 = vst [vmem:[#allocation2 + $0x58] sm:$0xff] %v386
    %430 = vst [vmem:[#allocation2 + $0x60] sm:$0xff] %v277
    %431 = vst [vmem:[#allocation2 + $0x68] sm:$0xff] %v279
    %432 = vst [vmem:[#allocation2 + $0x70] sm:$0xff] %v390
    %433 = vst [vmem:[#allocation2 + $0x78] sm:$0xff] %v392
    %434 = vst [vmem:[#allocation2 + $0x80] sm:$0xff] %v283
    %435 = vst [vmem:[#allocation2 + $0x88] sm:$0xff] %v285
    %436 = vst [vmem:[#allocation2 + $0x90] sm:$0xff] %v396
    %437 = vst [vmem:[#allocation2 + $0x98] sm:$0xff] %v398
    %438 = vst [vmem:[#allocation2 + $0xa0] sm:$0xff] %v289
    %439 = vst [vmem:[#allocation2 + $0xa8] sm:$0xff] %v291
    %440 = vst [vmem:[#allocation2 + $0xb0] sm:$0xff] %v402
    %441 = vst [vmem:[#allocation2 + $0xb8] sm:$0xff] %v404
    %442 = vst [vmem:[#allocation2 + $0xc0] sm:$0xff] %v295
    %443 = vst [vmem:[#allocation2 + $0xc8] sm:$0xff] %v297
    %444 = vst [vmem:[#allocation2 + $0xd0] sm:$0xff] %v408
    %445 = vst [vmem:[#allocation2 + $0xd8] sm:$0xff] %v410
    %446 = vst [vmem:[#allocation2 + $0xe0] sm:$0xff] %v301
    %447 = vst [vmem:[#allocation2 + $0xe8] sm:$0xff] %v303
    %448 = vst [vmem:[#allocation2 + $0xf0] sm:$0xff] %v414
    %449 = vst [vmem:[#allocation2 + $0xf8] sm:$0xff] %v416
    %s450 = smul.u32 0, 4
    %s451 = smul.addr %s450, 8
    %s452 = scalar_lea.vmem [#allocation2], %s451
    %v453 = vld [vmem:[%s452] sm:$0xff]
    %v454 = vld [vmem:[%s452 + $0x8] sm:$0xff]
    %v455 = vld [vmem:[%s452 + $0x10] sm:$0xff]
    %v456 = vld [vmem:[%s452 + $0x18] sm:$0xff]
    %v457 = vld [vmem:[#allocation8] sm:$0xff]
    %v458 = vld [vmem:[#allocation8 + $0x8] sm:$0xff]
    %v459 = vld [vmem:[#allocation8 + $0x10] sm:$0xff]
    %v460 = vld [vmem:[#allocation8 + $0x18] sm:$0xff]
    %v461 = vld [vmem:[#allocation8 + $0x20] sm:$0xff]
    %v462 = vld [vmem:[#allocation8 + $0x28] sm:$0xff]
    %v463 = vld [vmem:[#allocation8 + $0x30] sm:$0xff]
    %v464 = vld [vmem:[#allocation8 + $0x38] sm:$0xff]
    %v465 = vld [vmem:[#allocation8 + $0x40] sm:$0xff]
    %v466 = vld [vmem:[#allocation8 + $0x48] sm:$0xff]
    %v467 = vld [vmem:[#allocation8 + $0x50] sm:$0xff]
    %v468 = vld [vmem:[#allocation8 + $0x58] sm:$0xff]
    %v469 = vld [vmem:[#allocation8 + $0x60] sm:$0xff]
    %v470 = vld [vmem:[#allocation8 + $0x68] sm:$0xff]
    %v471 = vld [vmem:[#allocation8 + $0x70] sm:$0xff]
    %v472 = vld [vmem:[#allocation8 + $0x78] sm:$0xff]
    %v473 = vld [vmem:[#allocation8 + $0x80] sm:$0xff]
    %v474 = vld [vmem:[#allocation8 + $0x88] sm:$0xff]
    %v475 = vld [vmem:[#allocation8 + $0x90] sm:$0xff]
    %v476 = vld [vmem:[#allocation8 + $0x98] sm:$0xff]
    %v477 = vld [vmem:[#allocation8 + $0xa0] sm:$0xff]
    %v478 = vld [vmem:[#allocation8 + $0xa8] sm:$0xff]
    %v479 = vld [vmem:[#allocation8 + $0xb0] sm:$0xff]
    %v480 = vld [vmem:[#allocation8 + $0xb8] sm:$0xff]
    %v481 = vld [vmem:[#allocation8 + $0xc0] sm:$0xff]
    %v482 = vld [vmem:[#allocation8 + $0xc8] sm:$0xff]
    %v483 = vld [vmem:[#allocation8 + $0xd0] sm:$0xff]
    %v484 = vld [vmem:[#allocation8 + $0xd8] sm:$0xff]
    %v485 = vld [vmem:[#allocation8 + $0xe0] sm:$0xff]
    %v486 = vld [vmem:[#allocation8 + $0xe8] sm:$0xff]
    %v487 = vld [vmem:[#allocation8 + $0xf0] sm:$0xff]
    %v488 = vld [vmem:[#allocation8 + $0xf8] sm:$0xff]
    %v489 = vld [vmem:[#allocation8 + $0x100] sm:$0xff]
    %v490 = vld [vmem:[#allocation8 + $0x108] sm:$0xff]
    %v491 = vld [vmem:[#allocation8 + $0x110] sm:$0xff]
    %v492 = vld [vmem:[#allocation8 + $0x118] sm:$0xff]
    %v493 = vld [vmem:[#allocation8 + $0x120] sm:$0xff]
    %v494 = vld [vmem:[#allocation8 + $0x128] sm:$0xff]
    %v495 = vld [vmem:[#allocation8 + $0x130] sm:$0xff]
    %v496 = vld [vmem:[#allocation8 + $0x138] sm:$0xff]
    %v497 = vld [vmem:[#allocation8 + $0x140] sm:$0xff]
    %v498 = vld [vmem:[#allocation8 + $0x148] sm:$0xff]
    %v499 = vld [vmem:[#allocation8 + $0x150] sm:$0xff]
    %v500 = vld [vmem:[#allocation8 + $0x158] sm:$0xff]
    %v501 = vld [vmem:[#allocation8 + $0x160] sm:$0xff]
    %v502 = vld [vmem:[#allocation8 + $0x168] sm:$0xff]
    %v503 = vld [vmem:[#allocation8 + $0x170] sm:$0xff]
    %v504 = vld [vmem:[#allocation8 + $0x178] sm:$0xff]
    %v505 = vld [vmem:[#allocation8 + $0x180] sm:$0xff]
    %v506 = vld [vmem:[#allocation8 + $0x188] sm:$0xff]
    %v507 = vld [vmem:[#allocation8 + $0x190] sm:$0xff]
    %v508 = vld [vmem:[#allocation8 + $0x198] sm:$0xff]
    %v509 = vld [vmem:[#allocation8 + $0x1a0] sm:$0xff]
    %v510 = vld [vmem:[#allocation8 + $0x1a8] sm:$0xff]
    %v511 = vld [vmem:[#allocation8 + $0x1b0] sm:$0xff]
    %v512 = vld [vmem:[#allocation8 + $0x1b8] sm:$0xff]
    %v513 = vld [vmem:[#allocation8 + $0x1c0] sm:$0xff]
    %v514 = vld [vmem:[#allocation8 + $0x1c8] sm:$0xff]
    %v515 = vld [vmem:[#allocation8 + $0x1d0] sm:$0xff]
    %v516 = vld [vmem:[#allocation8 + $0x1d8] sm:$0xff]
    %v517 = vld [vmem:[#allocation8 + $0x1e0] sm:$0xff]
    %v518 = vld [vmem:[#allocation8 + $0x1e8] sm:$0xff]
    %v519 = vld [vmem:[#allocation8 + $0x1f0] sm:$0xff]
    %v520 = vld [vmem:[#allocation8 + $0x1f8] sm:$0xff]
    %521 = vmatprep.subr.mxu0 %v458
    %522 = vmatpush1.msra.mxu0 %v457
    %523 = vmatprep.subr.mxu0 %v462
    %524 = vmatpush1.msra.mxu0 %v461
    %525 = vmatprep.subr.mxu0 %v466
    %526 = vmatpush1.msra.mxu0 %v465
    %527 = vmatprep.subr.mxu0 %v470
    %528 = vmatpush1.msra.mxu0 %v469
    %529 = vmatprep.subr.mxu0 %v474
    %530 = vmatpush1.msra.mxu0 %v473
    %531 = vmatprep.subr.mxu0 %v478
    %532 = vmatpush1.msra.mxu0 %v477
    %533 = vmatprep.subr.mxu0 %v482
    %534 = vmatpush1.msra.mxu0 %v481
    %535 = vmatprep.subr.mxu0 %v486
    %536 = vmatpush1.msra.mxu0 %v485
    %537 = vmatprep.subr.mxu0 %v490
    %538 = vmatpush1.msra.mxu0 %v489
    %539 = vmatprep.subr.mxu0 %v494
    %540 = vmatpush1.msra.mxu0 %v493
    %541 = vmatprep.subr.mxu0 %v498
    %542 = vmatpush1.msra.mxu0 %v497
    %543 = vmatprep.subr.mxu0 %v502
    %544 = vmatpush1.msra.mxu0 %v501
    %545 = vmatprep.subr.mxu0 %v506
    %546 = vmatpush1.msra.mxu0 %v505
    %547 = vmatprep.subr.mxu0 %v510
    %548 = vmatpush1.msra.mxu0 %v509
    %549 = vmatprep.subr.mxu0 %v514
    %550 = vmatpush1.msra.mxu0 %v513
    %551 = vmatprep.subr.mxu0 %v518
    %552 = vmatpush1.msra.mxu0 %v517
    %553 = vmatprep.subr.mxu0 0.0
    %554 = vmatpush1.msra.mxu0 0.0
    %555 = vmatprep.subr.mxu0 0.0
    %556 = vmatpush1.msra.mxu0 0.0
    %557 = vmatprep.subr.mxu0 0.0
    %558 = vmatpush1.msra.mxu0 0.0
    %559 = vmatprep.subr.mxu0 0.0
    %560 = vmatpush1.msra.mxu0 0.0
    %561 = vmatprep.subr.mxu0 0.0
    %562 = vmatpush1.msra.mxu0 0.0
    %563 = vmatprep.subr.mxu0 0.0
    %564 = vmatpush1.msra.mxu0 0.0
    %565 = vmatprep.subr.mxu0 0.0
    %566 = vmatpush1.msra.mxu0 0.0
    %567 = vmatprep.subr.mxu0 0.0
    %568 = vmatpush1.msra.mxu0 0.0
    %569 = vmatprep.subr.mxu0 0.0
    %570 = vmatpush1.msra.mxu0 0.0
    %571 = vmatprep.subr.mxu0 0.0
    %572 = vmatpush1.msra.mxu0 0.0
    %573 = vmatprep.subr.mxu0 0.0
    %574 = vmatpush1.msra.mxu0 0.0
    %575 = vmatprep.subr.mxu0 0.0
    %576 = vmatpush1.msra.mxu0 0.0
    %577 = vmatprep.subr.mxu0 0.0
    %578 = vmatpush1.msra.mxu0 0.0
    %579 = vmatprep.subr.mxu0 0.0
    %580 = vmatpush1.msra.mxu0 0.0
    %581 = vmatprep.subr.mxu0 0.0
    %582 = vmatpush1.msra.mxu0 0.0
    %583 = vmatprep.subr.mxu0 0.0
    %584 = vmatpush1.msra.mxu0 0.0
    %585 = vmatprep.mubr.f32.mxu0 0.0
    %586 = vmatmul.mubr.f32.gmra.mrb[0].mxu0 0.0
    %v587 = vpop.f32.mrb[0].mxu0
    %v588 = vadd.f32 0.0, %v587
    %v589 = vpop.f32.mrb[0].mxu0
    %v590 = vadd.f32 0.0, %v589
    %591 = vdwg.mxu0
    %592 = vmatprep.subr.mxu0 %v460
    %593 = vmatpush1.msra.mxu0 %v459
    %594 = vmatprep.subr.mxu0 %v464
    %595 = vmatpush1.msra.mxu0 %v463
    %596 = vmatprep.subr.mxu0 %v468
    %597 = vmatpush1.msra.mxu0 %v467
    %598 = vmatprep.subr.mxu0 %v472
    %599 = vmatpush1.msra.mxu0 %v471
    %600 = vmatprep.subr.mxu0 %v476
    %601 = vmatpush1.msra.mxu0 %v475
    %602 = vmatprep.subr.mxu0 %v480
    %603 = vmatpush1.msra.mxu0 %v479
    %604 = vmatprep.subr.mxu0 %v484
    %605 = vmatpush1.msra.mxu0 %v483
    %606 = vmatprep.subr.mxu0 %v488
    %607 = vmatpush1.msra.mxu0 %v487
    %608 = vmatprep.subr.mxu0 %v492
    %609 = vmatpush1.msra.mxu0 %v491
    %610 = vmatprep.subr.mxu0 %v496
    %611 = vmatpush1.msra.mxu0 %v495
    %612 = vmatprep.subr.mxu0 %v500
    %613 = vmatpush1.msra.mxu0 %v499
    %614 = vmatprep.subr.mxu0 %v504
    %615 = vmatpush1.msra.mxu0 %v503
    %616 = vmatprep.subr.mxu0 %v508
    %617 = vmatpush1.msra.mxu0 %v507
    %618 = vmatprep.subr.mxu0 %v512
    %619 = vmatpush1.msra.mxu0 %v511
    %620 = vmatprep.subr.mxu0 %v516
    %621 = vmatpush1.msra.mxu0 %v515
    %622 = vmatprep.subr.mxu0 %v520
    %623 = vmatpush1.msra.mxu0 %v519
    %624 = vmatprep.subr.mxu0 0.0
    %625 = vmatpush1.msra.mxu0 0.0
    %626 = vmatprep.subr.mxu0 0.0
    %627 = vmatpush1.msra.mxu0 0.0
    %628 = vmatprep.subr.mxu0 0.0
    %629 = vmatpush1.msra.mxu0 0.0
    %630 = vmatprep.subr.mxu0 0.0
    %631 = vmatpush1.msra.mxu0 0.0
    %632 = vmatprep.subr.mxu0 0.0
    %633 = vmatpush1.msra.mxu0 0.0
    %634 = vmatprep.subr.mxu0 0.0
    %635 = vmatpush1.msra.mxu0 0.0
    %636 = vmatprep.subr.mxu0 0.0
    %637 = vmatpush1.msra.mxu0 0.0
    %638 = vmatprep.subr.mxu0 0.0
    %639 = vmatpush1.msra.mxu0 0.0
    %640 = vmatprep.subr.mxu0 0.0
    %641 = vmatpush1.msra.mxu0 0.0
    %642 = vmatprep.subr.mxu0 0.0
    %643 = vmatpush1.msra.mxu0 0.0
    %644 = vmatprep.subr.mxu0 0.0
    %645 = vmatpush1.msra.mxu0 0.0
    %646 = vmatprep.subr.mxu0 0.0
    %647 = vmatpush1.msra.mxu0 0.0
    %648 = vmatprep.subr.mxu0 0.0
    %649 = vmatpush1.msra.mxu0 0.0
    %650 = vmatprep.subr.mxu0 0.0
    %651 = vmatpush1.msra.mxu0 0.0
    %652 = vmatprep.subr.mxu0 0.0
    %653 = vmatpush1.msra.mxu0 0.0
    %654 = vmatprep.subr.mxu0 0.0
    %655 = vmatpush1.msra.mxu0 0.0
    %656 = vmatprep.mubr.f32.mxu0 0.0
    %657 = vmatmul.mubr.f32.gmra.mrb[0].mxu0 0.0
    %v658 = vpop.f32.mrb[0].mxu0
    %v659 = vadd.f32 0.0, %v658
    %v660 = vpop.f32.mrb[0].mxu0
    %v661 = vadd.f32 0.0, %v660
    %662 = vdwg.mxu0
    %v663 = vadd.f32 %v453, %v588
    %v664 = vadd.f32 %v454, %v590
    %v665 = vadd.f32 %v455, %v659
    %v666 = vadd.f32 %v456, %v661
    %v667 = vxor.u32 %v663, 2147483648
    %v668 = vmul.f32 %v667, 1.442695
    %v669 = vpow.pop %v668
    %v670 = vadd.f32 %v669, 1.0
    %v671 = vrcp.pop %v670
    %v672 = vmul.f32 1.0, %v671
    %v673 = vxor.u32 %v664, 2147483648
    %v674 = vmul.f32 %v673, 1.442695
    %v675 = vpow.pop %v674
    %v676 = vadd.f32 %v675, 1.0
    %v677 = vrcp.pop %v676
    %v678 = vmul.f32 1.0, %v677
    %v679 = vtanh.pop %v665
    %v680 = vxor.u32 %v666, 2147483648
    %v681 = vmul.f32 %v680, 1.442695
    %v682 = vpow.pop %v681
    %v683 = vadd.f32 %v682, 1.0
    %v684 = vrcp.pop %v683
    %v685 = vmul.f32 1.0, %v684
    %v686 = vmul.f32 %v678, 0.0
    %v687 = vmul.f32 %v672, %v679
    %v688 = vadd.f32 %v686, %v687
    %v689 = vtanh.pop %v688
    %v690 = vmul.f32 %v685, %v689
    %v691 = vld [vmem:[#allocation9] sm:$0xff]
    %v692 = vld [vmem:[#allocation9 + $0x8] sm:$0xff]
    %v693 = vld [vmem:[#allocation9 + $0x10] sm:$0xff]
    %v694 = vld [vmem:[#allocation9 + $0x18] sm:$0xff]
    %v695 = vld [vmem:[#allocation9 + $0x20] sm:$0xff]
    %v696 = vld [vmem:[#allocation9 + $0x28] sm:$0xff]
    %v697 = vld [vmem:[#allocation9 + $0x30] sm:$0xff]
    %v698 = vld [vmem:[#allocation9 + $0x38] sm:$0xff]
    %v699 = vld [vmem:[#allocation9 + $0x40] sm:$0xff]
    %v700 = vld [vmem:[#allocation9 + $0x48] sm:$0xff]
    %v701 = vld [vmem:[#allocation9 + $0x50] sm:$0xff]
    %v702 = vld [vmem:[#allocation9 + $0x58] sm:$0xff]
    %v703 = vld [vmem:[#allocation9 + $0x60] sm:$0xff]
    %v704 = vld [vmem:[#allocation9 + $0x68] sm:$0xff]
    %v705 = vld [vmem:[#allocation9 + $0x70] sm:$0xff]
    %v706 = vld [vmem:[#allocation9 + $0x78] sm:$0xff]
    %v707 = vld [vmem:[#allocation9 + $0x80] sm:$0xff]
    %v708 = vld [vmem:[#allocation9 + $0x88] sm:$0xff]
    %v709 = vld [vmem:[#allocation9 + $0x90] sm:$0xff]
    %v710 = vld [vmem:[#allocation9 + $0x98] sm:$0xff]
    %v711 = vld [vmem:[#allocation9 + $0xa0] sm:$0xff]
    %v712 = vld [vmem:[#allocation9 + $0xa8] sm:$0xff]
    %v713 = vld [vmem:[#allocation9 + $0xb0] sm:$0xff]
    %v714 = vld [vmem:[#allocation9 + $0xb8] sm:$0xff]
    %v715 = vld [vmem:[#allocation9 + $0xc0] sm:$0xff]
    %v716 = vld [vmem:[#allocation9 + $0xc8] sm:$0xff]
    %v717 = vld [vmem:[#allocation9 + $0xd0] sm:$0xff]
    %v718 = vld [vmem:[#allocation9 + $0xd8] sm:$0xff]
    %v719 = vld [vmem:[#allocation9 + $0xe0] sm:$0xff]
    %v720 = vld [vmem:[#allocation9 + $0xe8] sm:$0xff]
    %v721 = vld [vmem:[#allocation9 + $0xf0] sm:$0xff]
    %v722 = vld [vmem:[#allocation9 + $0xf8] sm:$0xff]
    %v723 = vld [vmem:[#allocation9 + $0x100] sm:$0xff]
    %v724 = vld [vmem:[#allocation9 + $0x108] sm:$0xff]
    %v725 = vld [vmem:[#allocation9 + $0x110] sm:$0xff]
    %v726 = vld [vmem:[#allocation9 + $0x118] sm:$0xff]
    %v727 = vld [vmem:[#allocation9 + $0x120] sm:$0xff]
    %v728 = vld [vmem:[#allocation9 + $0x128] sm:$0xff]
    %v729 = vld [vmem:[#allocation9 + $0x130] sm:$0xff]
    %v730 = vld [vmem:[#allocation9 + $0x138] sm:$0xff]
    %v731 = vld [vmem:[#allocation9 + $0x140] sm:$0xff]
    %v732 = vld [vmem:[#allocation9 + $0x148] sm:$0xff]
    %v733 = vld [vmem:[#allocation9 + $0x150] sm:$0xff]
    %v734 = vld [vmem:[#allocation9 + $0x158] sm:$0xff]
    %v735 = vld [vmem:[#allocation9 + $0x160] sm:$0xff]
    %v736 = vld [vmem:[#allocation9 + $0x168] sm:$0xff]
    %v737 = vld [vmem:[#allocation9 + $0x170] sm:$0xff]
    %v738 = vld [vmem:[#allocation9 + $0x178] sm:$0xff]
    %v739 = vld [vmem:[#allocation9 + $0x180] sm:$0xff]
    %v740 = vld [vmem:[#allocation9 + $0x188] sm:$0xff]
    %v741 = vld [vmem:[#allocation9 + $0x190] sm:$0xff]
    %v742 = vld [vmem:[#allocation9 + $0x198] sm:$0xff]
    %v743 = vld [vmem:[#allocation9 + $0x1a0] sm:$0xff]
    %v744 = vld [vmem:[#allocation9 + $0x1a8] sm:$0xff]
    %v745 = vld [vmem:[#allocation9 + $0x1b0] sm:$0xff]
    %v746 = vld [vmem:[#allocation9 + $0x1b8] sm:$0xff]
    %v747 = vld [vmem:[#allocation9 + $0x1c0] sm:$0xff]
    %v748 = vld [vmem:[#allocation9 + $0x1c8] sm:$0xff]
    %v749 = vld [vmem:[#allocation9 + $0x1d0] sm:$0xff]
    %v750 = vld [vmem:[#allocation9 + $0x1d8] sm:$0xff]
    %v751 = vld [vmem:[#allocation9 + $0x1e0] sm:$0xff]
    %v752 = vld [vmem:[#allocation9 + $0x1e8] sm:$0xff]
    %v753 = vld [vmem:[#allocation9 + $0x1f0] sm:$0xff]
    %v754 = vld [vmem:[#allocation9 + $0x1f8] sm:$0xff]
    %v755 = vld [vmem:[#allocation9 + $0x200] sm:$0xff]
    %v756 = vld [vmem:[#allocation9 + $0x208] sm:$0xff]
    %v757 = vld [vmem:[#allocation9 + $0x210] sm:$0xff]
    %v758 = vld [vmem:[#allocation9 + $0x218] sm:$0xff]
    %v759 = vld [vmem:[#allocation9 + $0x220] sm:$0xff]
    %v760 = vld [vmem:[#allocation9 + $0x228] sm:$0xff]
    %v761 = vld [vmem:[#allocation9 + $0x230] sm:$0xff]
    %v762 = vld [vmem:[#allocation9 + $0x238] sm:$0xff]
    %v763 = vld [vmem:[#allocation9 + $0x240] sm:$0xff]
    %v764 = vld [vmem:[#allocation9 + $0x248] sm:$0xff]
    %v765 = vld [vmem:[#allocation9 + $0x250] sm:$0xff]
    %v766 = vld [vmem:[#allocation9 + $0x258] sm:$0xff]
    %v767 = vld [vmem:[#allocation9 + $0x260] sm:$0xff]
    %v768 = vld [vmem:[#allocation9 + $0x268] sm:$0xff]
    %v769 = vld [vmem:[#allocation9 + $0x270] sm:$0xff]
    %v770 = vld [vmem:[#allocation9 + $0x278] sm:$0xff]
    %v771 = vld [vmem:[#allocation9 + $0x280] sm:$0xff]
    %v772 = vld [vmem:[#allocation9 + $0x288] sm:$0xff]
    %v773 = vld [vmem:[#allocation9 + $0x290] sm:$0xff]
    %v774 = vld [vmem:[#allocation9 + $0x298] sm:$0xff]
    %v775 = vld [vmem:[#allocation9 + $0x2a0] sm:$0xff]
    %v776 = vld [vmem:[#allocation9 + $0x2a8] sm:$0xff]
    %v777 = vld [vmem:[#allocation9 + $0x2b0] sm:$0xff]
    %v778 = vld [vmem:[#allocation9 + $0x2b8] sm:$0xff]
    %v779 = vld [vmem:[#allocation9 + $0x2c0] sm:$0xff]
    %v780 = vld [vmem:[#allocation9 + $0x2c8] sm:$0xff]
    %v781 = vld [vmem:[#allocation9 + $0x2d0] sm:$0xff]
    %v782 = vld [vmem:[#allocation9 + $0x2d8] sm:$0xff]
    %v783 = vld [vmem:[#allocation9 + $0x2e0] sm:$0xff]
    %v784 = vld [vmem:[#allocation9 + $0x2e8] sm:$0xff]
    %v785 = vld [vmem:[#allocation9 + $0x2f0] sm:$0xff]
    %v786 = vld [vmem:[#allocation9 + $0x2f8] sm:$0xff]
    %v787 = vld [vmem:[#allocation9 + $0x300] sm:$0xff]
    %v788 = vld [vmem:[#allocation9 + $0x308] sm:$0xff]
    %v789 = vld [vmem:[#allocation9 + $0x310] sm:$0xff]
    %v790 = vld [vmem:[#allocation9 + $0x318] sm:$0xff]
    %v791 = vld [vmem:[#allocation9 + $0x320] sm:$0xff]
    %v792 = vld [vmem:[#allocation9 + $0x328] sm:$0xff]
    %v793 = vld [vmem:[#allocation9 + $0x330] sm:$0xff]
    %v794 = vld [vmem:[#allocation9 + $0x338] sm:$0xff]
    %v795 = vld [vmem:[#allocation9 + $0x340] sm:$0xff]
    %v796 = vld [vmem:[#allocation9 + $0x348] sm:$0xff]
    %v797 = vld [vmem:[#allocation9 + $0x350] sm:$0xff]
    %v798 = vld [vmem:[#allocation9 + $0x358] sm:$0xff]
    %v799 = vld [vmem:[#allocation9 + $0x360] sm:$0xff]
    %v800 = vld [vmem:[#allocation9 + $0x368] sm:$0xff]
    %v801 = vld [vmem:[#allocation9 + $0x370] sm:$0xff]
    %v802 = vld [vmem:[#allocation9 + $0x378] sm:$0xff]
    %v803 = vld [vmem:[#allocation9 + $0x380] sm:$0xff]
    %v804 = vld [vmem:[#allocation9 + $0x388] sm:$0xff]
    %v805 = vld [vmem:[#allocation9 + $0x390] sm:$0xff]
    %v806 = vld [vmem:[#allocation9 + $0x398] sm:$0xff]
    %v807 = vld [vmem:[#allocation9 + $0x3a0] sm:$0xff]
    %v808 = vld [vmem:[#allocation9 + $0x3a8] sm:$0xff]
    %v809 = vld [vmem:[#allocation9 + $0x3b0] sm:$0xff]
    %v810 = vld [vmem:[#allocation9 + $0x3b8] sm:$0xff]
    %v811 = vld [vmem:[#allocation9 + $0x3c0] sm:$0xff]
    %v812 = vld [vmem:[#allocation9 + $0x3c8] sm:$0xff]
    %v813 = vld [vmem:[#allocation9 + $0x3d0] sm:$0xff]
    %v814 = vld [vmem:[#allocation9 + $0x3d8] sm:$0xff]
    %v815 = vld [vmem:[#allocation9 + $0x3e0] sm:$0xff]
    %v816 = vld [vmem:[#allocation9 + $0x3e8] sm:$0xff]
    %v817 = vld [vmem:[#allocation9 + $0x3f0] sm:$0xff]
    %v818 = vld [vmem:[#allocation9 + $0x3f8] sm:$0xff]
    %v819 = vld [vmem:[%s5] sm:$0xf]
    %v821 = vlaneseq
    %v822 = vshrl.u32 %v821, 7
    %v823 = vsub.s32 0, %v822
    %v824 = vrot.slane %v819, %v823
    %v825 = vlaneseq
    %v826 = vshrl.u32 %v825, 7
    %v827 = vsub.s32 1, %v826
    %v828 = vrot.slane %v819, %v827
    %v829 = vlaneseq
    %v830 = vshrl.u32 %v829, 7
    %v831 = vsub.s32 2, %v830
    %v832 = vrot.slane %v819, %v831
    %v833 = vlaneseq
    %v834 = vshrl.u32 %v833, 7
    %v835 = vsub.s32 3, %v834
    %v836 = vrot.slane %v819, %v835
    %841 = vmatprep.subr.mxu0 %v692
    %842 = vmatpush1.msra.mxu0 %v691
    %843 = vmatprep.subr.mxu0 %v696
    %844 = vmatpush1.msra.mxu0 %v695
    %845 = vmatprep.subr.mxu0 %v700
    %846 = vmatpush1.msra.mxu0 %v699
    %847 = vmatprep.subr.mxu0 %v704
    %848 = vmatpush1.msra.mxu0 %v703
    %849 = vmatprep.subr.mxu0 %v708
    %850 = vmatpush1.msra.mxu0 %v707
    %851 = vmatprep.subr.mxu0 %v712
    %852 = vmatpush1.msra.mxu0 %v711
    %853 = vmatprep.subr.mxu0 %v716
    %854 = vmatpush1.msra.mxu0 %v715
    %855 = vmatprep.subr.mxu0 %v720
    %856 = vmatpush1.msra.mxu0 %v719
    %857 = vmatprep.subr.mxu0 %v724
    %858 = vmatpush1.msra.mxu0 %v723
    %859 = vmatprep.subr.mxu0 %v728
    %860 = vmatpush1.msra.mxu0 %v727
    %861 = vmatprep.subr.mxu0 %v732
    %862 = vmatpush1.msra.mxu0 %v731
    %863 = vmatprep.subr.mxu0 %v736
    %864 = vmatpush1.msra.mxu0 %v735
    %865 = vmatprep.subr.mxu0 %v740
    %866 = vmatpush1.msra.mxu0 %v739
    %867 = vmatprep.subr.mxu0 %v744
    %868 = vmatpush1.msra.mxu0 %v743
    %869 = vmatprep.subr.mxu0 %v748
    %870 = vmatpush1.msra.mxu0 %v747
    %871 = vmatprep.subr.mxu0 %v752
    %872 = vmatpush1.msra.mxu0 %v751
    %873 = vmatprep.subr.mxu0 %v756
    %874 = vmatpush1.msra.mxu0 %v755
    %875 = vmatprep.subr.mxu0 %v760
    %876 = vmatpush1.msra.mxu0 %v759
    %877 = vmatprep.subr.mxu0 %v764
    %878 = vmatpush1.msra.mxu0 %v763
    %879 = vmatprep.subr.mxu0 %v768
    %880 = vmatpush1.msra.mxu0 %v767
    %881 = vmatprep.subr.mxu0 %v772
    %882 = vmatpush1.msra.mxu0 %v771
    %883 = vmatprep.subr.mxu0 %v776
    %884 = vmatpush1.msra.mxu0 %v775
    %885 = vmatprep.subr.mxu0 %v780
    %886 = vmatpush1.msra.mxu0 %v779
    %887 = vmatprep.subr.mxu0 %v784
    %888 = vmatpush1.msra.mxu0 %v783
    %889 = vmatprep.subr.mxu0 %v788
    %890 = vmatpush1.msra.mxu0 %v787
    %891 = vmatprep.subr.mxu0 %v792
    %892 = vmatpush1.msra.mxu0 %v791
    %893 = vmatprep.subr.mxu0 %v796
    %894 = vmatpush1.msra.mxu0 %v795
    %895 = vmatprep.subr.mxu0 %v800
    %896 = vmatpush1.msra.mxu0 %v799
    %897 = vmatprep.subr.mxu0 %v804
    %898 = vmatpush1.msra.mxu0 %v803
    %899 = vmatprep.subr.mxu0 %v808
    %900 = vmatpush1.msra.mxu0 %v807
    %901 = vmatprep.subr.mxu0 %v812
    %902 = vmatpush1.msra.mxu0 %v811
    %903 = vmatprep.subr.mxu0 %v816
    %904 = vmatpush1.msra.mxu0 %v815
    %905 = vmatprep.mubr.f32.mxu0 0.0
    %906 = vmatmul.mubr.f32.gmra.mrb[0].mxu0 %v690
    %v907 = vpop.f32.mrb[0].mxu0
    %v908 = vadd.f32 %v824, %v907
    %v909 = vpop.f32.mrb[0].mxu0
    %v910 = vadd.f32 %v828, %v909
    %911 = vdwg.mxu0
    %912 = vmatprep.subr.mxu0 %v694
    %913 = vmatpush1.msra.mxu0 %v693
    %914 = vmatprep.subr.mxu0 %v698
    %915 = vmatpush1.msra.mxu0 %v697
    %916 = vmatprep.subr.mxu0 %v702
    %917 = vmatpush1.msra.mxu0 %v701
    %918 = vmatprep.subr.mxu0 %v706
    %919 = vmatpush1.msra.mxu0 %v705
    %920 = vmatprep.subr.mxu0 %v710
    %921 = vmatpush1.msra.mxu0 %v709
    %922 = vmatprep.subr.mxu0 %v714
    %923 = vmatpush1.msra.mxu0 %v713
    %924 = vmatprep.subr.mxu0 %v718
    %925 = vmatpush1.msra.mxu0 %v717
    %926 = vmatprep.subr.mxu0 %v722
    %927 = vmatpush1.msra.mxu0 %v721
    %928 = vmatprep.subr.mxu0 %v726
    %929 = vmatpush1.msra.mxu0 %v725
    %930 = vmatprep.subr.mxu0 %v730
    %931 = vmatpush1.msra.mxu0 %v729
    %932 = vmatprep.subr.mxu0 %v734
    %933 = vmatpush1.msra.mxu0 %v733
    %934 = vmatprep.subr.mxu0 %v738
    %935 = vmatpush1.msra.mxu0 %v737
    %936 = vmatprep.subr.mxu0 %v742
    %937 = vmatpush1.msra.mxu0 %v741
    %938 = vmatprep.subr.mxu0 %v746
    %939 = vmatpush1.msra.mxu0 %v745
    %940 = vmatprep.subr.mxu0 %v750
    %941 = vmatpush1.msra.mxu0 %v749
    %942 = vmatprep.subr.mxu0 %v754
    %943 = vmatpush1.msra.mxu0 %v753
    %944 = vmatprep.subr.mxu0 %v758
    %945 = vmatpush1.msra.mxu0 %v757
    %946 = vmatprep.subr.mxu0 %v762
    %947 = vmatpush1.msra.mxu0 %v761
    %948 = vmatprep.subr.mxu0 %v766
    %949 = vmatpush1.msra.mxu0 %v765
    %950 = vmatprep.subr.mxu0 %v770
    %951 = vmatpush1.msra.mxu0 %v769
    %952 = vmatprep.subr.mxu0 %v774
    %953 = vmatpush1.msra.mxu0 %v773
    %954 = vmatprep.subr.mxu0 %v778
    %955 = vmatpush1.msra.mxu0 %v777
    %956 = vmatprep.subr.mxu0 %v782
    %957 = vmatpush1.msra.mxu0 %v781
    %958 = vmatprep.subr.mxu0 %v786
    %959 = vmatpush1.msra.mxu0 %v785
    %960 = vmatprep.subr.mxu0 %v790
    %961 = vmatpush1.msra.mxu0 %v789
    %962 = vmatprep.subr.mxu0 %v794
    %963 = vmatpush1.msra.mxu0 %v793
    %964 = vmatprep.subr.mxu0 %v798
    %965 = vmatpush1.msra.mxu0 %v797
    %966 = vmatprep.subr.mxu0 %v802
    %967 = vmatpush1.msra.mxu0 %v801
    %968 = vmatprep.subr.mxu0 %v806
    %969 = vmatpush1.msra.mxu0 %v805
    %970 = vmatprep.subr.mxu0 %v810
    %971 = vmatpush1.msra.mxu0 %v809
    %972 = vmatprep.subr.mxu0 %v814
    %973 = vmatpush1.msra.mxu0 %v813
    %974 = vmatprep.subr.mxu0 %v818
    %975 = vmatpush1.msra.mxu0 %v817
    %976 = vmatprep.mubr.f32.mxu0 0.0
    %977 = vmatmul.mubr.f32.gmra.mrb[0].mxu0 %v690
    %v978 = vpop.f32.mrb[0].mxu0
    %v979 = vadd.f32 %v832, %v978
    %v980 = vpop.f32.mrb[0].mxu0
    %v981 = vadd.f32 %v836, %v980
    %982 = vdwg.mxu0
    %v983 = vxor.u32 %v908, 2147483648
    %v984 = vmul.f32 %v983, 1.442695
    %v985 = vpow.pop %v984
    %v986 = vadd.f32 %v985, 1.0
    %v987 = vrcp.pop %v986
    %v988 = vmul.f32 1.0, %v987
    %v989 = vxor.u32 %v910, 2147483648
    %v990 = vmul.f32 %v989, 1.442695
    %v991 = vpow.pop %v990
    %v992 = vadd.f32 %v991, 1.0
    %v993 = vrcp.pop %v992
    %v994 = vmul.f32 1.0, %v993
    %v995 = vtanh.pop %v979
    %v996 = vxor.u32 %v981, 2147483648
    %v997 = vmul.f32 %v996, 1.442695
    %v998 = vpow.pop %v997
    %v999 = vadd.f32 %v998, 1.0
    %v1000 = vrcp.pop %v999
    %v1001 = vmul.f32 1.0, %v1000
    %v1002 = vmul.f32 %v994, 0.0
    %v1003 = vmul.f32 %v988, %v995
    %v1004 = vadd.f32 %v1002, %v1003
    %v1005 = vtanh.pop %v1004
    %v1006 = vmul.f32 %v1001, %v1005
    %s1007 = smul.u32 1, 4
    %s1008 = smul.addr %s1007, 8
    %s1009 = scalar_lea.vmem [#allocation2], %s1008
    %v1010 = vld [vmem:[%s1009] sm:$0xff]
    %v1011 = vld [vmem:[%s1009 + $0x8] sm:$0xff]
    %v1012 = vld [vmem:[%s1009 + $0x10] sm:$0xff]
    %v1013 = vld [vmem:[%s1009 + $0x18] sm:$0xff]
    %1014 = vmatprep.subr.mxu0 %v458
    %1015 = vmatpush1.msra.mxu0 %v457
    %1016 = vmatprep.subr.mxu0 %v462
    %1017 = vmatpush1.msra.mxu0 %v461
    %1018 = vmatprep.subr.mxu0 %v466
    %1019 = vmatpush1.msra.mxu0 %v465
    %1020 = vmatprep.subr.mxu0 %v470
    %1021 = vmatpush1.msra.mxu0 %v469
    %1022 = vmatprep.subr.mxu0 %v474
    %1023 = vmatpush1.msra.mxu0 %v473
    %1024 = vmatprep.subr.mxu0 %v478
    %1025 = vmatpush1.msra.mxu0 %v477
    %1026 = vmatprep.subr.mxu0 %v482
    %1027 = vmatpush1.msra.mxu0 %v481
    %1028 = vmatprep.subr.mxu0 %v486
    %1029 = vmatpush1.msra.mxu0 %v485
    %1030 = vmatprep.subr.mxu0 %v490
    %1031 = vmatpush1.msra.mxu0 %v489
    %1032 = vmatprep.subr.mxu0 %v494
    %1033 = vmatpush1.msra.mxu0 %v493
    %1034 = vmatprep.subr.mxu0 %v498
    %1035 = vmatpush1.msra.mxu0 %v497
    %1036 = vmatprep.subr.mxu0 %v502
    %1037 = vmatpush1.msra.mxu0 %v501
    %1038 = vmatprep.subr.mxu0 %v506
    %1039 = vmatpush1.msra.mxu0 %v505
    %1040 = vmatprep.subr.mxu0 %v510
    %1041 = vmatpush1.msra.mxu0 %v509
    %1042 = vmatprep.subr.mxu0 %v514
    %1043 = vmatpush1.msra.mxu0 %v513
    %1044 = vmatprep.subr.mxu0 %v518
    %1045 = vmatpush1.msra.mxu0 %v517
    %1046 = vmatprep.subr.mxu0 0.0
    %1047 = vmatpush1.msra.mxu0 0.0
    %1048 = vmatprep.subr.mxu0 0.0
    %1049 = vmatpush1.msra.mxu0 0.0
    %1050 = vmatprep.subr.mxu0 0.0
    %1051 = vmatpush1.msra.mxu0 0.0
    %1052 = vmatprep.subr.mxu0 0.0
    %1053 = vmatpush1.msra.mxu0 0.0
    %1054 = vmatprep.subr.mxu0 0.0
    %1055 = vmatpush1.msra.mxu0 0.0
    %1056 = vmatprep.subr.mxu0 0.0
    %1057 = vmatpush1.msra.mxu0 0.0
    %1058 = vmatprep.subr.mxu0 0.0
    %1059 = vmatpush1.msra.mxu0 0.0
    %1060 = vmatprep.subr.mxu0 0.0
    %1061 = vmatpush1.msra.mxu0 0.0
    %1062 = vmatprep.subr.mxu0 0.0
    %1063 = vmatpush1.msra.mxu0 0.0
    %1064 = vmatprep.subr.mxu0 0.0
    %1065 = vmatpush1.msra.mxu0 0.0
    %1066 = vmatprep.subr.mxu0 0.0
    %1067 = vmatpush1.msra.mxu0 0.0
    %1068 = vmatprep.subr.mxu0 0.0
    %1069 = vmatpush1.msra.mxu0 0.0
    %1070 = vmatprep.subr.mxu0 0.0
    %1071 = vmatpush1.msra.mxu0 0.0
    %1072 = vmatprep.subr.mxu0 0.0
    %1073 = vmatpush1.msra.mxu0 0.0
    %1074 = vmatprep.subr.mxu0 0.0
    %1075 = vmatpush1.msra.mxu0 0.0
    %1076 = vmatprep.subr.mxu0 0.0
    %1077 = vmatpush1.msra.mxu0 0.0
    %1078 = vmatprep.mubr.f32.mxu0 0.0
    %1079 = vmatmul.mubr.f32.gmra.mrb[0].mxu0 %v690
    %v1080 = vpop.f32.mrb[0].mxu0
    %v1081 = vadd.f32 0.0, %v1080
    %v1082 = vpop.f32.mrb[0].mxu0
    %v1083 = vadd.f32 0.0, %v1082
    %1084 = vdwg.mxu0
    %1085 = vmatprep.subr.mxu0 %v460
    %1086 = vmatpush1.msra.mxu0 %v459
    %1087 = vmatprep.subr.mxu0 %v464
    %1088 = vmatpush1.msra.mxu0 %v463
    %1089 = vmatprep.subr.mxu0 %v468
    %1090 = vmatpush1.msra.mxu0 %v467
    %1091 = vmatprep.subr.mxu0 %v472
    %1092 = vmatpush1.msra.mxu0 %v471
    %1093 = vmatprep.subr.mxu0 %v476
    %1094 = vmatpush1.msra.mxu0 %v475
    %1095 = vmatprep.subr.mxu0 %v480
    %1096 = vmatpush1.msra.mxu0 %v479
    %1097 = vmatprep.subr.mxu0 %v484
    %1098 = vmatpush1.msra.mxu0 %v483
    %1099 = vmatprep.subr.mxu0 %v488
    %1100 = vmatpush1.msra.mxu0 %v487
    %1101 = vmatprep.subr.mxu0 %v492
    %1102 = vmatpush1.msra.mxu0 %v491
    %1103 = vmatprep.subr.mxu0 %v496
    %1104 = vmatpush1.msra.mxu0 %v495
    %1105 = vmatprep.subr.mxu0 %v500
    %1106 = vmatpush1.msra.mxu0 %v499
    %1107 = vmatprep.subr.mxu0 %v504
    %1108 = vmatpush1.msra.mxu0 %v503
    %1109 = vmatprep.subr.mxu0 %v508
    %1110 = vmatpush1.msra.mxu0 %v507
    %1111 = vmatprep.subr.mxu0 %v512
    %1112 = vmatpush1.msra.mxu0 %v511
    %1113 = vmatprep.subr.mxu0 %v516
    %1114 = vmatpush1.msra.mxu0 %v515
    %1115 = vmatprep.subr.mxu0 %v520
    %1116 = vmatpush1.msra.mxu0 %v519
    %1117 = vmatprep.subr.mxu0 0.0
    %1118 = vmatpush1.msra.mxu0 0.0
    %1119 = vmatprep.subr.mxu0 0.0
    %1120 = vmatpush1.msra.mxu0 0.0
    %1121 = vmatprep.subr.mxu0 0.0
    %1122 = vmatpush1.msra.mxu0 0.0
    %1123 = vmatprep.subr.mxu0 0.0
    %1124 = vmatpush1.msra.mxu0 0.0
    %1125 = vmatprep.subr.mxu0 0.0
    %1126 = vmatpush1.msra.mxu0 0.0
    %1127 = vmatprep.subr.mxu0 0.0
    %1128 = vmatpush1.msra.mxu0 0.0
    %1129 = vmatprep.subr.mxu0 0.0
    %1130 = vmatpush1.msra.mxu0 0.0
    %1131 = vmatprep.subr.mxu0 0.0
    %1132 = vmatpush1.msra.mxu0 0.0
    %1133 = vmatprep.subr.mxu0 0.0
    %1134 = vmatpush1.msra.mxu0 0.0
    %1135 = vmatprep.subr.mxu0 0.0
    %1136 = vmatpush1.msra.mxu0 0.0
    %1137 = vmatprep.subr.mxu0 0.0
    %1138 = vmatpush1.msra.mxu0 0.0
    %1139 = vmatprep.subr.mxu0 0.0
    %1140 = vmatpush1.msra.mxu0 0.0
    %1141 = vmatprep.subr.mxu0 0.0
    %1142 = vmatpush1.msra.mxu0 0.0
    %1143 = vmatprep.subr.mxu0 0.0
    %1144 = vmatpush1.msra.mxu0 0.0
    %1145 = vmatprep.subr.mxu0 0.0
    %1146 = vmatpush1.msra.mxu0 0.0
    %1147 = vmatprep.subr.mxu0 0.0
    %1148 = vmatpush1.msra.mxu0 0.0
    %1149 = vmatprep.mubr.f32.mxu0 0.0
    %1150 = vmatmul.mubr.f32.gmra.mrb[0].mxu0 %v690
    %v1151 = vpop.f32.mrb[0].mxu0
    %v1152 = vadd.f32 0.0, %v1151
    %v1153 = vpop.f32.mrb[0].mxu0
    %v1154 = vadd.f32 0.0, %v1153
    %1155 = vdwg.mxu0
    %v1156 = vadd.f32 %v1010, %v1081
    %v1157 = vadd.f32 %v1011, %v1083
    %v1158 = vadd.f32 %v1012, %v1152
    %v1159 = vadd.f32 %v1013, %v1154
    %v1160 = vxor.u32 %v1156, 2147483648
    %v1161 = vmul.f32 %v1160, 1.442695
    %v1162 = vpow.pop %v1161
    %v1163 = vadd.f32 %v1162, 1.0
    %v1164 = vrcp.pop %v1163
    %v1165 = vmul.f32 1.0, %v1164
    %v1166 = vxor.u32 %v1157, 2147483648
    %v1167 = vmul.f32 %v1166, 1.442695
    %v1168 = vpow.pop %v1167
    %v1169 = vadd.f32 %v1168, 1.0
    %v1170 = vrcp.pop %v1169
    %v1171 = vmul.f32 1.0, %v1170
    %v1172 = vtanh.pop %v1158
    %v1173 = vxor.u32 %v1159, 2147483648
    %v1174 = vmul.f32 %v1173, 1.442695
    %v1175 = vpow.pop %v1174
    %v1176 = vadd.f32 %v1175, 1.0
    %v1177 = vrcp.pop %v1176
    %v1178 = vmul.f32 1.0, %v1177
    %v1179 = vmul.f32 %v1171, %v688
    %v1180 = vmul.f32 %v1165, %v1172
    %v1181 = vadd.f32 %v1179, %v1180
    %v1182 = vtanh.pop %v1181
    %v1183 = vmul.f32 %v1178, %v1182
    %1184 = vmatprep.subr.mxu0 %v692
    %1185 = vmatpush1.msra.mxu0 %v691
    %1186 = vmatprep.subr.mxu0 %v696
    %1187 = vmatpush1.msra.mxu0 %v695
    %1188 = vmatprep.subr.mxu0 %v700
    %1189 = vmatpush1.msra.mxu0 %v699
    %1190 = vmatprep.subr.mxu0 %v704
    %1191 = vmatpush1.msra.mxu0 %v703
    %1192 = vmatprep.subr.mxu0 %v708
    %1193 = vmatpush1.msra.mxu0 %v707
    %1194 = vmatprep.subr.mxu0 %v712
    %1195 = vmatpush1.msra.mxu0 %v711
    %1196 = vmatprep.subr.mxu0 %v716
    %1197 = vmatpush1.msra.mxu0 %v715
    %1198 = vmatprep.subr.mxu0 %v720
    %1199 = vmatpush1.msra.mxu0 %v719
    %1200 = vmatprep.subr.mxu0 %v724
    %1201 = vmatpush1.msra.mxu0 %v723
    %1202 = vmatprep.subr.mxu0 %v728
    %1203 = vmatpush1.msra.mxu0 %v727
    %1204 = vmatprep.subr.mxu0 %v732
    %1205 = vmatpush1.msra.mxu0 %v731
    %1206 = vmatprep.subr.mxu0 %v736
    %1207 = vmatpush1.msra.mxu0 %v735
    %1208 = vmatprep.subr.mxu0 %v740
    %1209 = vmatpush1.msra.mxu0 %v739
    %1210 = vmatprep.subr.mxu0 %v744
    %1211 = vmatpush1.msra.mxu0 %v743
    %1212 = vmatprep.subr.mxu0 %v748
    %1213 = vmatpush1.msra.mxu0 %v747
    %1214 = vmatprep.subr.mxu0 %v752
    %1215 = vmatpush1.msra.mxu0 %v751
    %1216 = vmatprep.subr.mxu0 %v756
    %1217 = vmatpush1.msra.mxu0 %v755
    %1218 = vmatprep.subr.mxu0 %v760
    %1219 = vmatpush1.msra.mxu0 %v759
    %1220 = vmatprep.subr.mxu0 %v764
    %1221 = vmatpush1.msra.mxu0 %v763
    %1222 = vmatprep.subr.mxu0 %v768
    %1223 = vmatpush1.msra.mxu0 %v767
    %1224 = vmatprep.subr.mxu0 %v772
    %1225 = vmatpush1.msra.mxu0 %v771
    %1226 = vmatprep.subr.mxu0 %v776
    %1227 = vmatpush1.msra.mxu0 %v775
    %1228 = vmatprep.subr.mxu0 %v780
    %1229 = vmatpush1.msra.mxu0 %v779
    %1230 = vmatprep.subr.mxu0 %v784
    %1231 = vmatpush1.msra.mxu0 %v783
    %1232 = vmatprep.subr.mxu0 %v788
    %1233 = vmatpush1.msra.mxu0 %v787
    %1234 = vmatprep.subr.mxu0 %v792
    %1235 = vmatpush1.msra.mxu0 %v791
    %1236 = vmatprep.subr.mxu0 %v796
    %1237 = vmatpush1.msra.mxu0 %v795
    %1238 = vmatprep.subr.mxu0 %v800
    %1239 = vmatpush1.msra.mxu0 %v799
    %1240 = vmatprep.subr.mxu0 %v804
    %1241 = vmatpush1.msra.mxu0 %v803
    %1242 = vmatprep.subr.mxu0 %v808
    %1243 = vmatpush1.msra.mxu0 %v807
    %1244 = vmatprep.subr.mxu0 %v812
    %1245 = vmatpush1.msra.mxu0 %v811
    %1246 = vmatprep.subr.mxu0 %v816
    %1247 = vmatpush1.msra.mxu0 %v815
    %1248 = vmatprep.mubr.f32.mxu0 %v1006
    %1249 = vmatmul.mubr.f32.gmra.mrb[0].mxu0 %v1183
    %v1250 = vpop.f32.mrb[0].mxu0
    %v1251 = vadd.f32 %v824, %v1250
    %v1252 = vpop.f32.mrb[0].mxu0
    %v1253 = vadd.f32 %v828, %v1252
    %1254 = vdwg.mxu0
    %1255 = vmatprep.subr.mxu0 %v694
    %1256 = vmatpush1.msra.mxu0 %v693
    %1257 = vmatprep.subr.mxu0 %v698
    %1258 = vmatpush1.msra.mxu0 %v697
    %1259 = vmatprep.subr.mxu0 %v702
    %1260 = vmatpush1.msra.mxu0 %v701
    %1261 = vmatprep.subr.mxu0 %v706
    %1262 = vmatpush1.msra.mxu0 %v705
    %1263 = vmatprep.subr.mxu0 %v710
    %1264 = vmatpush1.msra.mxu0 %v709
    %1265 = vmatprep.subr.mxu0 %v714
    %1266 = vmatpush1.msra.mxu0 %v713
    %1267 = vmatprep.subr.mxu0 %v718
    %1268 = vmatpush1.msra.mxu0 %v717
    %1269 = vmatprep.subr.mxu0 %v722
    %1270 = vmatpush1.msra.mxu0 %v721
    %1271 = vmatprep.subr.mxu0 %v726
    %1272 = vmatpush1.msra.mxu0 %v725
    %1273 = vmatprep.subr.mxu0 %v730
    %1274 = vmatpush1.msra.mxu0 %v729
    %1275 = vmatprep.subr.mxu0 %v734
    %1276 = vmatpush1.msra.mxu0 %v733
    %1277 = vmatprep.subr.mxu0 %v738
    %1278 = vmatpush1.msra.mxu0 %v737
    %1279 = vmatprep.subr.mxu0 %v742
    %1280 = vmatpush1.msra.mxu0 %v741
    %1281 = vmatprep.subr.mxu0 %v746
    %1282 = vmatpush1.msra.mxu0 %v745
    %1283 = vmatprep.subr.mxu0 %v750
    %1284 = vmatpush1.msra.mxu0 %v749
    %1285 = vmatprep.subr.mxu0 %v754
    %1286 = vmatpush1.msra.mxu0 %v753
    %1287 = vmatprep.subr.mxu0 %v758
    %1288 = vmatpush1.msra.mxu0 %v757
    %1289 = vmatprep.subr.mxu0 %v762
    %1290 = vmatpush1.msra.mxu0 %v761
    %1291 = vmatprep.subr.mxu0 %v766
    %1292 = vmatpush1.msra.mxu0 %v765
    %1293 = vmatprep.subr.mxu0 %v770
    %1294 = vmatpush1.msra.mxu0 %v769
    %1295 = vmatprep.subr.mxu0 %v774
    %1296 = vmatpush1.msra.mxu0 %v773
    %1297 = vmatprep.subr.mxu0 %v778
    %1298 = vmatpush1.msra.mxu0 %v777
    %1299 = vmatprep.subr.mxu0 %v782
    %1300 = vmatpush1.msra.mxu0 %v781
    %1301 = vmatprep.subr.mxu0 %v786
    %1302 = vmatpush1.msra.mxu0 %v785
    %1303 = vmatprep.subr.mxu0 %v790
    %1304 = vmatpush1.msra.mxu0 %v789
    %1305 = vmatprep.subr.mxu0 %v794
    %1306 = vmatpush1.msra.mxu0 %v793
    %1307 = vmatprep.subr.mxu0 %v798
    %1308 = vmatpush1.msra.mxu0 %v797
    %1309 = vmatprep.subr.mxu0 %v802
    %1310 = vmatpush1.msra.mxu0 %v801
    %1311 = vmatprep.subr.mxu0 %v806
    %1312 = vmatpush1.msra.mxu0 %v805
    %1313 = vmatprep.subr.mxu0 %v810
    %1314 = vmatpush1.msra.mxu0 %v809
    %1315 = vmatprep.subr.mxu0 %v814
    %1316 = vmatpush1.msra.mxu0 %v813
    %1317 = vmatprep.subr.mxu0 %v818
    %1318 = vmatpush1.msra.mxu0 %v817
    %1319 = vmatprep.mubr.f32.mxu0 %v1006
    %1320 = vmatmul.mubr.f32.gmra.mrb[0].mxu0 %v1183
    %v1321 = vpop.f32.mrb[0].mxu0
    %v1322 = vadd.f32 %v832, %v1321
    %v1323 = vpop.f32.mrb[0].mxu0
    %v1324 = vadd.f32 %v836, %v1323
    %1325 = vdwg.mxu0
    %v1326 = vxor.u32 %v1251, 2147483648
    %v1327 = vmul.f32 %v1326, 1.442695
    %v1328 = vpow.pop %v1327
    %v1329 = vadd.f32 %v1328, 1.0
    %v1330 = vrcp.pop %v1329
    %v1331 = vmul.f32 1.0, %v1330
    %v1332 = vxor.u32 %v1253, 2147483648
    %v1333 = vmul.f32 %v1332, 1.442695
    %v1334 = vpow.pop %v1333
    %v1335 = vadd.f32 %v1334, 1.0
    %v1336 = vrcp.pop %v1335
    %v1337 = vmul.f32 1.0, %v1336
    %v1338 = vtanh.pop %v1322
    %v1339 = vxor.u32 %v1324, 2147483648
    %v1340 = vmul.f32 %v1339, 1.442695
    %v1341 = vpow.pop %v1340
    %v1342 = vadd.f32 %v1341, 1.0
    %v1343 = vrcp.pop %v1342
    %v1344 = vmul.f32 1.0, %v1343
    %v1345 = vmul.f32 %v1337, %v1004
    %v1346 = vmul.f32 %v1331, %v1338
    %v1347 = vadd.f32 %v1345, %v1346
    %v1348 = vtanh.pop %v1347
    %v1349 = vmul.f32 %v1344, %v1348
    %s1350 = smul.u32 2, 4
    %s1351 = smul.addr %s1350, 8
    %s1352 = scalar_lea.vmem [#allocation2], %s1351
    %v1353 = vld [vmem:[%s1352] sm:$0xff]
    %v1354 = vld [vmem:[%s1352 + $0x8] sm:$0xff]
    %v1355 = vld [vmem:[%s1352 + $0x10] sm:$0xff]
    %v1356 = vld [vmem:[%s1352 + $0x18] sm:$0xff]
    %1357 = vmatprep.subr.mxu0 %v458
    %1358 = vmatpush1.msra.mxu0 %v457
    %1359 = vmatprep.subr.mxu0 %v462
    %1360 = vmatpush1.msra.mxu0 %v461
    %1361 = vmatprep.subr.mxu0 %v466
    %1362 = vmatpush1.msra.mxu0 %v465
    %1363 = vmatprep.subr.mxu0 %v470
    %1364 = vmatpush1.msra.mxu0 %v469
    %1365 = vmatprep.subr.mxu0 %v474
    %1366 = vmatpush1.msra.mxu0 %v473
    %1367 = vmatprep.subr.mxu0 %v478
    %1368 = vmatpush1.msra.mxu0 %v477
    %1369 = vmatprep.subr.mxu0 %v482
    %1370 = vmatpush1.msra.mxu0 %v481
    %1371 = vmatprep.subr.mxu0 %v486
    %1372 = vmatpush1.msra.mxu0 %v485
    %1373 = vmatprep.subr.mxu0 %v490
    %1374 = vmatpush1.msra.mxu0 %v489
    %1375 = vmatprep.subr.mxu0 %v494
    %1376 = vmatpush1.msra.mxu0 %v493
    %1377 = vmatprep.subr.mxu0 %v498
    %1378 = vmatpush1.msra.mxu0 %v497
    %1379 = vmatprep.subr.mxu0 %v502
    %1380 = vmatpush1.msra.mxu0 %v501
    %1381 = vmatprep.subr.mxu0 %v506
    %1382 = vmatpush1.msra.mxu0 %v505
    %1383 = vmatprep.subr.mxu0 %v510
    %1384 = vmatpush1.msra.mxu0 %v509
    %1385 = vmatprep.subr.mxu0 %v514
    %1386 = vmatpush1.msra.mxu0 %v513
    %1387 = vmatprep.subr.mxu0 %v518
    %1388 = vmatpush1.msra.mxu0 %v517
    %1389 = vmatprep.subr.mxu0 0.0
    %1390 = vmatpush1.msra.mxu0 0.0
    %1391 = vmatprep.subr.mxu0 0.0
    %1392 = vmatpush1.msra.mxu0 0.0
    %1393 = vmatprep.subr.mxu0 0.0
    %1394 = vmatpush1.msra.mxu0 0.0
    %1395 = vmatprep.subr.mxu0 0.0
    %1396 = vmatpush1.msra.mxu0 0.0
    %1397 = vmatprep.subr.mxu0 0.0
    %1398 = vmatpush1.msra.mxu0 0.0
    %1399 = vmatprep.subr.mxu0 0.0
    %1400 = vmatpush1.msra.mxu0 0.0
    %1401 = vmatprep.subr.mxu0 0.0
    %1402 = vmatpush1.msra.mxu0 0.0
    %1403 = vmatprep.subr.mxu0 0.0
    %1404 = vmatpush1.msra.mxu0 0.0
    %1405 = vmatprep.subr.mxu0 0.0
    %1406 = vmatpush1.msra.mxu0 0.0
    %1407 = vmatprep.subr.mxu0 0.0
    %1408 = vmatpush1.msra.mxu0 0.0
    %1409 = vmatprep.subr.mxu0 0.0
    %1410 = vmatpush1.msra.mxu0 0.0
    %1411 = vmatprep.subr.mxu0 0.0
    %1412 = vmatpush1.msra.mxu0 0.0
    %1413 = vmatprep.subr.mxu0 0.0
    %1414 = vmatpush1.msra.mxu0 0.0
    %1415 = vmatprep.subr.mxu0 0.0
    %1416 = vmatpush1.msra.mxu0 0.0
    %1417 = vmatprep.subr.mxu0 0.0
    %1418 = vmatpush1.msra.mxu0 0.0
    %1419 = vmatprep.subr.mxu0 0.0
    %1420 = vmatpush1.msra.mxu0 0.0
    %1421 = vmatprep.mubr.f32.mxu0 0.0
    %1422 = vmatmul.mubr.f32.gmra.mrb[0].mxu0 %v1183
    %v1423 = vpop.f32.mrb[0].mxu0
    %v1424 = vadd.f32 0.0, %v1423
    %v1425 = vpop.f32.mrb[0].mxu0
    %v1426 = vadd.f32 0.0, %v1425
    %1427 = vdwg.mxu0
    %1428 = vmatprep.subr.mxu0 %v460
    %1429 = vmatpush1.msra.mxu0 %v459
    %1430 = vmatprep.subr.mxu0 %v464
    %1431 = vmatpush1.msra.mxu0 %v463
    %1432 = vmatprep.subr.mxu0 %v468
    %1433 = vmatpush1.msra.mxu0 %v467
    %1434 = vmatprep.subr.mxu0 %v472
    %1435 = vmatpush1.msra.mxu0 %v471
    %1436 = vmatprep.subr.mxu0 %v476
    %1437 = vmatpush1.msra.mxu0 %v475
    %1438 = vmatprep.subr.mxu0 %v480
    %1439 = vmatpush1.msra.mxu0 %v479
    %1440 = vmatprep.subr.mxu0 %v484
    %1441 = vmatpush1.msra.mxu0 %v483
    %1442 = vmatprep.subr.mxu0 %v488
    %1443 = vmatpush1.msra.mxu0 %v487
    %1444 = vmatprep.subr.mxu0 %v492
    %1445 = vmatpush1.msra.mxu0 %v491
    %1446 = vmatprep.subr.mxu0 %v496
    %1447 = vmatpush1.msra.mxu0 %v495
    %1448 = vmatprep.subr.mxu0 %v500
    %1449 = vmatpush1.msra.mxu0 %v499
    %1450 = vmatprep.subr.mxu0 %v504
    %1451 = vmatpush1.msra.mxu0 %v503
    %1452 = vmatprep.subr.mxu0 %v508
    %1453 = vmatpush1.msra.mxu0 %v507
    %1454 = vmatprep.subr.mxu0 %v512
    %1455 = vmatpush1.msra.mxu0 %v511
    %1456 = vmatprep.subr.mxu0 %v516
    %1457 = vmatpush1.msra.mxu0 %v515
    %1458 = vmatprep.subr.mxu0 %v520
    %1459 = vmatpush1.msra.mxu0 %v519
    %1460 = vmatprep.subr.mxu0 0.0
    %1461 = vmatpush1.msra.mxu0 0.0
    %1462 = vmatprep.subr.mxu0 0.0
    %1463 = vmatpush1.msra.mxu0 0.0
    %1464 = vmatprep.subr.mxu0 0.0
    %1465 = vmatpush1.msra.mxu0 0.0
    %1466 = vmatprep.subr.mxu0 0.0
    %1467 = vmatpush1.msra.mxu0 0.0
    %1468 = vmatprep.subr.mxu0 0.0
    %1469 = vmatpush1.msra.mxu0 0.0
    %1470 = vmatprep.subr.mxu0 0.0
    %1471 = vmatpush1.msra.mxu0 0.0
    %1472 = vmatprep.subr.mxu0 0.0
    %1473 = vmatpush1.msra.mxu0 0.0
    %1474 = vmatprep.subr.mxu0 0.0
    %1475 = vmatpush1.msra.mxu0 0.0
    %1476 = vmatprep.subr.mxu0 0.0
    %1477 = vmatpush1.msra.mxu0 0.0
    %1478 = vmatprep.subr.mxu0 0.0
    %1479 = vmatpush1.msra.mxu0 0.0
    %1480 = vmatprep.subr.mxu0 0.0
    %1481 = vmatpush1.msra.mxu0 0.0
    %1482 = vmatprep.subr.mxu0 0.0
    %1483 = vmatpush1.msra.mxu0 0.0
    %1484 = vmatprep.subr.mxu0 0.0
    %1485 = vmatpush1.msra.mxu0 0.0
    %1486 = vmatprep.subr.mxu0 0.0
    %1487 = vmatpush1.msra.mxu0 0.0
    %1488 = vmatprep.subr.mxu0 0.0
    %1489 = vmatpush1.msra.mxu0 0.0
    %1490 = vmatprep.subr.mxu0 0.0
    %1491 = vmatpush1.msra.mxu0 0.0
    %1492 = vmatprep.mubr.f32.mxu0 0.0
    %1493 = vmatmul.mubr.f32.gmra.mrb[0].mxu0 %v1183
    %v1494 = vpop.f32.mrb[0].mxu0
    %v1495 = vadd.f32 0.0, %v1494
    %v1496 = vpop.f32.mrb[0].mxu0
    %v1497 = vadd.f32 0.0, %v1496
    %1498 = vdwg.mxu0
    %v1499 = vadd.f32 %v1353, %v1424
    %v1500 = vadd.f32 %v1354, %v1426
    %v1501 = vadd.f32 %v1355, %v1495
    %v1502 = vadd.f32 %v1356, %v1497
    %v1503 = vxor.u32 %v1499, 2147483648
    %v1504 = vmul.f32 %v1503, 1.442695
    %v1505 = vpow.pop %v1504
    %v1506 = vadd.f32 %v1505, 1.0
    %v1507 = vrcp.pop %v1506
    %v1508 = vmul.f32 1.0, %v1507
    %v1509 = vxor.u32 %v1500, 2147483648
    %v1510 = vmul.f32 %v1509, 1.442695
    %v1511 = vpow.pop %v1510
    %v1512 = vadd.f32 %v1511, 1.0
    %v1513 = vrcp.pop %v1512
    %v1514 = vmul.f32 1.0, %v1513
    %v1515 = vtanh.pop %v1501
    %v1516 = vxor.u32 %v1502, 2147483648
    %v1517 = vmul.f32 %v1516, 1.442695
    %v1518 = vpow.pop %v1517
    %v1519 = vadd.f32 %v1518, 1.0
    %v1520 = vrcp.pop %v1519
    %v1521 = vmul.f32 1.0, %v1520
    %v1522 = vmul.f32 %v1514, %v1181
    %v1523 = vmul.f32 %v1508, %v1515
    %v1524 = vadd.f32 %v1522, %v1523
    %v1525 = vtanh.pop %v1524
    %v1526 = vmul.f32 %v1521, %v1525
    %1527 = vmatprep.subr.mxu0 %v692
    %1528 = vmatpush1.msra.mxu0 %v691
    %1529 = vmatprep.subr.mxu0 %v696
    %1530 = vmatpush1.msra.mxu0 %v695
    %1531 = vmatprep.subr.mxu0 %v700
    %1532 = vmatpush1.msra.mxu0 %v699
    %1533 = vmatprep.subr.mxu0 %v704
    %1534 = vmatpush1.msra.mxu0 %v703
    %1535 = vmatprep.subr.mxu0 %v708
    %1536 = vmatpush1.msra.mxu0 %v707
    %1537 = vmatprep.subr.mxu0 %v712
    %1538 = vmatpush1.msra.mxu0 %v711
    %1539 = vmatprep.subr.mxu0 %v716
    %1540 = vmatpush1.msra.mxu0 %v715
    %1541 = vmatprep.subr.mxu0 %v720
    %1542 = vmatpush1.msra.mxu0 %v719
    %1543 = vmatprep.subr.mxu0 %v724
    %1544 = vmatpush1.msra.mxu0 %v723
    %1545 = vmatprep.subr.mxu0 %v728
    %1546 = vmatpush1.msra.mxu0 %v727
    %1547 = vmatprep.subr.mxu0 %v732
    %1548 = vmatpush1.msra.mxu0 %v731
    %1549 = vmatprep.subr.mxu0 %v736
    %1550 = vmatpush1.msra.mxu0 %v735
    %1551 = vmatprep.subr.mxu0 %v740
    %1552 = vmatpush1.msra.mxu0 %v739
    %1553 = vmatprep.subr.mxu0 %v744
    %1554 = vmatpush1.msra.mxu0 %v743
    %1555 = vmatprep.subr.mxu0 %v748
    %1556 = vmatpush1.msra.mxu0 %v747
    %1557 = vmatprep.subr.mxu0 %v752
    %1558 = vmatpush1.msra.mxu0 %v751
    %1559 = vmatprep.subr.mxu0 %v756
    %1560 = vmatpush1.msra.mxu0 %v755
    %1561 = vmatprep.subr.mxu0 %v760
    %1562 = vmatpush1.msra.mxu0 %v759
    %1563 = vmatprep.subr.mxu0 %v764
    %1564 = vmatpush1.msra.mxu0 %v763
    %1565 = vmatprep.subr.mxu0 %v768
    %1566 = vmatpush1.msra.mxu0 %v767
    %1567 = vmatprep.subr.mxu0 %v772
    %1568 = vmatpush1.msra.mxu0 %v771
    %1569 = vmatprep.subr.mxu0 %v776
    %1570 = vmatpush1.msra.mxu0 %v775
    %1571 = vmatprep.subr.mxu0 %v780
    %1572 = vmatpush1.msra.mxu0 %v779
    %1573 = vmatprep.subr.mxu0 %v784
    %1574 = vmatpush1.msra.mxu0 %v783
    %1575 = vmatprep.subr.mxu0 %v788
    %1576 = vmatpush1.msra.mxu0 %v787
    %1577 = vmatprep.subr.mxu0 %v792
    %1578 = vmatpush1.msra.mxu0 %v791
    %1579 = vmatprep.subr.mxu0 %v796
    %1580 = vmatpush1.msra.mxu0 %v795
    %1581 = vmatprep.subr.mxu0 %v800
    %1582 = vmatpush1.msra.mxu0 %v799
    %1583 = vmatprep.subr.mxu0 %v804
    %1584 = vmatpush1.msra.mxu0 %v803
    %1585 = vmatprep.subr.mxu0 %v808
    %1586 = vmatpush1.msra.mxu0 %v807
    %1587 = vmatprep.subr.mxu0 %v812
    %1588 = vmatpush1.msra.mxu0 %v811
    %1589 = vmatprep.subr.mxu0 %v816
    %1590 = vmatpush1.msra.mxu0 %v815
    %1591 = vmatprep.mubr.f32.mxu0 %v1349
    %1592 = vmatmul.mubr.f32.gmra.mrb[0].mxu0 %v1526
    %v1593 = vpop.f32.mrb[0].mxu0
    %v1594 = vadd.f32 %v824, %v1593
    %v1595 = vpop.f32.mrb[0].mxu0
    %v1596 = vadd.f32 %v828, %v1595
    %1597 = vdwg.mxu0
    %1598 = vmatprep.subr.mxu0 %v694
    %1599 = vmatpush1.msra.mxu0 %v693
    %1600 = vmatprep.subr.mxu0 %v698
    %1601 = vmatpush1.msra.mxu0 %v697
    %1602 = vmatprep.subr.mxu0 %v702
    %1603 = vmatpush1.msra.mxu0 %v701
    %1604 = vmatprep.subr.mxu0 %v706
    %1605 = vmatpush1.msra.mxu0 %v705
    %1606 = vmatprep.subr.mxu0 %v710
    %1607 = vmatpush1.msra.mxu0 %v709
    %1608 = vmatprep.subr.mxu0 %v714
    %1609 = vmatpush1.msra.mxu0 %v713
    %1610 = vmatprep.subr.mxu0 %v718
    %1611 = vmatpush1.msra.mxu0 %v717
    %1612 = vmatprep.subr.mxu0 %v722
    %1613 = vmatpush1.msra.mxu0 %v721
    %1614 = vmatprep.subr.mxu0 %v726
    %1615 = vmatpush1.msra.mxu0 %v725
    %1616 = vmatprep.subr.mxu0 %v730
    %1617 = vmatpush1.msra.mxu0 %v729
    %1618 = vmatprep.subr.mxu0 %v734
    %1619 = vmatpush1.msra.mxu0 %v733
    %1620 = vmatprep.subr.mxu0 %v738
    %1621 = vmatpush1.msra.mxu0 %v737
    %1622 = vmatprep.subr.mxu0 %v742
    %1623 = vmatpush1.msra.mxu0 %v741
    %1624 = vmatprep.subr.mxu0 %v746
    %1625 = vmatpush1.msra.mxu0 %v745
    %1626 = vmatprep.subr.mxu0 %v750
    %1627 = vmatpush1.msra.mxu0 %v749
    %1628 = vmatprep.subr.mxu0 %v754
    %1629 = vmatpush1.msra.mxu0 %v753
    %1630 = vmatprep.subr.mxu0 %v758
    %1631 = vmatpush1.msra.mxu0 %v757
    %1632 = vmatprep.subr.mxu0 %v762
    %1633 = vmatpush1.msra.mxu0 %v761
    %1634 = vmatprep.subr.mxu0 %v766
    %1635 = vmatpush1.msra.mxu0 %v765
    %1636 = vmatprep.subr.mxu0 %v770
    %1637 = vmatpush1.msra.mxu0 %v769
    %1638 = vmatprep.subr.mxu0 %v774
    %1639 = vmatpush1.msra.mxu0 %v773
    %1640 = vmatprep.subr.mxu0 %v778
    %1641 = vmatpush1.msra.mxu0 %v777
    %1642 = vmatprep.subr.mxu0 %v782
    %1643 = vmatpush1.msra.mxu0 %v781
    %1644 = vmatprep.subr.mxu0 %v786
    %1645 = vmatpush1.msra.mxu0 %v785
    %1646 = vmatprep.subr.mxu0 %v790
    %1647 = vmatpush1.msra.mxu0 %v789
    %1648 = vmatprep.subr.mxu0 %v794
    %1649 = vmatpush1.msra.mxu0 %v793
    %1650 = vmatprep.subr.mxu0 %v798
    %1651 = vmatpush1.msra.mxu0 %v797
    %1652 = vmatprep.subr.mxu0 %v802
    %1653 = vmatpush1.msra.mxu0 %v801
    %1654 = vmatprep.subr.mxu0 %v806
    %1655 = vmatpush1.msra.mxu0 %v805
    %1656 = vmatprep.subr.mxu0 %v810
    %1657 = vmatpush1.msra.mxu0 %v809
    %1658 = vmatprep.subr.mxu0 %v814
    %1659 = vmatpush1.msra.mxu0 %v813
    %1660 = vmatprep.subr.mxu0 %v818
    %1661 = vmatpush1.msra.mxu0 %v817
    %1662 = vmatprep.mubr.f32.mxu0 %v1349
    %1663 = vmatmul.mubr.f32.gmra.mrb[0].mxu0 %v1526
    %v1664 = vpop.f32.mrb[0].mxu0
    %v1665 = vadd.f32 %v832, %v1664
    %v1666 = vpop.f32.mrb[0].mxu0
    %v1667 = vadd.f32 %v836, %v1666
    %1668 = vdwg.mxu0
    %v1669 = vxor.u32 %v1594, 2147483648
    %v1670 = vmul.f32 %v1669, 1.442695
    %v1671 = vpow.pop %v1670
    %v1672 = vadd.f32 %v1671, 1.0
    %v1673 = vrcp.pop %v1672
    %v1674 = vmul.f32 1.0, %v1673
    %v1675 = vxor.u32 %v1596, 2147483648
    %v1676 = vmul.f32 %v1675, 1.442695
    %v1677 = vpow.pop %v1676
    %v1678 = vadd.f32 %v1677, 1.0
    %v1679 = vrcp.pop %v1678
    %v1680 = vmul.f32 1.0, %v1679
    %v1681 = vtanh.pop %v1665
    %v1682 = vxor.u32 %v1667, 2147483648
    %v1683 = vmul.f32 %v1682, 1.442695
    %v1684 = vpow.pop %v1683
    %v1685 = vadd.f32 %v1684, 1.0
    %v1686 = vrcp.pop %v1685
    %v1687 = vmul.f32 1.0, %v1686
    %v1688 = vmul.f32 %v1680, %v1347
    %v1689 = vmul.f32 %v1674, %v1681
    %v1690 = vadd.f32 %v1688, %v1689
    %v1691 = vtanh.pop %v1690
    %v1692 = vmul.f32 %v1687, %v1691
    %s1693 = smul.u32 3, 4
    %s1694 = smul.addr %s1693, 8
    %s1695 = scalar_lea.vmem [#allocation2], %s1694
    %v1696 = vld [vmem:[%s1695] sm:$0xff]
    %v1697 = vld [vmem:[%s1695 + $0x8] sm:$0xff]
    %v1698 = vld [vmem:[%s1695 + $0x10] sm:$0xff]
    %v1699 = vld [vmem:[%s1695 + $0x18] sm:$0xff]
    %1700 = vmatprep.subr.mxu0 %v458
    %1701 = vmatpush1.msra.mxu0 %v457
    %1702 = vmatprep.subr.mxu0 %v462
    %1703 = vmatpush1.msra.mxu0 %v461
    %1704 = vmatprep.subr.mxu0 %v466
    %1705 = vmatpush1.msra.mxu0 %v465
    %1706 = vmatprep.subr.mxu0 %v470
    %1707 = vmatpush1.msra.mxu0 %v469
    %1708 = vmatprep.subr.mxu0 %v474
    %1709 = vmatpush1.msra.mxu0 %v473
    %1710 = vmatprep.subr.mxu0 %v478
    %1711 = vmatpush1.msra.mxu0 %v477
    %1712 = vmatprep.subr.mxu0 %v482
    %1713 = vmatpush1.msra.mxu0 %v481
    %1714 = vmatprep.subr.mxu0 %v486
    %1715 = vmatpush1.msra.mxu0 %v485
    %1716 = vmatprep.subr.mxu0 %v490
    %1717 = vmatpush1.msra.mxu0 %v489
    %1718 = vmatprep.subr.mxu0 %v494
    %1719 = vmatpush1.msra.mxu0 %v493
    %1720 = vmatprep.subr.mxu0 %v498
    %1721 = vmatpush1.msra.mxu0 %v497
    %1722 = vmatprep.subr.mxu0 %v502
    %1723 = vmatpush1.msra.mxu0 %v501
    %1724 = vmatprep.subr.mxu0 %v506
    %1725 = vmatpush1.msra.mxu0 %v505
    %1726 = vmatprep.subr.mxu0 %v510
    %1727 = vmatpush1.msra.mxu0 %v509
    %1728 = vmatprep.subr.mxu0 %v514
    %1729 = vmatpush1.msra.mxu0 %v513
    %1730 = vmatprep.subr.mxu0 %v518
    %1731 = vmatpush1.msra.mxu0 %v517
    %1732 = vmatprep.subr.mxu0 0.0
    %1733 = vmatpush1.msra.mxu0 0.0
    %1734 = vmatprep.subr.mxu0 0.0
    %1735 = vmatpush1.msra.mxu0 0.0
    %1736 = vmatprep.subr.mxu0 0.0
    %1737 = vmatpush1.msra.mxu0 0.0
    %1738 = vmatprep.subr.mxu0 0.0
    %1739 = vmatpush1.msra.mxu0 0.0
    %1740 = vmatprep.subr.mxu0 0.0
    %1741 = vmatpush1.msra.mxu0 0.0
    %1742 = vmatprep.subr.mxu0 0.0
    %1743 = vmatpush1.msra.mxu0 0.0
    %1744 = vmatprep.subr.mxu0 0.0
    %1745 = vmatpush1.msra.mxu0 0.0
    %1746 = vmatprep.subr.mxu0 0.0
    %1747 = vmatpush1.msra.mxu0 0.0
    %1748 = vmatprep.subr.mxu0 0.0
    %1749 = vmatpush1.msra.mxu0 0.0
    %1750 = vmatprep.subr.mxu0 0.0
    %1751 = vmatpush1.msra.mxu0 0.0
    %1752 = vmatprep.subr.mxu0 0.0
    %1753 = vmatpush1.msra.mxu0 0.0
    %1754 = vmatprep.subr.mxu0 0.0
    %1755 = vmatpush1.msra.mxu0 0.0
    %1756 = vmatprep.subr.mxu0 0.0
    %1757 = vmatpush1.msra.mxu0 0.0
    %1758 = vmatprep.subr.mxu0 0.0
    %1759 = vmatpush1.msra.mxu0 0.0
    %1760 = vmatprep.subr.mxu0 0.0
    %1761 = vmatpush1.msra.mxu0 0.0
    %1762 = vmatprep.subr.mxu0 0.0
    %1763 = vmatpush1.msra.mxu0 0.0
    %1764 = vmatprep.mubr.f32.mxu0 0.0
    %1765 = vmatmul.mubr.f32.gmra.mrb[0].mxu0 %v1526
    %v1766 = vpop.f32.mrb[0].mxu0
    %v1767 = vadd.f32 0.0, %v1766
    %v1768 = vpop.f32.mrb[0].mxu0
    %v1769 = vadd.f32 0.0, %v1768
    %1770 = vdwg.mxu0
    %1771 = vmatprep.subr.mxu0 %v460
    %1772 = vmatpush1.msra.mxu0 %v459
    %1773 = vmatprep.subr.mxu0 %v464
    %1774 = vmatpush1.msra.mxu0 %v463
    %1775 = vmatprep.subr.mxu0 %v468
    %1776 = vmatpush1.msra.mxu0 %v467
    %1777 = vmatprep.subr.mxu0 %v472
    %1778 = vmatpush1.msra.mxu0 %v471
    %1779 = vmatprep.subr.mxu0 %v476
    %1780 = vmatpush1.msra.mxu0 %v475
    %1781 = vmatprep.subr.mxu0 %v480
    %1782 = vmatpush1.msra.mxu0 %v479
    %1783 = vmatprep.subr.mxu0 %v484
    %1784 = vmatpush1.msra.mxu0 %v483
    %1785 = vmatprep.subr.mxu0 %v488
    %1786 = vmatpush1.msra.mxu0 %v487
    %1787 = vmatprep.subr.mxu0 %v492
    %1788 = vmatpush1.msra.mxu0 %v491
    %1789 = vmatprep.subr.mxu0 %v496
    %1790 = vmatpush1.msra.mxu0 %v495
    %1791 = vmatprep.subr.mxu0 %v500
    %1792 = vmatpush1.msra.mxu0 %v499
    %1793 = vmatprep.subr.mxu0 %v504
    %1794 = vmatpush1.msra.mxu0 %v503
    %1795 = vmatprep.subr.mxu0 %v508
    %1796 = vmatpush1.msra.mxu0 %v507
    %1797 = vmatprep.subr.mxu0 %v512
    %1798 = vmatpush1.msra.mxu0 %v511
    %1799 = vmatprep.subr.mxu0 %v516
    %1800 = vmatpush1.msra.mxu0 %v515
    %1801 = vmatprep.subr.mxu0 %v520
    %1802 = vmatpush1.msra.mxu0 %v519
    %1803 = vmatprep.subr.mxu0 0.0
    %1804 = vmatpush1.msra.mxu0 0.0
    %1805 = vmatprep.subr.mxu0 0.0
    %1806 = vmatpush1.msra.mxu0 0.0
    %1807 = vmatprep.subr.mxu0 0.0
    %1808 = vmatpush1.msra.mxu0 0.0
    %1809 = vmatprep.subr.mxu0 0.0
    %1810 = vmatpush1.msra.mxu0 0.0
    %1811 = vmatprep.subr.mxu0 0.0
    %1812 = vmatpush1.msra.mxu0 0.0
    %1813 = vmatprep.subr.mxu0 0.0
    %1814 = vmatpush1.msra.mxu0 0.0
    %1815 = vmatprep.subr.mxu0 0.0
    %1816 = vmatpush1.msra.mxu0 0.0
    %1817 = vmatprep.subr.mxu0 0.0
    %1818 = vmatpush1.msra.mxu0 0.0
    %1819 = vmatprep.subr.mxu0 0.0
    %1820 = vmatpush1.msra.mxu0 0.0
    %1821 = vmatprep.subr.mxu0 0.0
    %1822 = vmatpush1.msra.mxu0 0.0
    %1823 = vmatprep.subr.mxu0 0.0
    %1824 = vmatpush1.msra.mxu0 0.0
    %1825 = vmatprep.subr.mxu0 0.0
    %1826 = vmatpush1.msra.mxu0 0.0
    %1827 = vmatprep.subr.mxu0 0.0
    %1828 = vmatpush1.msra.mxu0 0.0
    %1829 = vmatprep.subr.mxu0 0.0
    %1830 = vmatpush1.msra.mxu0 0.0
    %1831 = vmatprep.subr.mxu0 0.0
    %1832 = vmatpush1.msra.mxu0 0.0
    %1833 = vmatprep.subr.mxu0 0.0
    %1834 = vmatpush1.msra.mxu0 0.0
    %1835 = vmatprep.mubr.f32.mxu0 0.0
    %1836 = vmatmul.mubr.f32.gmra.mrb[0].mxu0 %v1526
    %v1837 = vpop.f32.mrb[0].mxu0
    %v1838 = vadd.f32 0.0, %v1837
    %v1839 = vpop.f32.mrb[0].mxu0
    %v1840 = vadd.f32 0.0, %v1839
    %1841 = vdwg.mxu0
    %v1842 = vadd.f32 %v1696, %v1767
    %v1843 = vadd.f32 %v1697, %v1769
    %v1844 = vadd.f32 %v1698, %v1838
    %v1845 = vadd.f32 %v1699, %v1840
    %v1846 = vxor.u32 %v1842, 2147483648
    %v1847 = vmul.f32 %v1846, 1.442695
    %v1848 = vpow.pop %v1847
    %v1849 = vadd.f32 %v1848, 1.0
    %v1850 = vrcp.pop %v1849
    %v1851 = vmul.f32 1.0, %v1850
    %v1852 = vxor.u32 %v1843, 2147483648
    %v1853 = vmul.f32 %v1852, 1.442695
    %v1854 = vpow.pop %v1853
    %v1855 = vadd.f32 %v1854, 1.0
    %v1856 = vrcp.pop %v1855
    %v1857 = vmul.f32 1.0, %v1856
    %v1858 = vtanh.pop %v1844
    %v1859 = vxor.u32 %v1845, 2147483648
    %v1860 = vmul.f32 %v1859, 1.442695
    %v1861 = vpow.pop %v1860
    %v1862 = vadd.f32 %v1861, 1.0
    %v1863 = vrcp.pop %v1862
    %v1864 = vmul.f32 1.0, %v1863
    %v1865 = vmul.f32 %v1857, %v1524
    %v1866 = vmul.f32 %v1851, %v1858
    %v1867 = vadd.f32 %v1865, %v1866
    %v1868 = vtanh.pop %v1867
    %v1869 = vmul.f32 %v1864, %v1868
    %1870 = vmatprep.subr.mxu0 %v692
    %1871 = vmatpush1.msra.mxu0 %v691
    %1872 = vmatprep.subr.mxu0 %v696
    %1873 = vmatpush1.msra.mxu0 %v695
    %1874 = vmatprep.subr.mxu0 %v700
    %1875 = vmatpush1.msra.mxu0 %v699
    %1876 = vmatprep.subr.mxu0 %v704
    %1877 = vmatpush1.msra.mxu0 %v703
    %1878 = vmatprep.subr.mxu0 %v708
    %1879 = vmatpush1.msra.mxu0 %v707
    %1880 = vmatprep.subr.mxu0 %v712
    %1881 = vmatpush1.msra.mxu0 %v711
    %1882 = vmatprep.subr.mxu0 %v716
    %1883 = vmatpush1.msra.mxu0 %v715
    %1884 = vmatprep.subr.mxu0 %v720
    %1885 = vmatpush1.msra.mxu0 %v719
    %1886 = vmatprep.subr.mxu0 %v724
    %1887 = vmatpush1.msra.mxu0 %v723
    %1888 = vmatprep.subr.mxu0 %v728
    %1889 = vmatpush1.msra.mxu0 %v727
    %1890 = vmatprep.subr.mxu0 %v732
    %1891 = vmatpush1.msra.mxu0 %v731
    %1892 = vmatprep.subr.mxu0 %v736
    %1893 = vmatpush1.msra.mxu0 %v735
    %1894 = vmatprep.subr.mxu0 %v740
    %1895 = vmatpush1.msra.mxu0 %v739
    %1896 = vmatprep.subr.mxu0 %v744
    %1897 = vmatpush1.msra.mxu0 %v743
    %1898 = vmatprep.subr.mxu0 %v748
    %1899 = vmatpush1.msra.mxu0 %v747
    %1900 = vmatprep.subr.mxu0 %v752
    %1901 = vmatpush1.msra.mxu0 %v751
    %1902 = vmatprep.subr.mxu0 %v756
    %1903 = vmatpush1.msra.mxu0 %v755
    %1904 = vmatprep.subr.mxu0 %v760
    %1905 = vmatpush1.msra.mxu0 %v759
    %1906 = vmatprep.subr.mxu0 %v764
    %1907 = vmatpush1.msra.mxu0 %v763
    %1908 = vmatprep.subr.mxu0 %v768
    %1909 = vmatpush1.msra.mxu0 %v767
    %1910 = vmatprep.subr.mxu0 %v772
    %1911 = vmatpush1.msra.mxu0 %v771
    %1912 = vmatprep.subr.mxu0 %v776
    %1913 = vmatpush1.msra.mxu0 %v775
    %1914 = vmatprep.subr.mxu0 %v780
    %1915 = vmatpush1.msra.mxu0 %v779
    %1916 = vmatprep.subr.mxu0 %v784
    %1917 = vmatpush1.msra.mxu0 %v783
    %1918 = vmatprep.subr.mxu0 %v788
    %1919 = vmatpush1.msra.mxu0 %v787
    %1920 = vmatprep.subr.mxu0 %v792
    %1921 = vmatpush1.msra.mxu0 %v791
    %1922 = vmatprep.subr.mxu0 %v796
    %1923 = vmatpush1.msra.mxu0 %v795
    %1924 = vmatprep.subr.mxu0 %v800
    %1925 = vmatpush1.msra.mxu0 %v799
    %1926 = vmatprep.subr.mxu0 %v804
    %1927 = vmatpush1.msra.mxu0 %v803
    %1928 = vmatprep.subr.mxu0 %v808
    %1929 = vmatpush1.msra.mxu0 %v807
    %1930 = vmatprep.subr.mxu0 %v812
    %1931 = vmatpush1.msra.mxu0 %v811
    %1932 = vmatprep.subr.mxu0 %v816
    %1933 = vmatpush1.msra.mxu0 %v815
    %1934 = vmatprep.mubr.f32.mxu0 %v1692
    %1935 = vmatmul.mubr.f32.gmra.mrb[0].mxu0 %v1869
    %v1936 = vpop.f32.mrb[0].mxu0
    %v1937 = vadd.f32 %v824, %v1936
    %v1938 = vpop.f32.mrb[0].mxu0
    %v1939 = vadd.f32 %v828, %v1938
    %1940 = vdwg.mxu0
    %1941 = vmatprep.subr.mxu0 %v694
    %1942 = vmatpush1.msra.mxu0 %v693
    %1943 = vmatprep.subr.mxu0 %v698
    %1944 = vmatpush1.msra.mxu0 %v697
    %1945 = vmatprep.subr.mxu0 %v702
    %1946 = vmatpush1.msra.mxu0 %v701
    %1947 = vmatprep.subr.mxu0 %v706
    %1948 = vmatpush1.msra.mxu0 %v705
    %1949 = vmatprep.subr.mxu0 %v710
    %1950 = vmatpush1.msra.mxu0 %v709
    %1951 = vmatprep.subr.mxu0 %v714
    %1952 = vmatpush1.msra.mxu0 %v713
    %1953 = vmatprep.subr.mxu0 %v718
    %1954 = vmatpush1.msra.mxu0 %v717
    %1955 = vmatprep.subr.mxu0 %v722
    %1956 = vmatpush1.msra.mxu0 %v721
    %1957 = vmatprep.subr.mxu0 %v726
    %1958 = vmatpush1.msra.mxu0 %v725
    %1959 = vmatprep.subr.mxu0 %v730
    %1960 = vmatpush1.msra.mxu0 %v729
    %1961 = vmatprep.subr.mxu0 %v734
    %1962 = vmatpush1.msra.mxu0 %v733
    %1963 = vmatprep.subr.mxu0 %v738
    %1964 = vmatpush1.msra.mxu0 %v737
    %1965 = vmatprep.subr.mxu0 %v742
    %1966 = vmatpush1.msra.mxu0 %v741
    %1967 = vmatprep.subr.mxu0 %v746
    %1968 = vmatpush1.msra.mxu0 %v745
    %1969 = vmatprep.subr.mxu0 %v750
    %1970 = vmatpush1.msra.mxu0 %v749
    %1971 = vmatprep.subr.mxu0 %v754
    %1972 = vmatpush1.msra.mxu0 %v753
    %1973 = vmatprep.subr.mxu0 %v758
    %1974 = vmatpush1.msra.mxu0 %v757
    %1975 = vmatprep.subr.mxu0 %v762
    %1976 = vmatpush1.msra.mxu0 %v761
    %1977 = vmatprep.subr.mxu0 %v766
    %1978 = vmatpush1.msra.mxu0 %v765
    %1979 = vmatprep.subr.mxu0 %v770
    %1980 = vmatpush1.msra.mxu0 %v769
    %1981 = vmatprep.subr.mxu0 %v774
    %1982 = vmatpush1.msra.mxu0 %v773
    %1983 = vmatprep.subr.mxu0 %v778
    %1984 = vmatpush1.msra.mxu0 %v777
    %1985 = vmatprep.subr.mxu0 %v782
    %1986 = vmatpush1.msra.mxu0 %v781
    %1987 = vmatprep.subr.mxu0 %v786
    %1988 = vmatpush1.msra.mxu0 %v785
    %1989 = vmatprep.subr.mxu0 %v790
    %1990 = vmatpush1.msra.mxu0 %v789
    %1991 = vmatprep.subr.mxu0 %v794
    %1992 = vmatpush1.msra.mxu0 %v793
    %1993 = vmatprep.subr.mxu0 %v798
    %1994 = vmatpush1.msra.mxu0 %v797
    %1995 = vmatprep.subr.mxu0 %v802
    %1996 = vmatpush1.msra.mxu0 %v801
    %1997 = vmatprep.subr.mxu0 %v806
    %1998 = vmatpush1.msra.mxu0 %v805
    %1999 = vmatprep.subr.mxu0 %v810
    %2000 = vmatpush1.msra.mxu0 %v809
    %2001 = vmatprep.subr.mxu0 %v814
    %2002 = vmatpush1.msra.mxu0 %v813
    %2003 = vmatprep.subr.mxu0 %v818
    %2004 = vmatpush1.msra.mxu0 %v817
    %2005 = vmatprep.mubr.f32.mxu0 %v1692
    %2006 = vmatmul.mubr.f32.gmra.mrb[0].mxu0 %v1869
    %v2007 = vpop.f32.mrb[0].mxu0
    %v2008 = vadd.f32 %v832, %v2007
    %v2009 = vpop.f32.mrb[0].mxu0
    %v2010 = vadd.f32 %v836, %v2009
    %2011 = vdwg.mxu0
    %v2012 = vxor.u32 %v1937, 2147483648
    %v2013 = vmul.f32 %v2012, 1.442695
    %v2014 = vpow.pop %v2013
    %v2015 = vadd.f32 %v2014, 1.0
    %v2016 = vrcp.pop %v2015
    %v2017 = vmul.f32 1.0, %v2016
    %v2018 = vxor.u32 %v1939, 2147483648
    %v2019 = vmul.f32 %v2018, 1.442695
    %v2020 = vpow.pop %v2019
    %v2021 = vadd.f32 %v2020, 1.0
    %v2022 = vrcp.pop %v2021
    %v2023 = vmul.f32 1.0, %v2022
    %v2024 = vtanh.pop %v2008
    %v2025 = vxor.u32 %v2010, 2147483648
    %v2026 = vmul.f32 %v2025, 1.442695
    %v2027 = vpow.pop %v2026
    %v2028 = vadd.f32 %v2027, 1.0
    %v2029 = vrcp.pop %v2028
    %v2030 = vmul.f32 1.0, %v2029
    %v2031 = vmul.f32 %v2023, %v1690
    %v2032 = vmul.f32 %v2017, %v2024
    %v2033 = vadd.f32 %v2031, %v2032
    %v2034 = vtanh.pop %v2033
    %v2035 = vmul.f32 %v2030, %v2034
    %s2036 = smul.u32 4, 4
    %s2037 = smul.addr %s2036, 8
    %s2038 = scalar_lea.vmem [#allocation2], %s2037
    %v2039 = vld [vmem:[%s2038] sm:$0xff]
    %v2040 = vld [vmem:[%s2038 + $0x8] sm:$0xff]
    %v2041 = vld [vmem:[%s2038 + $0x10] sm:$0xff]
    %v2042 = vld [vmem:[%s2038 + $0x18] sm:$0xff]
    %2043 = vmatprep.subr.mxu0 %v458
    %2044 = vmatpush1.msra.mxu0 %v457
    %2045 = vmatprep.subr.mxu0 %v462
    %2046 = vmatpush1.msra.mxu0 %v461
    %2047 = vmatprep.subr.mxu0 %v466
    %2048 = vmatpush1.msra.mxu0 %v465
    %2049 = vmatprep.subr.mxu0 %v470
    %2050 = vmatpush1.msra.mxu0 %v469
    %2051 = vmatprep.subr.mxu0 %v474
    %2052 = vmatpush1.msra.mxu0 %v473
    %2053 = vmatprep.subr.mxu0 %v478
    %2054 = vmatpush1.msra.mxu0 %v477
    %2055 = vmatprep.subr.mxu0 %v482
    %2056 = vmatpush1.msra.mxu0 %v481
    %2057 = vmatprep.subr.mxu0 %v486
    %2058 = vmatpush1.msra.mxu0 %v485
    %2059 = vmatprep.subr.mxu0 %v490
    %2060 = vmatpush1.msra.mxu0 %v489
    %2061 = vmatprep.subr.mxu0 %v494
    %2062 = vmatpush1.msra.mxu0 %v493
    %2063 = vmatprep.subr.mxu0 %v498
    %2064 = vmatpush1.msra.mxu0 %v497
    %2065 = vmatprep.subr.mxu0 %v502
    %2066 = vmatpush1.msra.mxu0 %v501
    %2067 = vmatprep.subr.mxu0 %v506
    %2068 = vmatpush1.msra.mxu0 %v505
    %2069 = vmatprep.subr.mxu0 %v510
    %2070 = vmatpush1.msra.mxu0 %v509
    %2071 = vmatprep.subr.mxu0 %v514
    %2072 = vmatpush1.msra.mxu0 %v513
    %2073 = vmatprep.subr.mxu0 %v518
    %2074 = vmatpush1.msra.mxu0 %v517
    %2075 = vmatprep.subr.mxu0 0.0
    %2076 = vmatpush1.msra.mxu0 0.0
    %2077 = vmatprep.subr.mxu0 0.0
    %2078 = vmatpush1.msra.mxu0 0.0
    %2079 = vmatprep.subr.mxu0 0.0
    %2080 = vmatpush1.msra.mxu0 0.0
    %2081 = vmatprep.subr.mxu0 0.0
    %2082 = vmatpush1.msra.mxu0 0.0
    %2083 = vmatprep.subr.mxu0 0.0
    %2084 = vmatpush1.msra.mxu0 0.0
    %2085 = vmatprep.subr.mxu0 0.0
    %2086 = vmatpush1.msra.mxu0 0.0
    %2087 = vmatprep.subr.mxu0 0.0
    %2088 = vmatpush1.msra.mxu0 0.0
    %2089 = vmatprep.subr.mxu0 0.0
    %2090 = vmatpush1.msra.mxu0 0.0
    %2091 = vmatprep.subr.mxu0 0.0
    %2092 = vmatpush1.msra.mxu0 0.0
    %2093 = vmatprep.subr.mxu0 0.0
    %2094 = vmatpush1.msra.mxu0 0.0
    %2095 = vmatprep.subr.mxu0 0.0
    %2096 = vmatpush1.msra.mxu0 0.0
    %2097 = vmatprep.subr.mxu0 0.0
    %2098 = vmatpush1.msra.mxu0 0.0
    %2099 = vmatprep.subr.mxu0 0.0
    %2100 = vmatpush1.msra.mxu0 0.0
    %2101 = vmatprep.subr.mxu0 0.0
    %2102 = vmatpush1.msra.mxu0 0.0
    %2103 = vmatprep.subr.mxu0 0.0
    %2104 = vmatpush1.msra.mxu0 0.0
    %2105 = vmatprep.subr.mxu0 0.0
    %2106 = vmatpush1.msra.mxu0 0.0
    %2107 = vmatprep.mubr.f32.mxu0 0.0
    %2108 = vmatmul.mubr.f32.gmra.mrb[0].mxu0 %v1869
    %v2109 = vpop.f32.mrb[0].mxu0
    %v2110 = vadd.f32 0.0, %v2109
    %v2111 = vpop.f32.mrb[0].mxu0
    %v2112 = vadd.f32 0.0, %v2111
    %2113 = vdwg.mxu0
    %2114 = vmatprep.subr.mxu0 %v460
    %2115 = vmatpush1.msra.mxu0 %v459
    %2116 = vmatprep.subr.mxu0 %v464
    %2117 = vmatpush1.msra.mxu0 %v463
    %2118 = vmatprep.subr.mxu0 %v468
    %2119 = vmatpush1.msra.mxu0 %v467
    %2120 = vmatprep.subr.mxu0 %v472
    %2121 = vmatpush1.msra.mxu0 %v471
    %2122 = vmatprep.subr.mxu0 %v476
    %2123 = vmatpush1.msra.mxu0 %v475
    %2124 = vmatprep.subr.mxu0 %v480
    %2125 = vmatpush1.msra.mxu0 %v479
    %2126 = vmatprep.subr.mxu0 %v484
    %2127 = vmatpush1.msra.mxu0 %v483
    %2128 = vmatprep.subr.mxu0 %v488
    %2129 = vmatpush1.msra.mxu0 %v487
    %2130 = vmatprep.subr.mxu0 %v492
    %2131 = vmatpush1.msra.mxu0 %v491
    %2132 = vmatprep.subr.mxu0 %v496
    %2133 = vmatpush1.msra.mxu0 %v495
    %2134 = vmatprep.subr.mxu0 %v500
    %2135 = vmatpush1.msra.mxu0 %v499
    %2136 = vmatprep.subr.mxu0 %v504
    %2137 = vmatpush1.msra.mxu0 %v503
    %2138 = vmatprep.subr.mxu0 %v508
    %2139 = vmatpush1.msra.mxu0 %v507
    %2140 = vmatprep.subr.mxu0 %v512
    %2141 = vmatpush1.msra.mxu0 %v511
    %2142 = vmatprep.subr.mxu0 %v516
    %2143 = vmatpush1.msra.mxu0 %v515
    %2144 = vmatprep.subr.mxu0 %v520
    %2145 = vmatpush1.msra.mxu0 %v519
    %2146 = vmatprep.subr.mxu0 0.0
    %2147 = vmatpush1.msra.mxu0 0.0
    %2148 = vmatprep.subr.mxu0 0.0
    %2149 = vmatpush1.msra.mxu0 0.0
    %2150 = vmatprep.subr.mxu0 0.0
    %2151 = vmatpush1.msra.mxu0 0.0
    %2152 = vmatprep.subr.mxu0 0.0
    %2153 = vmatpush1.msra.mxu0 0.0
    %2154 = vmatprep.subr.mxu0 0.0
    %2155 = vmatpush1.msra.mxu0 0.0
    %2156 = vmatprep.subr.mxu0 0.0
    %2157 = vmatpush1.msra.mxu0 0.0
    %2158 = vmatprep.subr.mxu0 0.0
    %2159 = vmatpush1.msra.mxu0 0.0
    %2160 = vmatprep.subr.mxu0 0.0
    %2161 = vmatpush1.msra.mxu0 0.0
    %2162 = vmatprep.subr.mxu0 0.0
    %2163 = vmatpush1.msra.mxu0 0.0
    %2164 = vmatprep.subr.mxu0 0.0
    %2165 = vmatpush1.msra.mxu0 0.0
    %2166 = vmatprep.subr.mxu0 0.0
    %2167 = vmatpush1.msra.mxu0 0.0
    %2168 = vmatprep.subr.mxu0 0.0
    %2169 = vmatpush1.msra.mxu0 0.0
    %2170 = vmatprep.subr.mxu0 0.0
    %2171 = vmatpush1.msra.mxu0 0.0
    %2172 = vmatprep.subr.mxu0 0.0
    %2173 = vmatpush1.msra.mxu0 0.0
    %2174 = vmatprep.subr.mxu0 0.0
    %2175 = vmatpush1.msra.mxu0 0.0
    %2176 = vmatprep.subr.mxu0 0.0
    %2177 = vmatpush1.msra.mxu0 0.0
    %2178 = vmatprep.mubr.f32.mxu0 0.0
    %2179 = vmatmul.mubr.f32.gmra.mrb[0].mxu0 %v1869
    %v2180 = vpop.f32.mrb[0].mxu0
    %v2181 = vadd.f32 0.0, %v2180
    %v2182 = vpop.f32.mrb[0].mxu0
    %v2183 = vadd.f32 0.0, %v2182
    %2184 = vdwg.mxu0
    %v2185 = vadd.f32 %v2039, %v2110
    %v2186 = vadd.f32 %v2040, %v2112
    %v2187 = vadd.f32 %v2041, %v2181
    %v2188 = vadd.f32 %v2042, %v2183
    %v2189 = vxor.u32 %v2185, 2147483648
    %v2190 = vmul.f32 %v2189, 1.442695
    %v2191 = vpow.pop %v2190
    %v2192 = vadd.f32 %v2191, 1.0
    %v2193 = vrcp.pop %v2192
    %v2194 = vmul.f32 1.0, %v2193
    %v2195 = vxor.u32 %v2186, 2147483648
    %v2196 = vmul.f32 %v2195, 1.442695
    %v2197 = vpow.pop %v2196
    %v2198 = vadd.f32 %v2197, 1.0
    %v2199 = vrcp.pop %v2198
    %v2200 = vmul.f32 1.0, %v2199
    %v2201 = vtanh.pop %v2187
    %v2202 = vxor.u32 %v2188, 2147483648
    %v2203 = vmul.f32 %v2202, 1.442695
    %v2204 = vpow.pop %v2203
    %v2205 = vadd.f32 %v2204, 1.0
    %v2206 = vrcp.pop %v2205
    %v2207 = vmul.f32 1.0, %v2206
    %v2208 = vmul.f32 %v2200, %v1867
    %v2209 = vmul.f32 %v2194, %v2201
    %v2210 = vadd.f32 %v2208, %v2209
    %v2211 = vtanh.pop %v2210
    %v2212 = vmul.f32 %v2207, %v2211
    %2213 = vmatprep.subr.mxu0 %v692
    %2214 = vmatpush1.msra.mxu0 %v691
    %2215 = vmatprep.subr.mxu0 %v696
    %2216 = vmatpush1.msra.mxu0 %v695
    %2217 = vmatprep.subr.mxu0 %v700
    %2218 = vmatpush1.msra.mxu0 %v699
    %2219 = vmatprep.subr.mxu0 %v704
    %2220 = vmatpush1.msra.mxu0 %v703
    %2221 = vmatprep.subr.mxu0 %v708
    %2222 = vmatpush1.msra.mxu0 %v707
    %2223 = vmatprep.subr.mxu0 %v712
    %2224 = vmatpush1.msra.mxu0 %v711
    %2225 = vmatprep.subr.mxu0 %v716
    %2226 = vmatpush1.msra.mxu0 %v715
    %2227 = vmatprep.subr.mxu0 %v720
    %2228 = vmatpush1.msra.mxu0 %v719
    %2229 = vmatprep.subr.mxu0 %v724
    %2230 = vmatpush1.msra.mxu0 %v723
    %2231 = vmatprep.subr.mxu0 %v728
    %2232 = vmatpush1.msra.mxu0 %v727
    %2233 = vmatprep.subr.mxu0 %v732
    %2234 = vmatpush1.msra.mxu0 %v731
    %2235 = vmatprep.subr.mxu0 %v736
    %2236 = vmatpush1.msra.mxu0 %v735
    %2237 = vmatprep.subr.mxu0 %v740
    %2238 = vmatpush1.msra.mxu0 %v739
    %2239 = vmatprep.subr.mxu0 %v744
    %2240 = vmatpush1.msra.mxu0 %v743
    %2241 = vmatprep.subr.mxu0 %v748
    %2242 = vmatpush1.msra.mxu0 %v747
    %2243 = vmatprep.subr.mxu0 %v752
    %2244 = vmatpush1.msra.mxu0 %v751
    %2245 = vmatprep.subr.mxu0 %v756
    %2246 = vmatpush1.msra.mxu0 %v755
    %2247 = vmatprep.subr.mxu0 %v760
    %2248 = vmatpush1.msra.mxu0 %v759
    %2249 = vmatprep.subr.mxu0 %v764
    %2250 = vmatpush1.msra.mxu0 %v763
    %2251 = vmatprep.subr.mxu0 %v768
    %2252 = vmatpush1.msra.mxu0 %v767
    %2253 = vmatprep.subr.mxu0 %v772
    %2254 = vmatpush1.msra.mxu0 %v771
    %2255 = vmatprep.subr.mxu0 %v776
    %2256 = vmatpush1.msra.mxu0 %v775
    %2257 = vmatprep.subr.mxu0 %v780
    %2258 = vmatpush1.msra.mxu0 %v779
    %2259 = vmatprep.subr.mxu0 %v784
    %2260 = vmatpush1.msra.mxu0 %v783
    %2261 = vmatprep.subr.mxu0 %v788
    %2262 = vmatpush1.msra.mxu0 %v787
    %2263 = vmatprep.subr.mxu0 %v792
    %2264 = vmatpush1.msra.mxu0 %v791
    %2265 = vmatprep.subr.mxu0 %v796
    %2266 = vmatpush1.msra.mxu0 %v795
    %2267 = vmatprep.subr.mxu0 %v800
    %2268 = vmatpush1.msra.mxu0 %v799
    %2269 = vmatprep.subr.mxu0 %v804
    %2270 = vmatpush1.msra.mxu0 %v803
    %2271 = vmatprep.subr.mxu0 %v808
    %2272 = vmatpush1.msra.mxu0 %v807
    %2273 = vmatprep.subr.mxu0 %v812
    %2274 = vmatpush1.msra.mxu0 %v811
    %2275 = vmatprep.subr.mxu0 %v816
    %2276 = vmatpush1.msra.mxu0 %v815
    %2277 = vmatprep.mubr.f32.mxu0 %v2035
    %2278 = vmatmul.mubr.f32.gmra.mrb[0].mxu0 %v2212
    %v2279 = vpop.f32.mrb[0].mxu0
    %v2280 = vadd.f32 %v824, %v2279
    %v2281 = vpop.f32.mrb[0].mxu0
    %v2282 = vadd.f32 %v828, %v2281
    %2283 = vdwg.mxu0
    %2284 = vmatprep.subr.mxu0 %v694
    %2285 = vmatpush1.msra.mxu0 %v693
    %2286 = vmatprep.subr.mxu0 %v698
    %2287 = vmatpush1.msra.mxu0 %v697
    %2288 = vmatprep.subr.mxu0 %v702
    %2289 = vmatpush1.msra.mxu0 %v701
    %2290 = vmatprep.subr.mxu0 %v706
    %2291 = vmatpush1.msra.mxu0 %v705
    %2292 = vmatprep.subr.mxu0 %v710
    %2293 = vmatpush1.msra.mxu0 %v709
    %2294 = vmatprep.subr.mxu0 %v714
    %2295 = vmatpush1.msra.mxu0 %v713
    %2296 = vmatprep.subr.mxu0 %v718
    %2297 = vmatpush1.msra.mxu0 %v717
    %2298 = vmatprep.subr.mxu0 %v722
    %2299 = vmatpush1.msra.mxu0 %v721
    %2300 = vmatprep.subr.mxu0 %v726
    %2301 = vmatpush1.msra.mxu0 %v725
    %2302 = vmatprep.subr.mxu0 %v730
    %2303 = vmatpush1.msra.mxu0 %v729
    %2304 = vmatprep.subr.mxu0 %v734
    %2305 = vmatpush1.msra.mxu0 %v733
    %2306 = vmatprep.subr.mxu0 %v738
    %2307 = vmatpush1.msra.mxu0 %v737
    %2308 = vmatprep.subr.mxu0 %v742
    %2309 = vmatpush1.msra.mxu0 %v741
    %2310 = vmatprep.subr.mxu0 %v746
    %2311 = vmatpush1.msra.mxu0 %v745
    %2312 = vmatprep.subr.mxu0 %v750
    %2313 = vmatpush1.msra.mxu0 %v749
    %2314 = vmatprep.subr.mxu0 %v754
    %2315 = vmatpush1.msra.mxu0 %v753
    %2316 = vmatprep.subr.mxu0 %v758
    %2317 = vmatpush1.msra.mxu0 %v757
    %2318 = vmatprep.subr.mxu0 %v762
    %2319 = vmatpush1.msra.mxu0 %v761
    %2320 = vmatprep.subr.mxu0 %v766
    %2321 = vmatpush1.msra.mxu0 %v765
    %2322 = vmatprep.subr.mxu0 %v770
    %2323 = vmatpush1.msra.mxu0 %v769
    %2324 = vmatprep.subr.mxu0 %v774
    %2325 = vmatpush1.msra.mxu0 %v773
    %2326 = vmatprep.subr.mxu0 %v778
    %2327 = vmatpush1.msra.mxu0 %v777
    %2328 = vmatprep.subr.mxu0 %v782
    %2329 = vmatpush1.msra.mxu0 %v781
    %2330 = vmatprep.subr.mxu0 %v786
    %2331 = vmatpush1.msra.mxu0 %v785
    %2332 = vmatprep.subr.mxu0 %v790
    %2333 = vmatpush1.msra.mxu0 %v789
    %2334 = vmatprep.subr.mxu0 %v794
    %2335 = vmatpush1.msra.mxu0 %v793
    %2336 = vmatprep.subr.mxu0 %v798
    %2337 = vmatpush1.msra.mxu0 %v797
    %2338 = vmatprep.subr.mxu0 %v802
    %2339 = vmatpush1.msra.mxu0 %v801
    %2340 = vmatprep.subr.mxu0 %v806
    %2341 = vmatpush1.msra.mxu0 %v805
    %2342 = vmatprep.subr.mxu0 %v810
    %2343 = vmatpush1.msra.mxu0 %v809
    %2344 = vmatprep.subr.mxu0 %v814
    %2345 = vmatpush1.msra.mxu0 %v813
    %2346 = vmatprep.subr.mxu0 %v818
    %2347 = vmatpush1.msra.mxu0 %v817
    %2348 = vmatprep.mubr.f32.mxu0 %v2035
    %2349 = vmatmul.mubr.f32.gmra.mrb[0].mxu0 %v2212
    %v2350 = vpop.f32.mrb[0].mxu0
    %v2351 = vadd.f32 %v832, %v2350
    %v2352 = vpop.f32.mrb[0].mxu0
    %v2353 = vadd.f32 %v836, %v2352
    %2354 = vdwg.mxu0
    %v2355 = vxor.u32 %v2280, 2147483648
    %v2356 = vmul.f32 %v2355, 1.442695
    %v2357 = vpow.pop %v2356
    %v2358 = vadd.f32 %v2357, 1.0
    %v2359 = vrcp.pop %v2358
    %v2360 = vmul.f32 1.0, %v2359
    %v2361 = vxor.u32 %v2282, 2147483648
    %v2362 = vmul.f32 %v2361, 1.442695
    %v2363 = vpow.pop %v2362
    %v2364 = vadd.f32 %v2363, 1.0
    %v2365 = vrcp.pop %v2364
    %v2366 = vmul.f32 1.0, %v2365
    %v2367 = vtanh.pop %v2351
    %v2368 = vxor.u32 %v2353, 2147483648
    %v2369 = vmul.f32 %v2368, 1.442695
    %v2370 = vpow.pop %v2369
    %v2371 = vadd.f32 %v2370, 1.0
    %v2372 = vrcp.pop %v2371
    %v2373 = vmul.f32 1.0, %v2372
    %v2374 = vmul.f32 %v2366, %v2033
    %v2375 = vmul.f32 %v2360, %v2367
    %v2376 = vadd.f32 %v2374, %v2375
    %v2377 = vtanh.pop %v2376
    %v2378 = vmul.f32 %v2373, %v2377
    %s2379 = smul.u32 5, 4
    %s2380 = smul.addr %s2379, 8
    %s2381 = scalar_lea.vmem [#allocation2], %s2380
    %v2382 = vld [vmem:[%s2381] sm:$0xff]
    %v2383 = vld [vmem:[%s2381 + $0x8] sm:$0xff]
    %v2384 = vld [vmem:[%s2381 + $0x10] sm:$0xff]
    %v2385 = vld [vmem:[%s2381 + $0x18] sm:$0xff]
    %2386 = vmatprep.subr.mxu0 %v458
    %2387 = vmatpush1.msra.mxu0 %v457
    %2388 = vmatprep.subr.mxu0 %v462
    %2389 = vmatpush1.msra.mxu0 %v461
    %2390 = vmatprep.subr.mxu0 %v466
    %2391 = vmatpush1.msra.mxu0 %v465
    %2392 = vmatprep.subr.mxu0 %v470
    %2393 = vmatpush1.msra.mxu0 %v469
    %2394 = vmatprep.subr.mxu0 %v474
    %2395 = vmatpush1.msra.mxu0 %v473
    %2396 = vmatprep.subr.mxu0 %v478
    %2397 = vmatpush1.msra.mxu0 %v477
    %2398 = vmatprep.subr.mxu0 %v482
    %2399 = vmatpush1.msra.mxu0 %v481
    %2400 = vmatprep.subr.mxu0 %v486
    %2401 = vmatpush1.msra.mxu0 %v485
    %2402 = vmatprep.subr.mxu0 %v490
    %2403 = vmatpush1.msra.mxu0 %v489
    %2404 = vmatprep.subr.mxu0 %v494
    %2405 = vmatpush1.msra.mxu0 %v493
    %2406 = vmatprep.subr.mxu0 %v498
    %2407 = vmatpush1.msra.mxu0 %v497
    %2408 = vmatprep.subr.mxu0 %v502
    %2409 = vmatpush1.msra.mxu0 %v501
    %2410 = vmatprep.subr.mxu0 %v506
    %2411 = vmatpush1.msra.mxu0 %v505
    %2412 = vmatprep.subr.mxu0 %v510
    %2413 = vmatpush1.msra.mxu0 %v509
    %2414 = vmatprep.subr.mxu0 %v514
    %2415 = vmatpush1.msra.mxu0 %v513
    %2416 = vmatprep.subr.mxu0 %v518
    %2417 = vmatpush1.msra.mxu0 %v517
    %2418 = vmatprep.subr.mxu0 0.0
    %2419 = vmatpush1.msra.mxu0 0.0
    %2420 = vmatprep.subr.mxu0 0.0
    %2421 = vmatpush1.msra.mxu0 0.0
    %2422 = vmatprep.subr.mxu0 0.0
    %2423 = vmatpush1.msra.mxu0 0.0
    %2424 = vmatprep.subr.mxu0 0.0
    %2425 = vmatpush1.msra.mxu0 0.0
    %2426 = vmatprep.subr.mxu0 0.0
    %2427 = vmatpush1.msra.mxu0 0.0
    %2428 = vmatprep.subr.mxu0 0.0
    %2429 = vmatpush1.msra.mxu0 0.0
    %2430 = vmatprep.subr.mxu0 0.0
    %2431 = vmatpush1.msra.mxu0 0.0
    %2432 = vmatprep.subr.mxu0 0.0
    %2433 = vmatpush1.msra.mxu0 0.0
    %2434 = vmatprep.subr.mxu0 0.0
    %2435 = vmatpush1.msra.mxu0 0.0
    %2436 = vmatprep.subr.mxu0 0.0
    %2437 = vmatpush1.msra.mxu0 0.0
    %2438 = vmatprep.subr.mxu0 0.0
    %2439 = vmatpush1.msra.mxu0 0.0
    %2440 = vmatprep.subr.mxu0 0.0
    %2441 = vmatpush1.msra.mxu0 0.0
    %2442 = vmatprep.subr.mxu0 0.0
    %2443 = vmatpush1.msra.mxu0 0.0
    %2444 = vmatprep.subr.mxu0 0.0
    %2445 = vmatpush1.msra.mxu0 0.0
    %2446 = vmatprep.subr.mxu0 0.0
    %2447 = vmatpush1.msra.mxu0 0.0
    %2448 = vmatprep.subr.mxu0 0.0
    %2449 = vmatpush1.msra.mxu0 0.0
    %2450 = vmatprep.mubr.f32.mxu0 0.0
    %2451 = vmatmul.mubr.f32.gmra.mrb[0].mxu0 %v2212
    %v2452 = vpop.f32.mrb[0].mxu0
    %v2453 = vadd.f32 0.0, %v2452
    %v2454 = vpop.f32.mrb[0].mxu0
    %v2455 = vadd.f32 0.0, %v2454
    %2456 = vdwg.mxu0
    %2457 = vmatprep.subr.mxu0 %v460
    %2458 = vmatpush1.msra.mxu0 %v459
    %2459 = vmatprep.subr.mxu0 %v464
    %2460 = vmatpush1.msra.mxu0 %v463
    %2461 = vmatprep.subr.mxu0 %v468
    %2462 = vmatpush1.msra.mxu0 %v467
    %2463 = vmatprep.subr.mxu0 %v472
    %2464 = vmatpush1.msra.mxu0 %v471
    %2465 = vmatprep.subr.mxu0 %v476
    %2466 = vmatpush1.msra.mxu0 %v475
    %2467 = vmatprep.subr.mxu0 %v480
    %2468 = vmatpush1.msra.mxu0 %v479
    %2469 = vmatprep.subr.mxu0 %v484
    %2470 = vmatpush1.msra.mxu0 %v483
    %2471 = vmatprep.subr.mxu0 %v488
    %2472 = vmatpush1.msra.mxu0 %v487
    %2473 = vmatprep.subr.mxu0 %v492
    %2474 = vmatpush1.msra.mxu0 %v491
    %2475 = vmatprep.subr.mxu0 %v496
    %2476 = vmatpush1.msra.mxu0 %v495
    %2477 = vmatprep.subr.mxu0 %v500
    %2478 = vmatpush1.msra.mxu0 %v499
    %2479 = vmatprep.subr.mxu0 %v504
    %2480 = vmatpush1.msra.mxu0 %v503
    %2481 = vmatprep.subr.mxu0 %v508
    %2482 = vmatpush1.msra.mxu0 %v507
    %2483 = vmatprep.subr.mxu0 %v512
    %2484 = vmatpush1.msra.mxu0 %v511
    %2485 = vmatprep.subr.mxu0 %v516
    %2486 = vmatpush1.msra.mxu0 %v515
    %2487 = vmatprep.subr.mxu0 %v520
    %2488 = vmatpush1.msra.mxu0 %v519
    %2489 = vmatprep.subr.mxu0 0.0
    %2490 = vmatpush1.msra.mxu0 0.0
    %2491 = vmatprep.subr.mxu0 0.0
    %2492 = vmatpush1.msra.mxu0 0.0
    %2493 = vmatprep.subr.mxu0 0.0
    %2494 = vmatpush1.msra.mxu0 0.0
    %2495 = vmatprep.subr.mxu0 0.0
    %2496 = vmatpush1.msra.mxu0 0.0
    %2497 = vmatprep.subr.mxu0 0.0
    %2498 = vmatpush1.msra.mxu0 0.0
    %2499 = vmatprep.subr.mxu0 0.0
    %2500 = vmatpush1.msra.mxu0 0.0
    %2501 = vmatprep.subr.mxu0 0.0
    %2502 = vmatpush1.msra.mxu0 0.0
    %2503 = vmatprep.subr.mxu0 0.0
    %2504 = vmatpush1.msra.mxu0 0.0
    %2505 = vmatprep.subr.mxu0 0.0
    %2506 = vmatpush1.msra.mxu0 0.0
    %2507 = vmatprep.subr.mxu0 0.0
    %2508 = vmatpush1.msra.mxu0 0.0
    %2509 = vmatprep.subr.mxu0 0.0
    %2510 = vmatpush1.msra.mxu0 0.0
    %2511 = vmatprep.subr.mxu0 0.0
    %2512 = vmatpush1.msra.mxu0 0.0
    %2513 = vmatprep.subr.mxu0 0.0
    %2514 = vmatpush1.msra.mxu0 0.0
    %2515 = vmatprep.subr.mxu0 0.0
    %2516 = vmatpush1.msra.mxu0 0.0
    %2517 = vmatprep.subr.mxu0 0.0
    %2518 = vmatpush1.msra.mxu0 0.0
    %2519 = vmatprep.subr.mxu0 0.0
    %2520 = vmatpush1.msra.mxu0 0.0
    %2521 = vmatprep.mubr.f32.mxu0 0.0
    %2522 = vmatmul.mubr.f32.gmra.mrb[0].mxu0 %v2212
    %v2523 = vpop.f32.mrb[0].mxu0
    %v2524 = vadd.f32 0.0, %v2523
    %v2525 = vpop.f32.mrb[0].mxu0
    %v2526 = vadd.f32 0.0, %v2525
    %2527 = vdwg.mxu0
    %v2528 = vadd.f32 %v2382, %v2453
    %v2529 = vadd.f32 %v2383, %v2455
    %v2530 = vadd.f32 %v2384, %v2524
    %v2531 = vadd.f32 %v2385, %v2526
    %v2532 = vxor.u32 %v2528, 2147483648
    %v2533 = vmul.f32 %v2532, 1.442695
    %v2534 = vpow.pop %v2533
    %v2535 = vadd.f32 %v2534, 1.0
    %v2536 = vrcp.pop %v2535
    %v2537 = vmul.f32 1.0, %v2536
    %v2538 = vxor.u32 %v2529, 2147483648
    %v2539 = vmul.f32 %v2538, 1.442695
    %v2540 = vpow.pop %v2539
    %v2541 = vadd.f32 %v2540, 1.0
    %v2542 = vrcp.pop %v2541
    %v2543 = vmul.f32 1.0, %v2542
    %v2544 = vtanh.pop %v2530
    %v2545 = vxor.u32 %v2531, 2147483648
    %v2546 = vmul.f32 %v2545, 1.442695
    %v2547 = vpow.pop %v2546
    %v2548 = vadd.f32 %v2547, 1.0
    %v2549 = vrcp.pop %v2548
    %v2550 = vmul.f32 1.0, %v2549
    %v2551 = vmul.f32 %v2543, %v2210
    %v2552 = vmul.f32 %v2537, %v2544
    %v2553 = vadd.f32 %v2551, %v2552
    %v2554 = vtanh.pop %v2553
    %v2555 = vmul.f32 %v2550, %v2554
    %2556 = vmatprep.subr.mxu0 %v692
    %2557 = vmatpush1.msra.mxu0 %v691
    %2558 = vmatprep.subr.mxu0 %v696
    %2559 = vmatpush1.msra.mxu0 %v695
    %2560 = vmatprep.subr.mxu0 %v700
    %2561 = vmatpush1.msra.mxu0 %v699
    %2562 = vmatprep.subr.mxu0 %v704
    %2563 = vmatpush1.msra.mxu0 %v703
    %2564 = vmatprep.subr.mxu0 %v708
    %2565 = vmatpush1.msra.mxu0 %v707
    %2566 = vmatprep.subr.mxu0 %v712
    %2567 = vmatpush1.msra.mxu0 %v711
    %2568 = vmatprep.subr.mxu0 %v716
    %2569 = vmatpush1.msra.mxu0 %v715
    %2570 = vmatprep.subr.mxu0 %v720
    %2571 = vmatpush1.msra.mxu0 %v719
    %2572 = vmatprep.subr.mxu0 %v724
    %2573 = vmatpush1.msra.mxu0 %v723
    %2574 = vmatprep.subr.mxu0 %v728
    %2575 = vmatpush1.msra.mxu0 %v727
    %2576 = vmatprep.subr.mxu0 %v732
    %2577 = vmatpush1.msra.mxu0 %v731
    %2578 = vmatprep.subr.mxu0 %v736
    %2579 = vmatpush1.msra.mxu0 %v735
    %2580 = vmatprep.subr.mxu0 %v740
    %2581 = vmatpush1.msra.mxu0 %v739
    %2582 = vmatprep.subr.mxu0 %v744
    %2583 = vmatpush1.msra.mxu0 %v743
    %2584 = vmatprep.subr.mxu0 %v748
    %2585 = vmatpush1.msra.mxu0 %v747
    %2586 = vmatprep.subr.mxu0 %v752
    %2587 = vmatpush1.msra.mxu0 %v751
    %2588 = vmatprep.subr.mxu0 %v756
    %2589 = vmatpush1.msra.mxu0 %v755
    %2590 = vmatprep.subr.mxu0 %v760
    %2591 = vmatpush1.msra.mxu0 %v759
    %2592 = vmatprep.subr.mxu0 %v764
    %2593 = vmatpush1.msra.mxu0 %v763
    %2594 = vmatprep.subr.mxu0 %v768
    %2595 = vmatpush1.msra.mxu0 %v767
    %2596 = vmatprep.subr.mxu0 %v772
    %2597 = vmatpush1.msra.mxu0 %v771
    %2598 = vmatprep.subr.mxu0 %v776
    %2599 = vmatpush1.msra.mxu0 %v775
    %2600 = vmatprep.subr.mxu0 %v780
    %2601 = vmatpush1.msra.mxu0 %v779
    %2602 = vmatprep.subr.mxu0 %v784
    %2603 = vmatpush1.msra.mxu0 %v783
    %2604 = vmatprep.subr.mxu0 %v788
    %2605 = vmatpush1.msra.mxu0 %v787
    %2606 = vmatprep.subr.mxu0 %v792
    %2607 = vmatpush1.msra.mxu0 %v791
    %2608 = vmatprep.subr.mxu0 %v796
    %2609 = vmatpush1.msra.mxu0 %v795
    %2610 = vmatprep.subr.mxu0 %v800
    %2611 = vmatpush1.msra.mxu0 %v799
    %2612 = vmatprep.subr.mxu0 %v804
    %2613 = vmatpush1.msra.mxu0 %v803
    %2614 = vmatprep.subr.mxu0 %v808
    %2615 = vmatpush1.msra.mxu0 %v807
    %2616 = vmatprep.subr.mxu0 %v812
    %2617 = vmatpush1.msra.mxu0 %v811
    %2618 = vmatprep.subr.mxu0 %v816
    %2619 = vmatpush1.msra.mxu0 %v815
    %2620 = vmatprep.mubr.f32.mxu0 %v2378
    %2621 = vmatmul.mubr.f32.gmra.mrb[0].mxu0 %v2555
    %v2622 = vpop.f32.mrb[0].mxu0
    %v2623 = vadd.f32 %v824, %v2622
    %v2624 = vpop.f32.mrb[0].mxu0
    %v2625 = vadd.f32 %v828, %v2624
    %2626 = vdwg.mxu0
    %2627 = vmatprep.subr.mxu0 %v694
    %2628 = vmatpush1.msra.mxu0 %v693
    %2629 = vmatprep.subr.mxu0 %v698
    %2630 = vmatpush1.msra.mxu0 %v697
    %2631 = vmatprep.subr.mxu0 %v702
    %2632 = vmatpush1.msra.mxu0 %v701
    %2633 = vmatprep.subr.mxu0 %v706
    %2634 = vmatpush1.msra.mxu0 %v705
    %2635 = vmatprep.subr.mxu0 %v710
    %2636 = vmatpush1.msra.mxu0 %v709
    %2637 = vmatprep.subr.mxu0 %v714
    %2638 = vmatpush1.msra.mxu0 %v713
    %2639 = vmatprep.subr.mxu0 %v718
    %2640 = vmatpush1.msra.mxu0 %v717
    %2641 = vmatprep.subr.mxu0 %v722
    %2642 = vmatpush1.msra.mxu0 %v721
    %2643 = vmatprep.subr.mxu0 %v726
    %2644 = vmatpush1.msra.mxu0 %v725
    %2645 = vmatprep.subr.mxu0 %v730
    %2646 = vmatpush1.msra.mxu0 %v729
    %2647 = vmatprep.subr.mxu0 %v734
    %2648 = vmatpush1.msra.mxu0 %v733
    %2649 = vmatprep.subr.mxu0 %v738
    %2650 = vmatpush1.msra.mxu0 %v737
    %2651 = vmatprep.subr.mxu0 %v742
    %2652 = vmatpush1.msra.mxu0 %v741
    %2653 = vmatprep.subr.mxu0 %v746
    %2654 = vmatpush1.msra.mxu0 %v745
    %2655 = vmatprep.subr.mxu0 %v750
    %2656 = vmatpush1.msra.mxu0 %v749
    %2657 = vmatprep.subr.mxu0 %v754
    %2658 = vmatpush1.msra.mxu0 %v753
    %2659 = vmatprep.subr.mxu0 %v758
    %2660 = vmatpush1.msra.mxu0 %v757
    %2661 = vmatprep.subr.mxu0 %v762
    %2662 = vmatpush1.msra.mxu0 %v761
    %2663 = vmatprep.subr.mxu0 %v766
    %2664 = vmatpush1.msra.mxu0 %v765
    %2665 = vmatprep.subr.mxu0 %v770
    %2666 = vmatpush1.msra.mxu0 %v769
    %2667 = vmatprep.subr.mxu0 %v774
    %2668 = vmatpush1.msra.mxu0 %v773
    %2669 = vmatprep.subr.mxu0 %v778
    %2670 = vmatpush1.msra.mxu0 %v777
    %2671 = vmatprep.subr.mxu0 %v782
    %2672 = vmatpush1.msra.mxu0 %v781
    %2673 = vmatprep.subr.mxu0 %v786
    %2674 = vmatpush1.msra.mxu0 %v785
    %2675 = vmatprep.subr.mxu0 %v790
    %2676 = vmatpush1.msra.mxu0 %v789
    %2677 = vmatprep.subr.mxu0 %v794
    %2678 = vmatpush1.msra.mxu0 %v793
    %2679 = vmatprep.subr.mxu0 %v798
    %2680 = vmatpush1.msra.mxu0 %v797
    %2681 = vmatprep.subr.mxu0 %v802
    %2682 = vmatpush1.msra.mxu0 %v801
    %2683 = vmatprep.subr.mxu0 %v806
    %2684 = vmatpush1.msra.mxu0 %v805
    %2685 = vmatprep.subr.mxu0 %v810
    %2686 = vmatpush1.msra.mxu0 %v809
    %2687 = vmatprep.subr.mxu0 %v814
    %2688 = vmatpush1.msra.mxu0 %v813
    %2689 = vmatprep.subr.mxu0 %v818
    %2690 = vmatpush1.msra.mxu0 %v817
    %2691 = vmatprep.mubr.f32.mxu0 %v2378
    %2692 = vmatmul.mubr.f32.gmra.mrb[0].mxu0 %v2555
    %v2693 = vpop.f32.mrb[0].mxu0
    %v2694 = vadd.f32 %v832, %v2693
    %v2695 = vpop.f32.mrb[0].mxu0
    %v2696 = vadd.f32 %v836, %v2695
    %2697 = vdwg.mxu0
    %v2698 = vxor.u32 %v2623, 2147483648
    %v2699 = vmul.f32 %v2698, 1.442695
    %v2700 = vpow.pop %v2699
    %v2701 = vadd.f32 %v2700, 1.0
    %v2702 = vrcp.pop %v2701
    %v2703 = vmul.f32 1.0, %v2702
    %v2704 = vxor.u32 %v2625, 2147483648
    %v2705 = vmul.f32 %v2704, 1.442695
    %v2706 = vpow.pop %v2705
    %v2707 = vadd.f32 %v2706, 1.0
    %v2708 = vrcp.pop %v2707
    %v2709 = vmul.f32 1.0, %v2708
    %v2710 = vtanh.pop %v2694
    %v2711 = vxor.u32 %v2696, 2147483648
    %v2712 = vmul.f32 %v2711, 1.442695
    %v2713 = vpow.pop %v2712
    %v2714 = vadd.f32 %v2713, 1.0
    %v2715 = vrcp.pop %v2714
    %v2716 = vmul.f32 1.0, %v2715
    %v2717 = vmul.f32 %v2709, %v2376
    %v2718 = vmul.f32 %v2703, %v2710
    %v2719 = vadd.f32 %v2717, %v2718
    %v2720 = vtanh.pop %v2719
    %v2721 = vmul.f32 %v2716, %v2720
    %s2722 = smul.u32 6, 4
    %s2723 = smul.addr %s2722, 8
    %s2724 = scalar_lea.vmem [#allocation2], %s2723
    %v2725 = vld [vmem:[%s2724] sm:$0xff]
    %v2726 = vld [vmem:[%s2724 + $0x8] sm:$0xff]
    %v2727 = vld [vmem:[%s2724 + $0x10] sm:$0xff]
    %v2728 = vld [vmem:[%s2724 + $0x18] sm:$0xff]
    %2729 = vmatprep.subr.mxu0 %v458
    %2730 = vmatpush1.msra.mxu0 %v457
    %2731 = vmatprep.subr.mxu0 %v462
    %2732 = vmatpush1.msra.mxu0 %v461
    %2733 = vmatprep.subr.mxu0 %v466
    %2734 = vmatpush1.msra.mxu0 %v465
    %2735 = vmatprep.subr.mxu0 %v470
    %2736 = vmatpush1.msra.mxu0 %v469
    %2737 = vmatprep.subr.mxu0 %v474
    %2738 = vmatpush1.msra.mxu0 %v473
    %2739 = vmatprep.subr.mxu0 %v478
    %2740 = vmatpush1.msra.mxu0 %v477
    %2741 = vmatprep.subr.mxu0 %v482
    %2742 = vmatpush1.msra.mxu0 %v481
    %2743 = vmatprep.subr.mxu0 %v486
    %2744 = vmatpush1.msra.mxu0 %v485
    %2745 = vmatprep.subr.mxu0 %v490
    %2746 = vmatpush1.msra.mxu0 %v489
    %2747 = vmatprep.subr.mxu0 %v494
    %2748 = vmatpush1.msra.mxu0 %v493
    %2749 = vmatprep.subr.mxu0 %v498
    %2750 = vmatpush1.msra.mxu0 %v497
    %2751 = vmatprep.subr.mxu0 %v502
    %2752 = vmatpush1.msra.mxu0 %v501
    %2753 = vmatprep.subr.mxu0 %v506
    %2754 = vmatpush1.msra.mxu0 %v505
    %2755 = vmatprep.subr.mxu0 %v510
    %2756 = vmatpush1.msra.mxu0 %v509
    %2757 = vmatprep.subr.mxu0 %v514
    %2758 = vmatpush1.msra.mxu0 %v513
    %2759 = vmatprep.subr.mxu0 %v518
    %2760 = vmatpush1.msra.mxu0 %v517
    %2761 = vmatprep.subr.mxu0 0.0
    %2762 = vmatpush1.msra.mxu0 0.0
    %2763 = vmatprep.subr.mxu0 0.0
    %2764 = vmatpush1.msra.mxu0 0.0
    %2765 = vmatprep.subr.mxu0 0.0
    %2766 = vmatpush1.msra.mxu0 0.0
    %2767 = vmatprep.subr.mxu0 0.0
    %2768 = vmatpush1.msra.mxu0 0.0
    %2769 = vmatprep.subr.mxu0 0.0
    %2770 = vmatpush1.msra.mxu0 0.0
    %2771 = vmatprep.subr.mxu0 0.0
    %2772 = vmatpush1.msra.mxu0 0.0
    %2773 = vmatprep.subr.mxu0 0.0
    %2774 = vmatpush1.msra.mxu0 0.0
    %2775 = vmatprep.subr.mxu0 0.0
    %2776 = vmatpush1.msra.mxu0 0.0
    %2777 = vmatprep.subr.mxu0 0.0
    %2778 = vmatpush1.msra.mxu0 0.0
    %2779 = vmatprep.subr.mxu0 0.0
    %2780 = vmatpush1.msra.mxu0 0.0
    %2781 = vmatprep.subr.mxu0 0.0
    %2782 = vmatpush1.msra.mxu0 0.0
    %2783 = vmatprep.subr.mxu0 0.0
    %2784 = vmatpush1.msra.mxu0 0.0
    %2785 = vmatprep.subr.mxu0 0.0
    %2786 = vmatpush1.msra.mxu0 0.0
    %2787 = vmatprep.subr.mxu0 0.0
    %2788 = vmatpush1.msra.mxu0 0.0
    %2789 = vmatprep.subr.mxu0 0.0
    %2790 = vmatpush1.msra.mxu0 0.0
    %2791 = vmatprep.subr.mxu0 0.0
    %2792 = vmatpush1.msra.mxu0 0.0
    %2793 = vmatprep.mubr.f32.mxu0 0.0
    %2794 = vmatmul.mubr.f32.gmra.mrb[0].mxu0 %v2555
    %v2795 = vpop.f32.mrb[0].mxu0
    %v2796 = vadd.f32 0.0, %v2795
    %v2797 = vpop.f32.mrb[0].mxu0
    %v2798 = vadd.f32 0.0, %v2797
    %2799 = vdwg.mxu0
    %2800 = vmatprep.subr.mxu0 %v460
    %2801 = vmatpush1.msra.mxu0 %v459
    %2802 = vmatprep.subr.mxu0 %v464
    %2803 = vmatpush1.msra.mxu0 %v463
    %2804 = vmatprep.subr.mxu0 %v468
    %2805 = vmatpush1.msra.mxu0 %v467
    %2806 = vmatprep.subr.mxu0 %v472
    %2807 = vmatpush1.msra.mxu0 %v471
    %2808 = vmatprep.subr.mxu0 %v476
    %2809 = vmatpush1.msra.mxu0 %v475
    %2810 = vmatprep.subr.mxu0 %v480
    %2811 = vmatpush1.msra.mxu0 %v479
    %2812 = vmatprep.subr.mxu0 %v484
    %2813 = vmatpush1.msra.mxu0 %v483
    %2814 = vmatprep.subr.mxu0 %v488
    %2815 = vmatpush1.msra.mxu0 %v487
    %2816 = vmatprep.subr.mxu0 %v492
    %2817 = vmatpush1.msra.mxu0 %v491
    %2818 = vmatprep.subr.mxu0 %v496
    %2819 = vmatpush1.msra.mxu0 %v495
    %2820 = vmatprep.subr.mxu0 %v500
    %2821 = vmatpush1.msra.mxu0 %v499
    %2822 = vmatprep.subr.mxu0 %v504
    %2823 = vmatpush1.msra.mxu0 %v503
    %2824 = vmatprep.subr.mxu0 %v508
    %2825 = vmatpush1.msra.mxu0 %v507
    %2826 = vmatprep.subr.mxu0 %v512
    %2827 = vmatpush1.msra.mxu0 %v511
    %2828 = vmatprep.subr.mxu0 %v516
    %2829 = vmatpush1.msra.mxu0 %v515
    %2830 = vmatprep.subr.mxu0 %v520
    %2831 = vmatpush1.msra.mxu0 %v519
    %2832 = vmatprep.subr.mxu0 0.0
    %2833 = vmatpush1.msra.mxu0 0.0
    %2834 = vmatprep.subr.mxu0 0.0
    %2835 = vmatpush1.msra.mxu0 0.0
    %2836 = vmatprep.subr.mxu0 0.0
    %2837 = vmatpush1.msra.mxu0 0.0
    %2838 = vmatprep.subr.mxu0 0.0
    %2839 = vmatpush1.msra.mxu0 0.0
    %2840 = vmatprep.subr.mxu0 0.0
    %2841 = vmatpush1.msra.mxu0 0.0
    %2842 = vmatprep.subr.mxu0 0.0
    %2843 = vmatpush1.msra.mxu0 0.0
    %2844 = vmatprep.subr.mxu0 0.0
    %2845 = vmatpush1.msra.mxu0 0.0
    %2846 = vmatprep.subr.mxu0 0.0
    %2847 = vmatpush1.msra.mxu0 0.0
    %2848 = vmatprep.subr.mxu0 0.0
    %2849 = vmatpush1.msra.mxu0 0.0
    %2850 = vmatprep.subr.mxu0 0.0
    %2851 = vmatpush1.msra.mxu0 0.0
    %2852 = vmatprep.subr.mxu0 0.0
    %2853 = vmatpush1.msra.mxu0 0.0
    %2854 = vmatprep.subr.mxu0 0.0
    %2855 = vmatpush1.msra.mxu0 0.0
    %2856 = vmatprep.subr.mxu0 0.0
    %2857 = vmatpush1.msra.mxu0 0.0
    %2858 = vmatprep.subr.mxu0 0.0
    %2859 = vmatpush1.msra.mxu0 0.0
    %2860 = vmatprep.subr.mxu0 0.0
    %2861 = vmatpush1.msra.mxu0 0.0
    %2862 = vmatprep.subr.mxu0 0.0
    %2863 = vmatpush1.msra.mxu0 0.0
    %2864 = vmatprep.mubr.f32.mxu0 0.0
    %2865 = vmatmul.mubr.f32.gmra.mrb[0].mxu0 %v2555
    %v2866 = vpop.f32.mrb[0].mxu0
    %v2867 = vadd.f32 0.0, %v2866
    %v2868 = vpop.f32.mrb[0].mxu0
    %v2869 = vadd.f32 0.0, %v2868
    %2870 = vdwg.mxu0
    %v2871 = vadd.f32 %v2725, %v2796
    %v2872 = vadd.f32 %v2726, %v2798
    %v2873 = vadd.f32 %v2727, %v2867
    %v2874 = vadd.f32 %v2728, %v2869
    %v2875 = vxor.u32 %v2871, 2147483648
    %v2876 = vmul.f32 %v2875, 1.442695
    %v2877 = vpow.pop %v2876
    %v2878 = vadd.f32 %v2877, 1.0
    %v2879 = vrcp.pop %v2878
    %v2880 = vmul.f32 1.0, %v2879
    %v2881 = vxor.u32 %v2872, 2147483648
    %v2882 = vmul.f32 %v2881, 1.442695
    %v2883 = vpow.pop %v2882
    %v2884 = vadd.f32 %v2883, 1.0
    %v2885 = vrcp.pop %v2884
    %v2886 = vmul.f32 1.0, %v2885
    %v2887 = vtanh.pop %v2873
    %v2888 = vxor.u32 %v2874, 2147483648
    %v2889 = vmul.f32 %v2888, 1.442695
    %v2890 = vpow.pop %v2889
    %v2891 = vadd.f32 %v2890, 1.0
    %v2892 = vrcp.pop %v2891
    %v2893 = vmul.f32 1.0, %v2892
    %v2894 = vmul.f32 %v2886, %v2553
    %v2895 = vmul.f32 %v2880, %v2887
    %v2896 = vadd.f32 %v2894, %v2895
    %v2897 = vtanh.pop %v2896
    %v2898 = vmul.f32 %v2893, %v2897
    %2899 = vmatprep.subr.mxu0 %v692
    %2900 = vmatpush1.msra.mxu0 %v691
    %2901 = vmatprep.subr.mxu0 %v696
    %2902 = vmatpush1.msra.mxu0 %v695
    %2903 = vmatprep.subr.mxu0 %v700
    %2904 = vmatpush1.msra.mxu0 %v699
    %2905 = vmatprep.subr.mxu0 %v704
    %2906 = vmatpush1.msra.mxu0 %v703
    %2907 = vmatprep.subr.mxu0 %v708
    %2908 = vmatpush1.msra.mxu0 %v707
    %2909 = vmatprep.subr.mxu0 %v712
    %2910 = vmatpush1.msra.mxu0 %v711
    %2911 = vmatprep.subr.mxu0 %v716
    %2912 = vmatpush1.msra.mxu0 %v715
    %2913 = vmatprep.subr.mxu0 %v720
    %2914 = vmatpush1.msra.mxu0 %v719
    %2915 = vmatprep.subr.mxu0 %v724
    %2916 = vmatpush1.msra.mxu0 %v723
    %2917 = vmatprep.subr.mxu0 %v728
    %2918 = vmatpush1.msra.mxu0 %v727
    %2919 = vmatprep.subr.mxu0 %v732
    %2920 = vmatpush1.msra.mxu0 %v731
    %2921 = vmatprep.subr.mxu0 %v736
    %2922 = vmatpush1.msra.mxu0 %v735
    %2923 = vmatprep.subr.mxu0 %v740
    %2924 = vmatpush1.msra.mxu0 %v739
    %2925 = vmatprep.subr.mxu0 %v744
    %2926 = vmatpush1.msra.mxu0 %v743
    %2927 = vmatprep.subr.mxu0 %v748
    %2928 = vmatpush1.msra.mxu0 %v747
    %2929 = vmatprep.subr.mxu0 %v752
    %2930 = vmatpush1.msra.mxu0 %v751
    %2931 = vmatprep.subr.mxu0 %v756
    %2932 = vmatpush1.msra.mxu0 %v755
    %2933 = vmatprep.subr.mxu0 %v760
    %2934 = vmatpush1.msra.mxu0 %v759
    %2935 = vmatprep.subr.mxu0 %v764
    %2936 = vmatpush1.msra.mxu0 %v763
    %2937 = vmatprep.subr.mxu0 %v768
    %2938 = vmatpush1.msra.mxu0 %v767
    %2939 = vmatprep.subr.mxu0 %v772
    %2940 = vmatpush1.msra.mxu0 %v771
    %2941 = vmatprep.subr.mxu0 %v776
    %2942 = vmatpush1.msra.mxu0 %v775
    %2943 = vmatprep.subr.mxu0 %v780
    %2944 = vmatpush1.msra.mxu0 %v779
    %2945 = vmatprep.subr.mxu0 %v784
    %2946 = vmatpush1.msra.mxu0 %v783
    %2947 = vmatprep.subr.mxu0 %v788
    %2948 = vmatpush1.msra.mxu0 %v787
    %2949 = vmatprep.subr.mxu0 %v792
    %2950 = vmatpush1.msra.mxu0 %v791
    %2951 = vmatprep.subr.mxu0 %v796
    %2952 = vmatpush1.msra.mxu0 %v795
    %2953 = vmatprep.subr.mxu0 %v800
    %2954 = vmatpush1.msra.mxu0 %v799
    %2955 = vmatprep.subr.mxu0 %v804
    %2956 = vmatpush1.msra.mxu0 %v803
    %2957 = vmatprep.subr.mxu0 %v808
    %2958 = vmatpush1.msra.mxu0 %v807
    %2959 = vmatprep.subr.mxu0 %v812
    %2960 = vmatpush1.msra.mxu0 %v811
    %2961 = vmatprep.subr.mxu0 %v816
    %2962 = vmatpush1.msra.mxu0 %v815
    %2963 = vmatprep.mubr.f32.mxu0 %v2721
    %2964 = vmatmul.mubr.f32.gmra.mrb[0].mxu0 %v2898
    %v2965 = vpop.f32.mrb[0].mxu0
    %v2966 = vadd.f32 %v824, %v2965
    %v2967 = vpop.f32.mrb[0].mxu0
    %v2968 = vadd.f32 %v828, %v2967
    %2969 = vdwg.mxu0
    %2970 = vmatprep.subr.mxu0 %v694
    %2971 = vmatpush1.msra.mxu0 %v693
    %2972 = vmatprep.subr.mxu0 %v698
    %2973 = vmatpush1.msra.mxu0 %v697
    %2974 = vmatprep.subr.mxu0 %v702
    %2975 = vmatpush1.msra.mxu0 %v701
    %2976 = vmatprep.subr.mxu0 %v706
    %2977 = vmatpush1.msra.mxu0 %v705
    %2978 = vmatprep.subr.mxu0 %v710
    %2979 = vmatpush1.msra.mxu0 %v709
    %2980 = vmatprep.subr.mxu0 %v714
    %2981 = vmatpush1.msra.mxu0 %v713
    %2982 = vmatprep.subr.mxu0 %v718
    %2983 = vmatpush1.msra.mxu0 %v717
    %2984 = vmatprep.subr.mxu0 %v722
    %2985 = vmatpush1.msra.mxu0 %v721
    %2986 = vmatprep.subr.mxu0 %v726
    %2987 = vmatpush1.msra.mxu0 %v725
    %2988 = vmatprep.subr.mxu0 %v730
    %2989 = vmatpush1.msra.mxu0 %v729
    %2990 = vmatprep.subr.mxu0 %v734
    %2991 = vmatpush1.msra.mxu0 %v733
    %2992 = vmatprep.subr.mxu0 %v738
    %2993 = vmatpush1.msra.mxu0 %v737
    %2994 = vmatprep.subr.mxu0 %v742
    %2995 = vmatpush1.msra.mxu0 %v741
    %2996 = vmatprep.subr.mxu0 %v746
    %2997 = vmatpush1.msra.mxu0 %v745
    %2998 = vmatprep.subr.mxu0 %v750
    %2999 = vmatpush1.msra.mxu0 %v749
    %3000 = vmatprep.subr.mxu0 %v754
    %3001 = vmatpush1.msra.mxu0 %v753
    %3002 = vmatprep.subr.mxu0 %v758
    %3003 = vmatpush1.msra.mxu0 %v757
    %3004 = vmatprep.subr.mxu0 %v762
    %3005 = vmatpush1.msra.mxu0 %v761
    %3006 = vmatprep.subr.mxu0 %v766
    %3007 = vmatpush1.msra.mxu0 %v765
    %3008 = vmatprep.subr.mxu0 %v770
    %3009 = vmatpush1.msra.mxu0 %v769
    %3010 = vmatprep.subr.mxu0 %v774
    %3011 = vmatpush1.msra.mxu0 %v773
    %3012 = vmatprep.subr.mxu0 %v778
    %3013 = vmatpush1.msra.mxu0 %v777
    %3014 = vmatprep.subr.mxu0 %v782
    %3015 = vmatpush1.msra.mxu0 %v781
    %3016 = vmatprep.subr.mxu0 %v786
    %3017 = vmatpush1.msra.mxu0 %v785
    %3018 = vmatprep.subr.mxu0 %v790
    %3019 = vmatpush1.msra.mxu0 %v789
    %3020 = vmatprep.subr.mxu0 %v794
    %3021 = vmatpush1.msra.mxu0 %v793
    %3022 = vmatprep.subr.mxu0 %v798
    %3023 = vmatpush1.msra.mxu0 %v797
    %3024 = vmatprep.subr.mxu0 %v802
    %3025 = vmatpush1.msra.mxu0 %v801
    %3026 = vmatprep.subr.mxu0 %v806
    %3027 = vmatpush1.msra.mxu0 %v805
    %3028 = vmatprep.subr.mxu0 %v810
    %3029 = vmatpush1.msra.mxu0 %v809
    %3030 = vmatprep.subr.mxu0 %v814
    %3031 = vmatpush1.msra.mxu0 %v813
    %3032 = vmatprep.subr.mxu0 %v818
    %3033 = vmatpush1.msra.mxu0 %v817
    %3034 = vmatprep.mubr.f32.mxu0 %v2721
    %3035 = vmatmul.mubr.f32.gmra.mrb[0].mxu0 %v2898
    %v3036 = vpop.f32.mrb[0].mxu0
    %v3037 = vadd.f32 %v832, %v3036
    %v3038 = vpop.f32.mrb[0].mxu0
    %v3039 = vadd.f32 %v836, %v3038
    %3040 = vdwg.mxu0
    %v3041 = vxor.u32 %v2966, 2147483648
    %v3042 = vmul.f32 %v3041, 1.442695
    %v3043 = vpow.pop %v3042
    %v3044 = vadd.f32 %v3043, 1.0
    %v3045 = vrcp.pop %v3044
    %v3046 = vmul.f32 1.0, %v3045
    %v3047 = vxor.u32 %v2968, 2147483648
    %v3048 = vmul.f32 %v3047, 1.442695
    %v3049 = vpow.pop %v3048
    %v3050 = vadd.f32 %v3049, 1.0
    %v3051 = vrcp.pop %v3050
    %v3052 = vmul.f32 1.0, %v3051
    %v3053 = vtanh.pop %v3037
    %v3054 = vxor.u32 %v3039, 2147483648
    %v3055 = vmul.f32 %v3054, 1.442695
    %v3056 = vpow.pop %v3055
    %v3057 = vadd.f32 %v3056, 1.0
    %v3058 = vrcp.pop %v3057
    %v3059 = vmul.f32 1.0, %v3058
    %v3060 = vmul.f32 %v3052, %v2719
    %v3061 = vmul.f32 %v3046, %v3053
    %v3062 = vadd.f32 %v3060, %v3061
    %v3063 = vtanh.pop %v3062
    %v3064 = vmul.f32 %v3059, %v3063
    %s3065 = smul.u32 7, 4
    %s3066 = smul.addr %s3065, 8
    %s3067 = scalar_lea.vmem [#allocation2], %s3066
    %v3068 = vld [vmem:[%s3067] sm:$0xff]
    %v3069 = vld [vmem:[%s3067 + $0x8] sm:$0xff]
    %v3070 = vld [vmem:[%s3067 + $0x10] sm:$0xff]
    %v3071 = vld [vmem:[%s3067 + $0x18] sm:$0xff]
    %3072 = vmatprep.subr.mxu0 %v458
    %3073 = vmatpush1.msra.mxu0 %v457
    %3074 = vmatprep.subr.mxu0 %v462
    %3075 = vmatpush1.msra.mxu0 %v461
    %3076 = vmatprep.subr.mxu0 %v466
    %3077 = vmatpush1.msra.mxu0 %v465
    %3078 = vmatprep.subr.mxu0 %v470
    %3079 = vmatpush1.msra.mxu0 %v469
    %3080 = vmatprep.subr.mxu0 %v474
    %3081 = vmatpush1.msra.mxu0 %v473
    %3082 = vmatprep.subr.mxu0 %v478
    %3083 = vmatpush1.msra.mxu0 %v477
    %3084 = vmatprep.subr.mxu0 %v482
    %3085 = vmatpush1.msra.mxu0 %v481
    %3086 = vmatprep.subr.mxu0 %v486
    %3087 = vmatpush1.msra.mxu0 %v485
    %3088 = vmatprep.subr.mxu0 %v490
    %3089 = vmatpush1.msra.mxu0 %v489
    %3090 = vmatprep.subr.mxu0 %v494
    %3091 = vmatpush1.msra.mxu0 %v493
    %3092 = vmatprep.subr.mxu0 %v498
    %3093 = vmatpush1.msra.mxu0 %v497
    %3094 = vmatprep.subr.mxu0 %v502
    %3095 = vmatpush1.msra.mxu0 %v501
    %3096 = vmatprep.subr.mxu0 %v506
    %3097 = vmatpush1.msra.mxu0 %v505
    %3098 = vmatprep.subr.mxu0 %v510
    %3099 = vmatpush1.msra.mxu0 %v509
    %3100 = vmatprep.subr.mxu0 %v514
    %3101 = vmatpush1.msra.mxu0 %v513
    %3102 = vmatprep.subr.mxu0 %v518
    %3103 = vmatpush1.msra.mxu0 %v517
    %3104 = vmatprep.subr.mxu0 0.0
    %3105 = vmatpush1.msra.mxu0 0.0
    %3106 = vmatprep.subr.mxu0 0.0
    %3107 = vmatpush1.msra.mxu0 0.0
    %3108 = vmatprep.subr.mxu0 0.0
    %3109 = vmatpush1.msra.mxu0 0.0
    %3110 = vmatprep.subr.mxu0 0.0
    %3111 = vmatpush1.msra.mxu0 0.0
    %3112 = vmatprep.subr.mxu0 0.0
    %3113 = vmatpush1.msra.mxu0 0.0
    %3114 = vmatprep.subr.mxu0 0.0
    %3115 = vmatpush1.msra.mxu0 0.0
    %3116 = vmatprep.subr.mxu0 0.0
    %3117 = vmatpush1.msra.mxu0 0.0
    %3118 = vmatprep.subr.mxu0 0.0
    %3119 = vmatpush1.msra.mxu0 0.0
    %3120 = vmatprep.subr.mxu0 0.0
    %3121 = vmatpush1.msra.mxu0 0.0
    %3122 = vmatprep.subr.mxu0 0.0
    %3123 = vmatpush1.msra.mxu0 0.0
    %3124 = vmatprep.subr.mxu0 0.0
    %3125 = vmatpush1.msra.mxu0 0.0
    %3126 = vmatprep.subr.mxu0 0.0
    %3127 = vmatpush1.msra.mxu0 0.0
    %3128 = vmatprep.subr.mxu0 0.0
    %3129 = vmatpush1.msra.mxu0 0.0
    %3130 = vmatprep.subr.mxu0 0.0
    %3131 = vmatpush1.msra.mxu0 0.0
    %3132 = vmatprep.subr.mxu0 0.0
    %3133 = vmatpush1.msra.mxu0 0.0
    %3134 = vmatprep.subr.mxu0 0.0
    %3135 = vmatpush1.msra.mxu0 0.0
    %3136 = vmatprep.mubr.f32.mxu0 0.0
    %3137 = vmatmul.mubr.f32.gmra.mrb[0].mxu0 %v2898
    %v3138 = vpop.f32.mrb[0].mxu0
    %v3139 = vadd.f32 0.0, %v3138
    %v3140 = vpop.f32.mrb[0].mxu0
    %v3141 = vadd.f32 0.0, %v3140
    %3142 = vdwg.mxu0
    %3143 = vmatprep.subr.mxu0 %v460
    %3144 = vmatpush1.msra.mxu0 %v459
    %3145 = vmatprep.subr.mxu0 %v464
    %3146 = vmatpush1.msra.mxu0 %v463
    %3147 = vmatprep.subr.mxu0 %v468
    %3148 = vmatpush1.msra.mxu0 %v467
    %3149 = vmatprep.subr.mxu0 %v472
    %3150 = vmatpush1.msra.mxu0 %v471
    %3151 = vmatprep.subr.mxu0 %v476
    %3152 = vmatpush1.msra.mxu0 %v475
    %3153 = vmatprep.subr.mxu0 %v480
    %3154 = vmatpush1.msra.mxu0 %v479
    %3155 = vmatprep.subr.mxu0 %v484
    %3156 = vmatpush1.msra.mxu0 %v483
    %3157 = vmatprep.subr.mxu0 %v488
    %3158 = vmatpush1.msra.mxu0 %v487
    %3159 = vmatprep.subr.mxu0 %v492
    %3160 = vmatpush1.msra.mxu0 %v491
    %3161 = vmatprep.subr.mxu0 %v496
    %3162 = vmatpush1.msra.mxu0 %v495
    %3163 = vmatprep.subr.mxu0 %v500
    %3164 = vmatpush1.msra.mxu0 %v499
    %3165 = vmatprep.subr.mxu0 %v504
    %3166 = vmatpush1.msra.mxu0 %v503
    %3167 = vmatprep.subr.mxu0 %v508
    %3168 = vmatpush1.msra.mxu0 %v507
    %3169 = vmatprep.subr.mxu0 %v512
    %3170 = vmatpush1.msra.mxu0 %v511
    %3171 = vmatprep.subr.mxu0 %v516
    %3172 = vmatpush1.msra.mxu0 %v515
    %3173 = vmatprep.subr.mxu0 %v520
    %3174 = vmatpush1.msra.mxu0 %v519
    %3175 = vmatprep.subr.mxu0 0.0
    %3176 = vmatpush1.msra.mxu0 0.0
    %3177 = vmatprep.subr.mxu0 0.0
    %3178 = vmatpush1.msra.mxu0 0.0
    %3179 = vmatprep.subr.mxu0 0.0
    %3180 = vmatpush1.msra.mxu0 0.0
    %3181 = vmatprep.subr.mxu0 0.0
    %3182 = vmatpush1.msra.mxu0 0.0
    %3183 = vmatprep.subr.mxu0 0.0
    %3184 = vmatpush1.msra.mxu0 0.0
    %3185 = vmatprep.subr.mxu0 0.0
    %3186 = vmatpush1.msra.mxu0 0.0
    %3187 = vmatprep.subr.mxu0 0.0
    %3188 = vmatpush1.msra.mxu0 0.0
    %3189 = vmatprep.subr.mxu0 0.0
    %3190 = vmatpush1.msra.mxu0 0.0
    %3191 = vmatprep.subr.mxu0 0.0
    %3192 = vmatpush1.msra.mxu0 0.0
    %3193 = vmatprep.subr.mxu0 0.0
    %3194 = vmatpush1.msra.mxu0 0.0
    %3195 = vmatprep.subr.mxu0 0.0
    %3196 = vmatpush1.msra.mxu0 0.0
    %3197 = vmatprep.subr.mxu0 0.0
    %3198 = vmatpush1.msra.mxu0 0.0
    %3199 = vmatprep.subr.mxu0 0.0
    %3200 = vmatpush1.msra.mxu0 0.0
    %3201 = vmatprep.subr.mxu0 0.0
    %3202 = vmatpush1.msra.mxu0 0.0
    %3203 = vmatprep.subr.mxu0 0.0
    %3204 = vmatpush1.msra.mxu0 0.0
    %3205 = vmatprep.subr.mxu0 0.0
    %3206 = vmatpush1.msra.mxu0 0.0
    %3207 = vmatprep.mubr.f32.mxu0 0.0
    %3208 = vmatmul.mubr.f32.gmra.mrb[0].mxu0 %v2898
    %v3209 = vpop.f32.mrb[0].mxu0
    %v3210 = vadd.f32 0.0, %v3209
    %v3211 = vpop.f32.mrb[0].mxu0
    %v3212 = vadd.f32 0.0, %v3211
    %3213 = vdwg.mxu0
    %v3214 = vadd.f32 %v3068, %v3139
    %v3215 = vadd.f32 %v3069, %v3141
    %v3216 = vadd.f32 %v3070, %v3210
    %v3217 = vadd.f32 %v3071, %v3212
    %v3218 = vxor.u32 %v3214, 2147483648
    %v3219 = vmul.f32 %v3218, 1.442695
    %v3220 = vpow.pop %v3219
    %v3221 = vadd.f32 %v3220, 1.0
    %v3222 = vrcp.pop %v3221
    %v3223 = vmul.f32 1.0, %v3222
    %v3224 = vxor.u32 %v3215, 2147483648
    %v3225 = vmul.f32 %v3224, 1.442695
    %v3226 = vpow.pop %v3225
    %v3227 = vadd.f32 %v3226, 1.0
    %v3228 = vrcp.pop %v3227
    %v3229 = vmul.f32 1.0, %v3228
    %v3230 = vtanh.pop %v3216
    %v3231 = vxor.u32 %v3217, 2147483648
    %v3232 = vmul.f32 %v3231, 1.442695
    %v3233 = vpow.pop %v3232
    %v3234 = vadd.f32 %v3233, 1.0
    %v3235 = vrcp.pop %v3234
    %v3236 = vmul.f32 1.0, %v3235
    %v3237 = vmul.f32 %v3229, %v2896
    %v3238 = vmul.f32 %v3223, %v3230
    %v3239 = vadd.f32 %v3237, %v3238
    %v3240 = vtanh.pop %v3239
    %v3241 = vmul.f32 %v3236, %v3240
    %3242 = vmatprep.subr.mxu0 %v692
    %3243 = vmatpush1.msra.mxu0 %v691
    %3244 = vmatprep.subr.mxu0 %v696
    %3245 = vmatpush1.msra.mxu0 %v695
    %3246 = vmatprep.subr.mxu0 %v700
    %3247 = vmatpush1.msra.mxu0 %v699
    %3248 = vmatprep.subr.mxu0 %v704
    %3249 = vmatpush1.msra.mxu0 %v703
    %3250 = vmatprep.subr.mxu0 %v708
    %3251 = vmatpush1.msra.mxu0 %v707
    %3252 = vmatprep.subr.mxu0 %v712
    %3253 = vmatpush1.msra.mxu0 %v711
    %3254 = vmatprep.subr.mxu0 %v716
    %3255 = vmatpush1.msra.mxu0 %v715
    %3256 = vmatprep.subr.mxu0 %v720
    %3257 = vmatpush1.msra.mxu0 %v719
    %3258 = vmatprep.subr.mxu0 %v724
    %3259 = vmatpush1.msra.mxu0 %v723
    %3260 = vmatprep.subr.mxu0 %v728
    %3261 = vmatpush1.msra.mxu0 %v727
    %3262 = vmatprep.subr.mxu0 %v732
    %3263 = vmatpush1.msra.mxu0 %v731
    %3264 = vmatprep.subr.mxu0 %v736
    %3265 = vmatpush1.msra.mxu0 %v735
    %3266 = vmatprep.subr.mxu0 %v740
    %3267 = vmatpush1.msra.mxu0 %v739
    %3268 = vmatprep.subr.mxu0 %v744
    %3269 = vmatpush1.msra.mxu0 %v743
    %3270 = vmatprep.subr.mxu0 %v748
    %3271 = vmatpush1.msra.mxu0 %v747
    %3272 = vmatprep.subr.mxu0 %v752
    %3273 = vmatpush1.msra.mxu0 %v751
    %3274 = vmatprep.subr.mxu0 %v756
    %3275 = vmatpush1.msra.mxu0 %v755
    %3276 = vmatprep.subr.mxu0 %v760
    %3277 = vmatpush1.msra.mxu0 %v759
    %3278 = vmatprep.subr.mxu0 %v764
    %3279 = vmatpush1.msra.mxu0 %v763
    %3280 = vmatprep.subr.mxu0 %v768
    %3281 = vmatpush1.msra.mxu0 %v767
    %3282 = vmatprep.subr.mxu0 %v772
    %3283 = vmatpush1.msra.mxu0 %v771
    %3284 = vmatprep.subr.mxu0 %v776
    %3285 = vmatpush1.msra.mxu0 %v775
    %3286 = vmatprep.subr.mxu0 %v780
    %3287 = vmatpush1.msra.mxu0 %v779
    %3288 = vmatprep.subr.mxu0 %v784
    %3289 = vmatpush1.msra.mxu0 %v783
    %3290 = vmatprep.subr.mxu0 %v788
    %3291 = vmatpush1.msra.mxu0 %v787
    %3292 = vmatprep.subr.mxu0 %v792
    %3293 = vmatpush1.msra.mxu0 %v791
    %3294 = vmatprep.subr.mxu0 %v796
    %3295 = vmatpush1.msra.mxu0 %v795
    %3296 = vmatprep.subr.mxu0 %v800
    %3297 = vmatpush1.msra.mxu0 %v799
    %3298 = vmatprep.subr.mxu0 %v804
    %3299 = vmatpush1.msra.mxu0 %v803
    %3300 = vmatprep.subr.mxu0 %v808
    %3301 = vmatpush1.msra.mxu0 %v807
    %3302 = vmatprep.subr.mxu0 %v812
    %3303 = vmatpush1.msra.mxu0 %v811
    %3304 = vmatprep.subr.mxu0 %v816
    %3305 = vmatpush1.msra.mxu0 %v815
    %3306 = vmatprep.mubr.f32.mxu0 %v3064
    %3307 = vmatmul.mubr.f32.gmra.mrb[0].mxu0 %v3241
    %v3308 = vpop.f32.mrb[0].mxu0
    %v3309 = vadd.f32 %v824, %v3308
    %v3310 = vpop.f32.mrb[0].mxu0
    %v3311 = vadd.f32 %v828, %v3310
    %3312 = vdwg.mxu0
    %3313 = vmatprep.subr.mxu0 %v694
    %3314 = vmatpush1.msra.mxu0 %v693
    %3315 = vmatprep.subr.mxu0 %v698
    %3316 = vmatpush1.msra.mxu0 %v697
    %3317 = vmatprep.subr.mxu0 %v702
    %3318 = vmatpush1.msra.mxu0 %v701
    %3319 = vmatprep.subr.mxu0 %v706
    %3320 = vmatpush1.msra.mxu0 %v705
    %3321 = vmatprep.subr.mxu0 %v710
    %3322 = vmatpush1.msra.mxu0 %v709
    %3323 = vmatprep.subr.mxu0 %v714
    %3324 = vmatpush1.msra.mxu0 %v713
    %3325 = vmatprep.subr.mxu0 %v718
    %3326 = vmatpush1.msra.mxu0 %v717
    %3327 = vmatprep.subr.mxu0 %v722
    %3328 = vmatpush1.msra.mxu0 %v721
    %3329 = vmatprep.subr.mxu0 %v726
    %3330 = vmatpush1.msra.mxu0 %v725
    %3331 = vmatprep.subr.mxu0 %v730
    %3332 = vmatpush1.msra.mxu0 %v729
    %3333 = vmatprep.subr.mxu0 %v734
    %3334 = vmatpush1.msra.mxu0 %v733
    %3335 = vmatprep.subr.mxu0 %v738
    %3336 = vmatpush1.msra.mxu0 %v737
    %3337 = vmatprep.subr.mxu0 %v742
    %3338 = vmatpush1.msra.mxu0 %v741
    %3339 = vmatprep.subr.mxu0 %v746
    %3340 = vmatpush1.msra.mxu0 %v745
    %3341 = vmatprep.subr.mxu0 %v750
    %3342 = vmatpush1.msra.mxu0 %v749
    %3343 = vmatprep.subr.mxu0 %v754
    %3344 = vmatpush1.msra.mxu0 %v753
    %3345 = vmatprep.subr.mxu0 %v758
    %3346 = vmatpush1.msra.mxu0 %v757
    %3347 = vmatprep.subr.mxu0 %v762
    %3348 = vmatpush1.msra.mxu0 %v761
    %3349 = vmatprep.subr.mxu0 %v766
    %3350 = vmatpush1.msra.mxu0 %v765
    %3351 = vmatprep.subr.mxu0 %v770
    %3352 = vmatpush1.msra.mxu0 %v769
    %3353 = vmatprep.subr.mxu0 %v774
    %3354 = vmatpush1.msra.mxu0 %v773
    %3355 = vmatprep.subr.mxu0 %v778
    %3356 = vmatpush1.msra.mxu0 %v777
    %3357 = vmatprep.subr.mxu0 %v782
    %3358 = vmatpush1.msra.mxu0 %v781
    %3359 = vmatprep.subr.mxu0 %v786
    %3360 = vmatpush1.msra.mxu0 %v785
    %3361 = vmatprep.subr.mxu0 %v790
    %3362 = vmatpush1.msra.mxu0 %v789
    %3363 = vmatprep.subr.mxu0 %v794
    %3364 = vmatpush1.msra.mxu0 %v793
    %3365 = vmatprep.subr.mxu0 %v798
    %3366 = vmatpush1.msra.mxu0 %v797
    %3367 = vmatprep.subr.mxu0 %v802
    %3368 = vmatpush1.msra.mxu0 %v801
    %3369 = vmatprep.subr.mxu0 %v806
    %3370 = vmatpush1.msra.mxu0 %v805
    %3371 = vmatprep.subr.mxu0 %v810
    %3372 = vmatpush1.msra.mxu0 %v809
    %3373 = vmatprep.subr.mxu0 %v814
    %3374 = vmatpush1.msra.mxu0 %v813
    %3375 = vmatprep.subr.mxu0 %v818
    %3376 = vmatpush1.msra.mxu0 %v817
    %3377 = vmatprep.mubr.f32.mxu0 %v3064
    %3378 = vmatmul.mubr.f32.gmra.mrb[0].mxu0 %v3241
    %v3379 = vpop.f32.mrb[0].mxu0
    %v3380 = vadd.f32 %v832, %v3379
    %v3381 = vpop.f32.mrb[0].mxu0
    %v3382 = vadd.f32 %v836, %v3381
    %3383 = vdwg.mxu0
    %v3384 = vxor.u32 %v3309, 2147483648
    %v3385 = vmul.f32 %v3384, 1.442695
    %v3386 = vpow.pop %v3385
    %v3387 = vadd.f32 %v3386, 1.0
    %v3388 = vrcp.pop %v3387
    %v3389 = vmul.f32 1.0, %v3388
    %v3390 = vxor.u32 %v3311, 2147483648
    %v3391 = vmul.f32 %v3390, 1.442695
    %v3392 = vpow.pop %v3391
    %v3393 = vadd.f32 %v3392, 1.0
    %v3394 = vrcp.pop %v3393
    %v3395 = vmul.f32 1.0, %v3394
    %v3396 = vtanh.pop %v3380
    %v3397 = vxor.u32 %v3382, 2147483648
    %v3398 = vmul.f32 %v3397, 1.442695
    %v3399 = vpow.pop %v3398
    %v3400 = vadd.f32 %v3399, 1.0
    %v3401 = vrcp.pop %v3400
    %v3402 = vmul.f32 1.0, %v3401
    %v3403 = vmul.f32 %v3395, %v3062
    %v3404 = vmul.f32 %v3389, %v3396
    %v3405 = vadd.f32 %v3403, %v3404
    %v3406 = vtanh.pop %v3405
    %v3407 = vmul.f32 %v3402, %v3406
    %v3408 = vld [vmem:[#allocation11] sm:$0xff]
    %v3409 = vld [vmem:[#allocation11 + $0x8] sm:$0xff]
    %v3410 = vld [vmem:[#allocation11 + $0x10] sm:$0xff]
    %v3411 = vld [vmem:[#allocation11 + $0x18] sm:$0xff]
    %v3412 = vld [vmem:[#allocation11 + $0x20] sm:$0xff]
    %v3413 = vld [vmem:[#allocation11 + $0x28] sm:$0xff]
    %v3414 = vld [vmem:[#allocation11 + $0x30] sm:$0xff]
    %v3415 = vld [vmem:[#allocation11 + $0x38] sm:$0xff]
    %v3416 = vld [vmem:[#allocation11 + $0x40] sm:$0xff]
    %v3417 = vld [vmem:[#allocation11 + $0x48] sm:$0xff]
    %v3418 = vld [vmem:[#allocation11 + $0x50] sm:$0xff]
    %v3419 = vld [vmem:[#allocation11 + $0x58] sm:$0xff]
    %v3420 = vld [vmem:[#allocation11 + $0x60] sm:$0xff]
    %v3421 = vld [vmem:[#allocation11 + $0x68] sm:$0xff]
    %v3422 = vld [vmem:[#allocation11 + $0x70] sm:$0xff]
    %v3423 = vld [vmem:[#allocation11 + $0x78] sm:$0xff]
    %v3424 = vld [vmem:[%s7] sm:$0x1]
    %v3426 = vlaneseq
    %v3427 = vshrl.u32 %v3426, 7
    %v3428 = vsub.s32 0, %v3427
    %v3429 = vrot.slane %v3424, %v3428
    %3431 = vmatprep.subr.mxu0 0.0
    %3432 = vmatpush1.msra.mxu0 %v3408
    %3433 = vmatprep.subr.mxu0 0.0
    %3434 = vmatpush1.msra.mxu0 %v3409
    %3435 = vmatprep.subr.mxu0 0.0
    %3436 = vmatpush1.msra.mxu0 %v3410
    %3437 = vmatprep.subr.mxu0 0.0
    %3438 = vmatpush1.msra.mxu0 %v3411
    %3439 = vmatprep.subr.mxu0 0.0
    %3440 = vmatpush1.msra.mxu0 %v3412
    %3441 = vmatprep.subr.mxu0 0.0
    %3442 = vmatpush1.msra.mxu0 %v3413
    %3443 = vmatprep.subr.mxu0 0.0
    %3444 = vmatpush1.msra.mxu0 %v3414
    %3445 = vmatprep.subr.mxu0 0.0
    %3446 = vmatpush1.msra.mxu0 %v3415
    %3447 = vmatprep.subr.mxu0 0.0
    %3448 = vmatpush1.msra.mxu0 %v3416
    %3449 = vmatprep.subr.mxu0 0.0
    %3450 = vmatpush1.msra.mxu0 %v3417
    %3451 = vmatprep.subr.mxu0 0.0
    %3452 = vmatpush1.msra.mxu0 %v3418
    %3453 = vmatprep.subr.mxu0 0.0
    %3454 = vmatpush1.msra.mxu0 %v3419
    %3455 = vmatprep.subr.mxu0 0.0
    %3456 = vmatpush1.msra.mxu0 %v3420
    %3457 = vmatprep.subr.mxu0 0.0
    %3458 = vmatpush1.msra.mxu0 %v3421
    %3459 = vmatprep.subr.mxu0 0.0
    %3460 = vmatpush1.msra.mxu0 %v3422
    %3461 = vmatprep.subr.mxu0 0.0
    %3462 = vmatpush1.msra.mxu0 %v3423
    %3463 = vmatprep.subr.mxu0 0.0
    %3464 = vmatpush1.msra.mxu0 0.0
    %3465 = vmatprep.subr.mxu0 0.0
    %3466 = vmatpush1.msra.mxu0 0.0
    %3467 = vmatprep.subr.mxu0 0.0
    %3468 = vmatpush1.msra.mxu0 0.0
    %3469 = vmatprep.subr.mxu0 0.0
    %3470 = vmatpush1.msra.mxu0 0.0
    %3471 = vmatprep.subr.mxu0 0.0
    %3472 = vmatpush1.msra.mxu0 0.0
    %3473 = vmatprep.subr.mxu0 0.0
    %3474 = vmatpush1.msra.mxu0 0.0
    %3475 = vmatprep.subr.mxu0 0.0
    %3476 = vmatpush1.msra.mxu0 0.0
    %3477 = vmatprep.subr.mxu0 0.0
    %3478 = vmatpush1.msra.mxu0 0.0
    %3479 = vmatprep.subr.mxu0 0.0
    %3480 = vmatpush1.msra.mxu0 0.0
    %3481 = vmatprep.subr.mxu0 0.0
    %3482 = vmatpush1.msra.mxu0 0.0
    %3483 = vmatprep.subr.mxu0 0.0
    %3484 = vmatpush1.msra.mxu0 0.0
    %3485 = vmatprep.subr.mxu0 0.0
    %3486 = vmatpush1.msra.mxu0 0.0
    %3487 = vmatprep.subr.mxu0 0.0
    %3488 = vmatpush1.msra.mxu0 0.0
    %3489 = vmatprep.subr.mxu0 0.0
    %3490 = vmatpush1.msra.mxu0 0.0
    %3491 = vmatprep.subr.mxu0 0.0
    %3492 = vmatpush1.msra.mxu0 0.0
    %3493 = vmatprep.subr.mxu0 0.0
    %3494 = vmatpush1.msra.mxu0 0.0
    %3495 = vmatprep.mubr.f32.mxu0 0.0
    %3496 = vmatmul.mubr.f32.gmra.mrb[0].mxu0 %v3407
    %v3497 = vpop.f32.mrb[0].mxu0
    %v3498 = vadd.f32 %v3429, %v3497
    %v3499 = vpop.f32.mrb[0].mxu0
    %3500 = vdwg.mxu0
    %3501 = vst [vmem:[#allocation12] sm:$0xff] %v3498
    // Predicated region
    $region54: #{tpu_custom_call.1} parent=1 // pred_check
      _
    $region55: #{tpu_custom_call.1} parent=1 // pred_check_branch
      %3503 = sbr.rel (0) target = $region57
    $region56: #{tpu_custom_call.1} parent=1 // pred_region
      %s3505 = ssub.s32 128, 128
      %3506 = vsyncadd [#allocation5], %s3505
      %s3508 = sshll.u32 [#allocation12], 4
      %s3509 = int_to_ptr.vmem [resolvable:$true] %s3508
      %3511 = dma.vmem_to_hbm [thread:$0]  %s3509, 128, %s8, [#allocation5]
    $region57: #{tpu_custom_call.1} parent=1 // pred_fallthru
      _
    // Predicated region
    $region58: #{tpu_custom_call.1} parent=1 // pred_check
      _
    $region59: #{tpu_custom_call.1} parent=1 // pred_check_branch
      %3513 = sbr.rel (0) target = $region61
    $region60: #{tpu_custom_call.1} parent=1 // pred_region
      %3514 = dma.done [#allocation5], 128
    $region61: #{tpu_custom_call.1} parent=1 // pred_fallthru
      _
    %3515 = vsyncpa [#allocation4], 1
    %3516 = vsyncpa [#allocation7], 1
    %3517 = vsyncpa [#allocation10], 1
    %3518 = vsyncpa [#allocation5], 1

</llo_original>
